<compile_context>
chip_gen: v6e
topology: v6e:2x2x1
jax: 0.10.0
libtpu: 0.0.40
codegen_flags: <defaults>
</compile_context>

<pallas_src>
import functools
import math

import jax
import jax.numpy as jnp
from jax import lax
from jax.experimental import pallas as pl
from jax.experimental.pallas import tpu as pltpu


# ----------------------------- kernel ----------------------------------------


def _norm(x, k, b):
    # matches PyTorch: mean / std(unbiased) over last dim, (x-mean)/(std+1e-5), scale+shift
    d = x.shape[-1]
    mean = jnp.mean(x, axis=-1, keepdims=True)
    var = jnp.sum((x - mean) ** 2, axis=-1, keepdims=True) * (1.0 / (d - 1))  # ddof=1
    inv = pl.reciprocal(jnp.sqrt(var) + 1e-5, approx=False)  # exact: feeds every matmul
    return k * ((x - mean) * inv) + b


def block_kernel(
    x_ref,                               # (1, S, D) f32 — full sequence for this batch
    k1_ref, b1_ref,                      # norm1 scale / shift   (1, D) f32
    wq_ref, bq_ref, wk_ref, bk_ref,      # attention projections (D, D) bf16 / (1, D) f32
    wv_ref, bv_ref, wo_ref, bo_ref,
    k2_ref, b2_ref,                      # norm2 scale / shift   (1, D) f32
    w1_ref, bf1_ref,                     # FF layer 1            (D, F) bf16 / (1, F) f32
    w2_ref, bf2_ref,                     # FF layer 2            (F, D) bf16 / (1, D) f32
    out_ref,                             # (1, q_tile, D) f32
    xn_scratch,                          # (S, D) bf16 VMEM — Norm1(x) for the full sequence
    k_scratch, v_scratch,                # (S, D) bf16 VMEM — full-seq K / V
    o_scratch,                           # (q_tile, D) bf16 VMEM — per-head attn outputs
    *, num_heads, head_dim, q_tile,
):
    qi = pl.program_id(1)

    # ---- once per batch: Norm1(x) and full-sequence K / V into bf16 VMEM scratch ----
    @pl.when(qi == 0)
    def _():
        x_full = x_ref[0]                                                   # (S, D) f32
        xn = _norm(x_full, k1_ref[...], b1_ref[...]).astype(jnp.bfloat16)
        xn_scratch[...] = xn
        kf = jnp.dot(xn, wk_ref[...], preferred_element_type=jnp.float32) + bk_ref[...]
        vf = jnp.dot(xn, wv_ref[...], preferred_element_type=jnp.float32) + bv_ref[...]
        k_scratch[...] = kf.astype(jnp.bfloat16)
        v_scratch[...] = vf.astype(jnp.bfloat16)

    # ---- per q-tile: Q projection (softmax scale folded into Q) -----------------
    row0 = pl.multiple_of(qi * q_tile, q_tile)
    xt = x_ref[0, pl.ds(row0, q_tile), :]                                    # (TQ, D) f32 (residual)
    xn_t = xn_scratch[pl.ds(row0, q_tile), :]                                # (TQ, D) bf16
    q_t = jnp.dot(xn_t, wq_ref[...], preferred_element_type=jnp.float32) + bq_ref[...]
    scale = 1.0 / math.sqrt(head_dim)
    qb = (q_t * scale).astype(jnp.bfloat16)                                  # (TQ, D) bf16

    # ---- attention over the full-sequence K/V scratch ---------------------------
    dn = (((1,), (1,)), ((), ()))        # contract last dims: A @ B^T
    for h in range(num_heads):           # static unroll (num_heads small)
        sl = slice(h * head_dim, (h + 1) * head_dim)
        kh = k_scratch[:, sl]                                                # (S, hd) bf16
        vh = v_scratch[:, sl]                                                # (S, hd) bf16
        s = lax.dot_general(qb[:, sl], kh, dn,
                            preferred_element_type=jnp.float32)              # (TQ, S) f32
        s = s - jnp.max(s, axis=-1, keepdims=True)
        e = jnp.exp(s)
        p = e * pl.reciprocal(jnp.sum(e, axis=-1, keepdims=True), approx=True)
        pv = jnp.dot(p.astype(jnp.bfloat16), vh,
                     preferred_element_type=jnp.float32)                     # (TQ, hd) f32
        o_scratch[:, sl] = pv.astype(jnp.bfloat16)                           # bf16 writeback

    attn_cat = o_scratch[...]                                                # (TQ, D) bf16
    o = jnp.dot(attn_cat, wo_ref[...], preferred_element_type=jnp.float32) + bo_ref[...]
    y = xt + o                                                               # first residual (f32)

    # ---- Norm2 + feed-forward (SiLU) --------------------------------------------
    yn = _norm(y, k2_ref[...], b2_ref[...]).astype(jnp.bfloat16)
    h1 = jnp.dot(yn, w1_ref[...], preferred_element_type=jnp.float32) + bf1_ref[...]
    h1 = (h1 * jax.nn.sigmoid(h1)).astype(jnp.bfloat16)                      # SiLU (f32), cast for MXU
    h2 = jnp.dot(h1, w2_ref[...], preferred_element_type=jnp.float32) + bf2_ref[...]

    out_ref[0] = (y + h2).astype(out_ref.dtype)


# ----------------------------- wrapper ----------------------------------------


def block_forward(x, params, num_heads, q_tile=None):
    B, S, D = x.shape
    head_dim = D // num_heads
    d_ff = params["w1"].shape[-1]
    if q_tile is None:
        q_tile = min(S, 256)             # big tiles: better MXU fill, fewer grid steps
    q_tile = min(q_tile, S)
    assert S % q_tile == 0, "seq_len must be divisible by q_tile"

    bf16 = jnp.bfloat16
    # matmul weights in bf16 (halves DMA/VMEM, bf16 MXU); norm params & biases stay f32
    weights = [
        params["k1"], params["b1n"],
        params["wq"].astype(bf16), params["bq"],
        params["wk"].astype(bf16), params["bk"],
        params["wv"].astype(bf16), params["bv"],
        params["wo"].astype(bf16), params["bo"],
        params["k2"], params["b2n"],
        params["w1"].astype(bf16), params["bf1"],
        params["w2"].astype(bf16), params["bf2"],
    ]

    n_q = S // q_tile
    grid = (B, n_q)

    # x: full (S, D) slab per batch; block index constant over qi → fetched once per batch.
    x_spec = pl.BlockSpec((1, S, D), lambda b, qi: (b, 0, 0))
    # weights: whole array resident in VMEM, single-buffered (no pipelining / no double buffers).
    w_spec = pl.BlockSpec(memory_space=pltpu.MemorySpace.VMEM)
    in_specs = [x_spec] + [w_spec] * len(weights)
    out_spec = pl.BlockSpec((1, q_tile, D), lambda b, qi: (b, qi, 0))

    kernel = functools.partial(
        block_kernel, num_heads=num_heads, head_dim=head_dim, q_tile=q_tile)

    flops = B * (8 * S * D * D + 4 * S * S * D + 4 * S * D * d_ff)
    transcendentals = B * (num_heads * S * S + S * d_ff)
    bytes_accessed = 2 * B * S * D * 4 + 2 * (4 * D * D + 2 * D * d_ff)

    return pl.pallas_call(
        kernel,
        out_shape=jax.ShapeDtypeStruct((B, S, D), x.dtype),
        grid_spec=pltpu.PrefetchScalarGridSpec(
            num_scalar_prefetch=0,
            grid=grid,
            in_specs=in_specs,
            out_specs=out_spec,
            scratch_shapes=[
                pltpu.VMEM((S, D), jnp.bfloat16),        # Norm1(x) (full sequence)
                pltpu.VMEM((S, D), jnp.bfloat16),        # K (full sequence)
                pltpu.VMEM((S, D), jnp.bfloat16),        # V (full sequence)
                pltpu.VMEM((q_tile, D), jnp.bfloat16),   # concatenated per-head attn output
            ],
        ),
        compiler_params=pltpu.CompilerParams(
            # qi axis MUST stay "arbitrary": every tile reads K/V/xn written at qi==0.
            dimension_semantics=("parallel", "arbitrary"),
            vmem_limit_bytes=64 * 1024 * 1024,
        ),
        cost_estimate=pl.CostEstimate(
            flops=flops,
            transcendentals=transcendentals,
            bytes_accessed=bytes_accessed,
        ),
    )(x, *weights)


# ----------------------------- reference (pure JAX, f32) ------------------------


def _ref_norm(x, k, b):
    mean = jnp.mean(x, axis=-1, keepdims=True)
    var = jnp.sum((x - mean) ** 2, axis=-1, keepdims=True) / (x.shape[-1] - 1)
    std = jnp.sqrt(var)
    return k * ((x - mean) / (std + 1e-5)) + b


def block_reference(x, params, num_heads):
    B, S, D = x.shape
    hd = D // num_heads
    xn = _ref_norm(x, params["k1"], params["b1n"])
    q = xn @ params["wq"] + params["bq"]
    k = xn @ params["wk"] + params["bk"]
    v = xn @ params["wv"] + params["bv"]
    q = q.reshape(B, S, num_heads, hd).transpose(0, 2, 1, 3)
    k = k.reshape(B, S, num_heads, hd).transpose(0, 2, 1, 3)
    v = v.reshape(B, S, num_heads, hd).transpose(0, 2, 1, 3)
    s = jnp.einsum("bhqd,bhkd->bhqk", q, k) / math.sqrt(hd)
    attn = jax.nn.softmax(s, axis=-1)
    o = jnp.einsum("bhqk,bhkd->bhqd", attn, v).transpose(0, 2, 1, 3).reshape(B, S, D)
    o = o @ params["wo"] + params["bo"]
    y = x + o
    yn = _ref_norm(y, params["k2"], params["b2n"])
    h1 = yn @ params["w1"] + params["bf1"]
    h1 = h1 * jax.nn.sigmoid(h1)
    h2 = h1 @ params["w2"] + params["bf2"]
    return y + h2


# ----------------------------- main --------------------------------------------


def make_params(key, d_model, d_ff):
    ks = jax.random.split(key, 8)
    scale = 0.05
    return {
        # norm1
        "k1": jnp.ones((1, d_model), jnp.float32),
        "b1n": jnp.zeros((1, d_model), jnp.float32),
        # attention (weights stored as (in, out) = PyTorch W^T)
        "wq": scale * jax.random.normal(ks[0], (d_model, d_model), jnp.float32),
        "bq": jnp.zeros((1, d_model), jnp.float32),
        "wk": scale * jax.random.normal(ks[1], (d_model, d_model), jnp.float32),
        "bk": jnp.zeros((1, d_model), jnp.float32),
        "wv": scale * jax.random.normal(ks[2], (d_model, d_model), jnp.float32),
        "bv": jnp.zeros((1, d_model), jnp.float32),
        "wo": scale * jax.random.normal(ks[3], (d_model, d_model), jnp.float32),
        "bo": scale * jax.random.normal(ks[4], (1, d_model), jnp.float32),
        # norm2
        "k2": jnp.ones((1, d_model), jnp.float32),
        "b2n": jnp.zeros((1, d_model), jnp.float32),
        # feed-forward
        "w1": scale * jax.random.normal(ks[5], (d_model, d_ff), jnp.float32),
        "bf1": scale * jax.random.normal(ks[6], (1, d_ff), jnp.float32),
        "w2": scale * jax.random.normal(ks[7], (d_ff, d_model), jnp.float32),
        "bf2": jnp.zeros((1, d_model), jnp.float32),
    }


if __name__ == "__main__":
    # small but lane-aligned shapes (D, F multiples of 128; q_tile == S == 128 here)
    B, S, D, H, F = 2, 128, 128, 4, 256

    key = jax.random.PRNGKey(0)
    kx, kp = jax.random.split(key)
    x = jax.random.normal(kx, (B, S, D), jnp.float32)
    params = make_params(kp, D, F)

    out = jax.block_until_ready(block_forward(x, params, num_heads=H))

    ref = block_reference(x, params, num_heads=H)   # f32 reference
    err = float(jnp.max(jnp.abs(out - ref)))
    # bf16 MXU matmuls + approx softmax reciprocal → loosened (but still meaningful) tolerance
    assert err < 5e-2, f"mismatch vs reference, max abs err = {err}"

    print("KERNEL_OK")
</pallas_src>

<mosaic_0001>
module attributes {stable_mosaic.version = 11 : i64} {
  func.func @block_kernel(%arg0: i32, %arg1: i32, %arg2: memref<1x128x128xf32, #tpu.memory_space<vmem>>, %arg3: memref<1x128xf32, #tpu.memory_space<vmem>>, %arg4: memref<1x128xf32, #tpu.memory_space<vmem>>, %arg5: memref<128x128xbf16, #tpu.memory_space<vmem>>, %arg6: memref<1x128xf32, #tpu.memory_space<vmem>>, %arg7: memref<128x128xbf16, #tpu.memory_space<vmem>>, %arg8: memref<1x128xf32, #tpu.memory_space<vmem>>, %arg9: memref<128x128xbf16, #tpu.memory_space<vmem>>, %arg10: memref<1x128xf32, #tpu.memory_space<vmem>>, %arg11: memref<128x128xbf16, #tpu.memory_space<vmem>>, %arg12: memref<1x128xf32, #tpu.memory_space<vmem>>, %arg13: memref<1x128xf32, #tpu.memory_space<vmem>>, %arg14: memref<1x128xf32, #tpu.memory_space<vmem>>, %arg15: memref<128x256xbf16, #tpu.memory_space<vmem>>, %arg16: memref<1x256xf32, #tpu.memory_space<vmem>>, %arg17: memref<256x128xbf16, #tpu.memory_space<vmem>>, %arg18: memref<1x128xf32, #tpu.memory_space<vmem>>, %arg19: memref<1x128x128xf32, #tpu.memory_space<vmem>>, %arg20: memref<128x128xbf16, #tpu.memory_space<vmem>>, %arg21: memref<128x128xbf16, #tpu.memory_space<vmem>>, %arg22: memref<128x128xbf16, #tpu.memory_space<vmem>>, %arg23: memref<128x128xbf16, #tpu.memory_space<vmem>>) attributes {dimension_semantics = [#tpu.dimension_semantics<parallel>, #tpu.dimension_semantics<arbitrary>], iteration_bounds = array<i64: 2, 1>, scalar_prefetch = 0 : i64, scratch_operands = 4 : i64, tpu.core_type = #tpu.core_type<tc>, window_params = [{transform_indices = @transform_0, window_bounds = array<i64: 1, 128, 128>}, {pipeline_mode = #tpu.pipeline_mode<synchronous>, transform_indices = @transform_1, window_bounds = array<i64: 1, 128>}, {pipeline_mode = #tpu.pipeline_mode<synchronous>, transform_indices = @transform_2, window_bounds = array<i64: 1, 128>}, {pipeline_mode = #tpu.pipeline_mode<synchronous>, transform_indices = @transform_3, window_bounds = array<i64: 128, 128>}, {pipeline_mode = #tpu.pipeline_mode<synchronous>, transform_indices = @transform_4, window_bounds = array<i64: 1, 128>}, {pipeline_mode = #tpu.pipeline_mode<synchronous>, transform_indices = @transform_5, window_bounds = array<i64: 128, 128>}, {pipeline_mode = #tpu.pipeline_mode<synchronous>, transform_indices = @transform_6, window_bounds = array<i64: 1, 128>}, {pipeline_mode = #tpu.pipeline_mode<synchronous>, transform_indices = @transform_7, window_bounds = array<i64: 128, 128>}, {pipeline_mode = #tpu.pipeline_mode<synchronous>, transform_indices = @transform_8, window_bounds = array<i64: 1, 128>}, {pipeline_mode = #tpu.pipeline_mode<synchronous>, transform_indices = @transform_9, window_bounds = array<i64: 128, 128>}, {pipeline_mode = #tpu.pipeline_mode<synchronous>, transform_indices = @transform_10, window_bounds = array<i64: 1, 128>}, {pipeline_mode = #tpu.pipeline_mode<synchronous>, transform_indices = @transform_11, window_bounds = array<i64: 1, 128>}, {pipeline_mode = #tpu.pipeline_mode<synchronous>, transform_indices = @transform_12, window_bounds = array<i64: 1, 128>}, {pipeline_mode = #tpu.pipeline_mode<synchronous>, transform_indices = @transform_13, window_bounds = array<i64: 128, 256>}, {pipeline_mode = #tpu.pipeline_mode<synchronous>, transform_indices = @transform_14, window_bounds = array<i64: 1, 256>}, {pipeline_mode = #tpu.pipeline_mode<synchronous>, transform_indices = @transform_15, window_bounds = array<i64: 256, 128>}, {pipeline_mode = #tpu.pipeline_mode<synchronous>, transform_indices = @transform_16, window_bounds = array<i64: 1, 128>}, {transform_indices = @transform_17, window_bounds = array<i64: 1, 128, 128>}]} {
    %c0_i32 = arith.constant 0 : i32
    %0 = arith.cmpi eq, %arg1, %c0_i32 : i32
    %1 = arith.extui %0 : i1 to i32
    %c0_i32_0 = arith.constant 0 : i32
    %2 = arith.cmpi ne, %1, %c0_i32_0 : i32
    scf.if %2 {
      %c0_75 = arith.constant 0 : index
      %c0_76 = arith.constant 0 : index
      %c0_77 = arith.constant 0 : index
      %144 = vector.load %arg2[%c0_75, %c0_76, %c0_77] : memref<1x128x128xf32, #tpu.memory_space<vmem>>, vector<1x128x128xf32>
      %145 = vector.shape_cast %144 : vector<1x128x128xf32> to vector<128x128xf32>
      %c0_78 = arith.constant 0 : index
      %c0_79 = arith.constant 0 : index
      %146 = vector.load %arg3[%c0_78, %c0_79] : memref<1x128xf32, #tpu.memory_space<vmem>>, vector<1x128xf32>
      %c0_80 = arith.constant 0 : index
      %c0_81 = arith.constant 0 : index
      %147 = vector.load %arg4[%c0_80, %c0_81] : memref<1x128xf32, #tpu.memory_space<vmem>>, vector<1x128xf32>
      %cst_82 = arith.constant dense<0.000000e+00> : vector<128xf32>
      %148 = vector.multi_reduction <add>, %145, %cst_82 [1] : vector<128x128xf32> to vector<128xf32>
      %149 = vector.shape_cast %148 : vector<128xf32> to vector<128x1xf32>
      %cst_83 = arith.constant 1.280000e+02 : f32
      %150 = vector.broadcast %cst_83 : f32 to vector<128x1xf32>
      %151 = arith.divf %149, %150 : vector<128x1xf32>
      %152 = vector.broadcast %151 : vector<128x1xf32> to vector<128x128xf32>
      %153 = arith.subf %145, %152 : vector<128x128xf32>
      %154 = arith.mulf %153, %153 : vector<128x128xf32>
      %cst_84 = arith.constant dense<0.000000e+00> : vector<128xf32>
      %155 = vector.multi_reduction <add>, %154, %cst_84 [1] : vector<128x128xf32> to vector<128xf32>
      %156 = vector.shape_cast %155 : vector<128xf32> to vector<128x1xf32>
      %cst_85 = arith.constant 0.00787401571 : f32
      %157 = vector.broadcast %cst_85 : f32 to vector<128x1xf32>
      %158 = arith.mulf %156, %157 : vector<128x1xf32>
      %159 = math.sqrt %158 : vector<128x1xf32>
      %cst_86 = arith.constant 9.99999974E-6 : f32
      %160 = vector.broadcast %cst_86 : f32 to vector<128x1xf32>
      %161 = arith.addf %159, %160 : vector<128x1xf32>
      %162 = tpu.reciprocal %161 : vector<128x1xf32> -> vector<128x1xf32>
      %163 = vector.broadcast %151 : vector<128x1xf32> to vector<128x128xf32>
      %164 = arith.subf %145, %163 : vector<128x128xf32>
      %165 = vector.broadcast %162 : vector<128x1xf32> to vector<128x128xf32>
      %166 = arith.mulf %164, %165 : vector<128x128xf32>
      %167 = vector.broadcast %146 : vector<1x128xf32> to vector<128x128xf32>
      %168 = arith.mulf %167, %166 : vector<128x128xf32>
      %169 = vector.broadcast %147 : vector<1x128xf32> to vector<128x128xf32>
      %170 = arith.addf %168, %169 : vector<128x128xf32>
      %171 = arith.truncf %170 : vector<128x128xf32> to vector<128x128xbf16>
      %c0_87 = arith.constant 0 : index
      %c0_88 = arith.constant 0 : index
      %172 = vector.load %arg20[%c0_87, %c0_88] : memref<128x128xbf16, #tpu.memory_space<vmem>>, vector<128x128xbf16>
      tpu.vector_store %arg20[%c0_87, %c0_88], %171 {strides = array<i32>} : memref<128x128xbf16, #tpu.memory_space<vmem>>, vector<128x128xbf16>,
      %c0_89 = arith.constant 0 : index
      %c0_90 = arith.constant 0 : index
      %173 = vector.load %arg7[%c0_89, %c0_90] : memref<128x128xbf16, #tpu.memory_space<vmem>>, vector<128x128xbf16>
      %cst_91 = arith.constant dense<0.000000e+00> : vector<128x128xf32>
      %174 = tpu.matmul %171, %173, %cst_91 {dimension_numbers = #tpu.dot_dimension_numbers<[1], [0], [0], [1], [0, 0, 1, 1], [], []>} : vector<128x128xbf16>, vector<128x128xbf16>, vector<128x128xf32> -> vector<128x128xf32>
      %c0_92 = arith.constant 0 : index
      %c0_93 = arith.constant 0 : index
      %175 = vector.load %arg8[%c0_92, %c0_93] : memref<1x128xf32, #tpu.memory_space<vmem>>, vector<1x128xf32>
      %176 = vector.broadcast %175 : vector<1x128xf32> to vector<128x128xf32>
      %177 = arith.addf %174, %176 : vector<128x128xf32>
      %c0_94 = arith.constant 0 : index
      %c0_95 = arith.constant 0 : index
      %178 = vector.load %arg9[%c0_94, %c0_95] : memref<128x128xbf16, #tpu.memory_space<vmem>>, vector<128x128xbf16>
      %cst_96 = arith.constant dense<0.000000e+00> : vector<128x128xf32>
      %179 = tpu.matmul %171, %178, %cst_96 {dimension_numbers = #tpu.dot_dimension_numbers<[1], [0], [0], [1], [0, 0, 1, 1], [], []>} : vector<128x128xbf16>, vector<128x128xbf16>, vector<128x128xf32> -> vector<128x128xf32>
      %c0_97 = arith.constant 0 : index
      %c0_98 = arith.constant 0 : index
      %180 = vector.load %arg10[%c0_97, %c0_98] : memref<1x128xf32, #tpu.memory_space<vmem>>, vector<1x128xf32>
      %181 = vector.broadcast %180 : vector<1x128xf32> to vector<128x128xf32>
      %182 = arith.addf %179, %181 : vector<128x128xf32>
      %183 = arith.truncf %177 : vector<128x128xf32> to vector<128x128xbf16>
      %c0_99 = arith.constant 0 : index
      %c0_100 = arith.constant 0 : index
      %184 = vector.load %arg21[%c0_99, %c0_100] : memref<128x128xbf16, #tpu.memory_space<vmem>>, vector<128x128xbf16>
      tpu.vector_store %arg21[%c0_99, %c0_100], %183 {strides = array<i32>} : memref<128x128xbf16, #tpu.memory_space<vmem>>, vector<128x128xbf16>,
      %185 = arith.truncf %182 : vector<128x128xf32> to vector<128x128xbf16>
      %c0_101 = arith.constant 0 : index
      %c0_102 = arith.constant 0 : index
      %186 = vector.load %arg22[%c0_101, %c0_102] : memref<128x128xbf16, #tpu.memory_space<vmem>>, vector<128x128xbf16>
      tpu.vector_store %arg22[%c0_101, %c0_102], %185 {strides = array<i32>} : memref<128x128xbf16, #tpu.memory_space<vmem>>, vector<128x128xbf16>,
    } else {
    }
    %c128_i32 = arith.constant 128 : i32
    %3 = arith.muli %arg1, %c128_i32 : i32
    %4 = tpu.assume_multiple %3, 128 : i32
    %c0 = arith.constant 0 : index
    %5 = arith.index_cast %4 : i32 to index
    %c0_1 = arith.constant 0 : index
    %6 = vector.load %arg2[%c0, %5, %c0_1] : memref<1x128x128xf32, #tpu.memory_space<vmem>>, vector<1x128x128xf32>
    %7 = vector.shape_cast %6 : vector<1x128x128xf32> to vector<128x128xf32>
    %8 = arith.index_cast %4 : i32 to index
    %c0_2 = arith.constant 0 : index
    %9 = vector.load %arg20[%8, %c0_2] : memref<128x128xbf16, #tpu.memory_space<vmem>>, vector<128x128xbf16>
    %c0_3 = arith.constant 0 : index
    %c0_4 = arith.constant 0 : index
    %10 = vector.load %arg5[%c0_3, %c0_4] : memref<128x128xbf16, #tpu.memory_space<vmem>>, vector<128x128xbf16>
    %cst = arith.constant dense<0.000000e+00> : vector<128x128xf32>
    %11 = tpu.matmul %9, %10, %cst {dimension_numbers = #tpu.dot_dimension_numbers<[1], [0], [0], [1], [0, 0, 1, 1], [], []>} : vector<128x128xbf16>, vector<128x128xbf16>, vector<128x128xf32> -> vector<128x128xf32>
    %c0_5 = arith.constant 0 : index
    %c0_6 = arith.constant 0 : index
    %12 = vector.load %arg6[%c0_5, %c0_6] : memref<1x128xf32, #tpu.memory_space<vmem>>, vector<1x128xf32>
    %13 = vector.broadcast %12 : vector<1x128xf32> to vector<128x128xf32>
    %14 = arith.addf %11, %13 : vector<128x128xf32>
    %cst_7 = arith.constant 0.176776692 : f32
    %15 = vector.broadcast %cst_7 : f32 to vector<128x128xf32>
    %16 = arith.mulf %14, %15 : vector<128x128xf32>
    %17 = arith.truncf %16 : vector<128x128xf32> to vector<128x128xbf16>
    %c0_8 = arith.constant 0 : index
    %c0_9 = arith.constant 0 : index
    %18 = vector.load %arg21[%c0_8, %c0_9] : memref<128x128xbf16, #tpu.memory_space<vmem>>, vector<128x32xbf16>
    %c0_10 = arith.constant 0 : index
    %c0_11 = arith.constant 0 : index
    %19 = vector.load %arg22[%c0_10, %c0_11] : memref<128x128xbf16, #tpu.memory_space<vmem>>, vector<128x32xbf16>
    %20 = vector.extract_strided_slice %17 {offsets = [0, 0], sizes = [128, 32], strides = [1, 1]} : vector<128x128xbf16> to vector<128x32xbf16>
    %cst_12 = arith.constant dense<0.000000e+00> : vector<128x128xf32>
    %21 = tpu.matmul %20, %18, %cst_12 {dimension_numbers = #tpu.dot_dimension_numbers<[1], [1], [0], [0], [0, 0, 1, 0], [], []>} : vector<128x32xbf16>, vector<128x32xbf16>, vector<128x128xf32> -> vector<128x128xf32>
    %cst_13 = arith.constant dense<0xFF800000> : vector<128xf32>
    %22 = vector.multi_reduction <maximumf>, %21, %cst_13 [1] : vector<128x128xf32> to vector<128xf32>
    %23 = vector.shape_cast %22 : vector<128xf32> to vector<128x1xf32>
    %24 = vector.broadcast %23 : vector<128x1xf32> to vector<128x128xf32>
    %25 = arith.subf %21, %24 : vector<128x128xf32>
    %26 = math.exp %25 : vector<128x128xf32>
    %cst_14 = arith.constant dense<0.000000e+00> : vector<128xf32>
    %27 = vector.multi_reduction <add>, %26, %cst_14 [1] : vector<128x128xf32> to vector<128xf32>
    %28 = vector.shape_cast %27 : vector<128xf32> to vector<128x1xf32>
    %29 = tpu.reciprocal %28 {approx = true} : vector<128x1xf32> -> vector<128x1xf32>
    %30 = vector.broadcast %29 : vector<128x1xf32> to vector<128x128xf32>
    %31 = arith.mulf %26, %30 : vector<128x128xf32>
    %32 = arith.truncf %31 : vector<128x128xf32> to vector<128x128xbf16>
    %cst_15 = arith.constant dense<0.000000e+00> : vector<128x32xf32>
    %33 = tpu.matmul %32, %19, %cst_15 {dimension_numbers = #tpu.dot_dimension_numbers<[1], [0], [0], [1], [0, 0, 1, 1], [], []>} : vector<128x128xbf16>, vector<128x32xbf16>, vector<128x32xf32> -> vector<128x32xf32>
    %34 = arith.truncf %33 : vector<128x32xf32> to vector<128x32xbf16>
    %c0_16 = arith.constant 0 : index
    %c0_17 = arith.constant 0 : index
    %35 = vector.load %arg23[%c0_16, %c0_17] : memref<128x128xbf16, #tpu.memory_space<vmem>>, vector<128x32xbf16>
    tpu.vector_store %arg23[%c0_16, %c0_17], %34 {strides = array<i32>} : memref<128x128xbf16, #tpu.memory_space<vmem>>, vector<128x32xbf16>,
    %c0_18 = arith.constant 0 : index
    %c32 = arith.constant 32 : index
    %36 = vector.load %arg21[%c0_18, %c32] : memref<128x128xbf16, #tpu.memory_space<vmem>>, vector<128x32xbf16>
    %c0_19 = arith.constant 0 : index
    %c32_20 = arith.constant 32 : index
    %37 = vector.load %arg22[%c0_19, %c32_20] : memref<128x128xbf16, #tpu.memory_space<vmem>>, vector<128x32xbf16>
    %38 = vector.extract_strided_slice %17 {offsets = [0, 32], sizes = [128, 32], strides = [1, 1]} : vector<128x128xbf16> to vector<128x32xbf16>
    %cst_21 = arith.constant dense<0.000000e+00> : vector<128x128xf32>
    %39 = tpu.matmul %38, %36, %cst_21 {dimension_numbers = #tpu.dot_dimension_numbers<[1], [1], [0], [0], [0, 0, 1, 0], [], []>} : vector<128x32xbf16>, vector<128x32xbf16>, vector<128x128xf32> -> vector<128x128xf32>
    %cst_22 = arith.constant dense<0xFF800000> : vector<128xf32>
    %40 = vector.multi_reduction <maximumf>, %39, %cst_22 [1] : vector<128x128xf32> to vector<128xf32>
    %41 = vector.shape_cast %40 : vector<128xf32> to vector<128x1xf32>
    %42 = vector.broadcast %41 : vector<128x1xf32> to vector<128x128xf32>
    %43 = arith.subf %39, %42 : vector<128x128xf32>
    %44 = math.exp %43 : vector<128x128xf32>
    %cst_23 = arith.constant dense<0.000000e+00> : vector<128xf32>
    %45 = vector.multi_reduction <add>, %44, %cst_23 [1] : vector<128x128xf32> to vector<128xf32>
    %46 = vector.shape_cast %45 : vector<128xf32> to vector<128x1xf32>
    %47 = tpu.reciprocal %46 {approx = true} : vector<128x1xf32> -> vector<128x1xf32>
    %48 = vector.broadcast %47 : vector<128x1xf32> to vector<128x128xf32>
    %49 = arith.mulf %44, %48 : vector<128x128xf32>
    %50 = arith.truncf %49 : vector<128x128xf32> to vector<128x128xbf16>
    %cst_24 = arith.constant dense<0.000000e+00> : vector<128x32xf32>
    %51 = tpu.matmul %50, %37, %cst_24 {dimension_numbers = #tpu.dot_dimension_numbers<[1], [0], [0], [1], [0, 0, 1, 1], [], []>} : vector<128x128xbf16>, vector<128x32xbf16>, vector<128x32xf32> -> vector<128x32xf32>
    %52 = arith.truncf %51 : vector<128x32xf32> to vector<128x32xbf16>
    %c0_25 = arith.constant 0 : index
    %c32_26 = arith.constant 32 : index
    %53 = vector.load %arg23[%c0_25, %c32_26] : memref<128x128xbf16, #tpu.memory_space<vmem>>, vector<128x32xbf16>
    tpu.vector_store %arg23[%c0_25, %c32_26], %52 {strides = array<i32>} : memref<128x128xbf16, #tpu.memory_space<vmem>>, vector<128x32xbf16>,
    %c0_27 = arith.constant 0 : index
    %c64 = arith.constant 64 : index
    %54 = vector.load %arg21[%c0_27, %c64] : memref<128x128xbf16, #tpu.memory_space<vmem>>, vector<128x32xbf16>
    %c0_28 = arith.constant 0 : index
    %c64_29 = arith.constant 64 : index
    %55 = vector.load %arg22[%c0_28, %c64_29] : memref<128x128xbf16, #tpu.memory_space<vmem>>, vector<128x32xbf16>
    %56 = vector.extract_strided_slice %17 {offsets = [0, 64], sizes = [128, 32], strides = [1, 1]} : vector<128x128xbf16> to vector<128x32xbf16>
    %cst_30 = arith.constant dense<0.000000e+00> : vector<128x128xf32>
    %57 = tpu.matmul %56, %54, %cst_30 {dimension_numbers = #tpu.dot_dimension_numbers<[1], [1], [0], [0], [0, 0, 1, 0], [], []>} : vector<128x32xbf16>, vector<128x32xbf16>, vector<128x128xf32> -> vector<128x128xf32>
    %cst_31 = arith.constant dense<0xFF800000> : vector<128xf32>
    %58 = vector.multi_reduction <maximumf>, %57, %cst_31 [1] : vector<128x128xf32> to vector<128xf32>
    %59 = vector.shape_cast %58 : vector<128xf32> to vector<128x1xf32>
    %60 = vector.broadcast %59 : vector<128x1xf32> to vector<128x128xf32>
    %61 = arith.subf %57, %60 : vector<128x128xf32>
    %62 = math.exp %61 : vector<128x128xf32>
    %cst_32 = arith.constant dense<0.000000e+00> : vector<128xf32>
    %63 = vector.multi_reduction <add>, %62, %cst_32 [1] : vector<128x128xf32> to vector<128xf32>
    %64 = vector.shape_cast %63 : vector<128xf32> to vector<128x1xf32>
    %65 = tpu.reciprocal %64 {approx = true} : vector<128x1xf32> -> vector<128x1xf32>
    %66 = vector.broadcast %65 : vector<128x1xf32> to vector<128x128xf32>
    %67 = arith.mulf %62, %66 : vector<128x128xf32>
    %68 = arith.truncf %67 : vector<128x128xf32> to vector<128x128xbf16>
    %cst_33 = arith.constant dense<0.000000e+00> : vector<128x32xf32>
    %69 = tpu.matmul %68, %55, %cst_33 {dimension_numbers = #tpu.dot_dimension_numbers<[1], [0], [0], [1], [0, 0, 1, 1], [], []>} : vector<128x128xbf16>, vector<128x32xbf16>, vector<128x32xf32> -> vector<128x32xf32>
    %70 = arith.truncf %69 : vector<128x32xf32> to vector<128x32xbf16>
    %c0_34 = arith.constant 0 : index
    %c64_35 = arith.constant 64 : index
    %71 = vector.load %arg23[%c0_34, %c64_35] : memref<128x128xbf16, #tpu.memory_space<vmem>>, vector<128x32xbf16>
    tpu.vector_store %arg23[%c0_34, %c64_35], %70 {strides = array<i32>} : memref<128x128xbf16, #tpu.memory_space<vmem>>, vector<128x32xbf16>,
    %c0_36 = arith.constant 0 : index
    %c96 = arith.constant 96 : index
    %72 = vector.load %arg21[%c0_36, %c96] : memref<128x128xbf16, #tpu.memory_space<vmem>>, vector<128x32xbf16>
    %c0_37 = arith.constant 0 : index
    %c96_38 = arith.constant 96 : index
    %73 = vector.load %arg22[%c0_37, %c96_38] : memref<128x128xbf16, #tpu.memory_space<vmem>>, vector<128x32xbf16>
    %74 = vector.extract_strided_slice %17 {offsets = [0, 96], sizes = [128, 32], strides = [1, 1]} : vector<128x128xbf16> to vector<128x32xbf16>
    %cst_39 = arith.constant dense<0.000000e+00> : vector<128x128xf32>
    %75 = tpu.matmul %74, %72, %cst_39 {dimension_numbers = #tpu.dot_dimension_numbers<[1], [1], [0], [0], [0, 0, 1, 0], [], []>} : vector<128x32xbf16>, vector<128x32xbf16>, vector<128x128xf32> -> vector<128x128xf32>
    %cst_40 = arith.constant dense<0xFF800000> : vector<128xf32>
    %76 = vector.multi_reduction <maximumf>, %75, %cst_40 [1] : vector<128x128xf32> to vector<128xf32>
    %77 = vector.shape_cast %76 : vector<128xf32> to vector<128x1xf32>
    %78 = vector.broadcast %77 : vector<128x1xf32> to vector<128x128xf32>
    %79 = arith.subf %75, %78 : vector<128x128xf32>
    %80 = math.exp %79 : vector<128x128xf32>
    %cst_41 = arith.constant dense<0.000000e+00> : vector<128xf32>
    %81 = vector.multi_reduction <add>, %80, %cst_41 [1] : vector<128x128xf32> to vector<128xf32>
    %82 = vector.shape_cast %81 : vector<128xf32> to vector<128x1xf32>
    %83 = tpu.reciprocal %82 {approx = true} : vector<128x1xf32> -> vector<128x1xf32>
    %84 = vector.broadcast %83 : vector<128x1xf32> to vector<128x128xf32>
    %85 = arith.mulf %80, %84 : vector<128x128xf32>
    %86 = arith.truncf %85 : vector<128x128xf32> to vector<128x128xbf16>
    %cst_42 = arith.constant dense<0.000000e+00> : vector<128x32xf32>
    %87 = tpu.matmul %86, %73, %cst_42 {dimension_numbers = #tpu.dot_dimension_numbers<[1], [0], [0], [1], [0, 0, 1, 1], [], []>} : vector<128x128xbf16>, vector<128x32xbf16>, vector<128x32xf32> -> vector<128x32xf32>
    %88 = arith.truncf %87 : vector<128x32xf32> to vector<128x32xbf16>
    %c0_43 = arith.constant 0 : index
    %c96_44 = arith.constant 96 : index
    %89 = vector.load %arg23[%c0_43, %c96_44] : memref<128x128xbf16, #tpu.memory_space<vmem>>, vector<128x32xbf16>
    tpu.vector_store %arg23[%c0_43, %c96_44], %88 {strides = array<i32>} : memref<128x128xbf16, #tpu.memory_space<vmem>>, vector<128x32xbf16>,
    %c0_45 = arith.constant 0 : index
    %c0_46 = arith.constant 0 : index
    %90 = vector.load %arg23[%c0_45, %c0_46] : memref<128x128xbf16, #tpu.memory_space<vmem>>, vector<128x128xbf16>
    %c0_47 = arith.constant 0 : index
    %c0_48 = arith.constant 0 : index
    %91 = vector.load %arg11[%c0_47, %c0_48] : memref<128x128xbf16, #tpu.memory_space<vmem>>, vector<128x128xbf16>
    %cst_49 = arith.constant dense<0.000000e+00> : vector<128x128xf32>
    %92 = tpu.matmul %90, %91, %cst_49 {dimension_numbers = #tpu.dot_dimension_numbers<[1], [0], [0], [1], [0, 0, 1, 1], [], []>} : vector<128x128xbf16>, vector<128x128xbf16>, vector<128x128xf32> -> vector<128x128xf32>
    %c0_50 = arith.constant 0 : index
    %c0_51 = arith.constant 0 : index
    %93 = vector.load %arg12[%c0_50, %c0_51] : memref<1x128xf32, #tpu.memory_space<vmem>>, vector<1x128xf32>
    %94 = vector.broadcast %93 : vector<1x128xf32> to vector<128x128xf32>
    %95 = arith.addf %92, %94 : vector<128x128xf32>
    %96 = arith.addf %7, %95 : vector<128x128xf32>
    %c0_52 = arith.constant 0 : index
    %c0_53 = arith.constant 0 : index
    %97 = vector.load %arg13[%c0_52, %c0_53] : memref<1x128xf32, #tpu.memory_space<vmem>>, vector<1x128xf32>
    %c0_54 = arith.constant 0 : index
    %c0_55 = arith.constant 0 : index
    %98 = vector.load %arg14[%c0_54, %c0_55] : memref<1x128xf32, #tpu.memory_space<vmem>>, vector<1x128xf32>
    %cst_56 = arith.constant dense<0.000000e+00> : vector<128xf32>
    %99 = vector.multi_reduction <add>, %96, %cst_56 [1] : vector<128x128xf32> to vector<128xf32>
    %100 = vector.shape_cast %99 : vector<128xf32> to vector<128x1xf32>
    %cst_57 = arith.constant 1.280000e+02 : f32
    %101 = vector.broadcast %cst_57 : f32 to vector<128x1xf32>
    %102 = arith.divf %100, %101 : vector<128x1xf32>
    %103 = vector.broadcast %102 : vector<128x1xf32> to vector<128x128xf32>
    %104 = arith.subf %96, %103 : vector<128x128xf32>
    %105 = arith.mulf %104, %104 : vector<128x128xf32>
    %cst_58 = arith.constant dense<0.000000e+00> : vector<128xf32>
    %106 = vector.multi_reduction <add>, %105, %cst_58 [1] : vector<128x128xf32> to vector<128xf32>
    %107 = vector.shape_cast %106 : vector<128xf32> to vector<128x1xf32>
    %cst_59 = arith.constant 0.00787401571 : f32
    %108 = vector.broadcast %cst_59 : f32 to vector<128x1xf32>
    %109 = arith.mulf %107, %108 : vector<128x1xf32>
    %110 = math.sqrt %109 : vector<128x1xf32>
    %cst_60 = arith.constant 9.99999974E-6 : f32
    %111 = vector.broadcast %cst_60 : f32 to vector<128x1xf32>
    %112 = arith.addf %110, %111 : vector<128x1xf32>
    %113 = tpu.reciprocal %112 : vector<128x1xf32> -> vector<128x1xf32>
    %114 = vector.broadcast %102 : vector<128x1xf32> to vector<128x128xf32>
    %115 = arith.subf %96, %114 : vector<128x128xf32>
    %116 = vector.broadcast %113 : vector<128x1xf32> to vector<128x128xf32>
    %117 = arith.mulf %115, %116 : vector<128x128xf32>
    %118 = vector.broadcast %97 : vector<1x128xf32> to vector<128x128xf32>
    %119 = arith.mulf %118, %117 : vector<128x128xf32>
    %120 = vector.broadcast %98 : vector<1x128xf32> to vector<128x128xf32>
    %121 = arith.addf %119, %120 : vector<128x128xf32>
    %122 = arith.truncf %121 : vector<128x128xf32> to vector<128x128xbf16>
    %c0_61 = arith.constant 0 : index
    %c0_62 = arith.constant 0 : index
    %123 = vector.load %arg15[%c0_61, %c0_62] : memref<128x256xbf16, #tpu.memory_space<vmem>>, vector<128x256xbf16>
    %cst_63 = arith.constant dense<0.000000e+00> : vector<128x256xf32>
    %124 = tpu.matmul %122, %123, %cst_63 {dimension_numbers = #tpu.dot_dimension_numbers<[1], [0], [0], [1], [0, 0, 1, 1], [], []>} : vector<128x128xbf16>, vector<128x256xbf16>, vector<128x256xf32> -> vector<128x256xf32>
    %c0_64 = arith.constant 0 : index
    %c0_65 = arith.constant 0 : index
    %125 = vector.load %arg16[%c0_64, %c0_65] : memref<1x256xf32, #tpu.memory_space<vmem>>, vector<1x256xf32>
    %126 = vector.broadcast %125 : vector<1x256xf32> to vector<128x256xf32>
    %127 = arith.addf %124, %126 : vector<128x256xf32>
    %128 = arith.negf %127 : vector<128x256xf32>
    %129 = math.exp %128 : vector<128x256xf32>
    %cst_66 = arith.constant 1.000000e+00 : f32
    %130 = vector.broadcast %cst_66 : f32 to vector<128x256xf32>
    %131 = arith.addf %130, %129 : vector<128x256xf32>
    %132 = arith.divf %130, %131 : vector<128x256xf32>
    %133 = arith.mulf %127, %132 : vector<128x256xf32>
    %134 = arith.truncf %133 : vector<128x256xf32> to vector<128x256xbf16>
    %c0_67 = arith.constant 0 : index
    %c0_68 = arith.constant 0 : index
    %135 = vector.load %arg17[%c0_67, %c0_68] : memref<256x128xbf16, #tpu.memory_space<vmem>>, vector<256x128xbf16>
    %cst_69 = arith.constant dense<0.000000e+00> : vector<128x128xf32>
    %136 = tpu.matmul %134, %135, %cst_69 {dimension_numbers = #tpu.dot_dimension_numbers<[1], [0], [0], [1], [0, 0, 1, 1], [], []>} : vector<128x256xbf16>, vector<256x128xbf16>, vector<128x128xf32> -> vector<128x128xf32>
    %c0_70 = arith.constant 0 : index
    %c0_71 = arith.constant 0 : index
    %137 = vector.load %arg18[%c0_70, %c0_71] : memref<1x128xf32, #tpu.memory_space<vmem>>, vector<1x128xf32>
    %138 = vector.broadcast %137 : vector<1x128xf32> to vector<128x128xf32>
    %139 = arith.addf %136, %138 : vector<128x128xf32>
    %140 = arith.addf %96, %139 : vector<128x128xf32>
    %c0_72 = arith.constant 0 : index
    %c0_73 = arith.constant 0 : index
    %c0_74 = arith.constant 0 : index
    %141 = vector.load %arg19[%c0_72, %c0_73, %c0_74] : memref<1x128x128xf32, #tpu.memory_space<vmem>>, vector<1x128x128xf32>
    %142 = vector.shape_cast %141 : vector<1x128x128xf32> to vector<128x128xf32>
    %143 = vector.shape_cast %140 : vector<128x128xf32> to vector<1x128x128xf32>
    tpu.vector_store %arg19[%c0_72, %c0_73, %c0_74], %143 {strides = array<i32>} : memref<1x128x128xf32, #tpu.memory_space<vmem>>, vector<1x128x128xf32>,
    return
  }
  func.func @transform_0(%arg0: i32, %arg1: i32) -> (i32, i32, i32) {
    %c0_i32 = arith.constant 0 : i32
    %c0_i32_0 = arith.constant 0 : i32
    %c0_i32_1 = arith.constant 0 : i32
    return %arg0, %c0_i32, %c0_i32_0 : i32, i32, i32
  }
  func.func @transform_1(%arg0: i32, %arg1: i32) -> (i32, i32) {
    %c0_i32 = arith.constant 0 : i32
    %c0_i32_0 = arith.constant 0 : i32
    %c0_i32_1 = arith.constant 0 : i32
    return %c0_i32, %c0_i32_0 : i32, i32
  }
  func.func @transform_2(%arg0: i32, %arg1: i32) -> (i32, i32) {
    %c0_i32 = arith.constant 0 : i32
    %c0_i32_0 = arith.constant 0 : i32
    %c0_i32_1 = arith.constant 0 : i32
    return %c0_i32, %c0_i32_0 : i32, i32
  }
  func.func @transform_3(%arg0: i32, %arg1: i32) -> (i32, i32) {
    %c0_i32 = arith.constant 0 : i32
    %c0_i32_0 = arith.constant 0 : i32
    %c0_i32_1 = arith.constant 0 : i32
    return %c0_i32, %c0_i32_0 : i32, i32
  }
  func.func @transform_4(%arg0: i32, %arg1: i32) -> (i32, i32) {
    %c0_i32 = arith.constant 0 : i32
    %c0_i32_0 = arith.constant 0 : i32
    %c0_i32_1 = arith.constant 0 : i32
    return %c0_i32, %c0_i32_0 : i32, i32
  }
  func.func @transform_5(%arg0: i32, %arg1: i32) -> (i32, i32) {
    %c0_i32 = arith.constant 0 : i32
    %c0_i32_0 = arith.constant 0 : i32
    %c0_i32_1 = arith.constant 0 : i32
    return %c0_i32, %c0_i32_0 : i32, i32
  }
  func.func @transform_6(%arg0: i32, %arg1: i32) -> (i32, i32) {
    %c0_i32 = arith.constant 0 : i32
    %c0_i32_0 = arith.constant 0 : i32
    %c0_i32_1 = arith.constant 0 : i32
    return %c0_i32, %c0_i32_0 : i32, i32
  }
  func.func @transform_7(%arg0: i32, %arg1: i32) -> (i32, i32) {
    %c0_i32 = arith.constant 0 : i32
    %c0_i32_0 = arith.constant 0 : i32
    %c0_i32_1 = arith.constant 0 : i32
    return %c0_i32, %c0_i32_0 : i32, i32
  }
  func.func @transform_8(%arg0: i32, %arg1: i32) -> (i32, i32) {
    %c0_i32 = arith.constant 0 : i32
    %c0_i32_0 = arith.constant 0 : i32
    %c0_i32_1 = arith.constant 0 : i32
    return %c0_i32, %c0_i32_0 : i32, i32
  }
  func.func @transform_9(%arg0: i32, %arg1: i32) -> (i32, i32) {
    %c0_i32 = arith.constant 0 : i32
    %c0_i32_0 = arith.constant 0 : i32
    %c0_i32_1 = arith.constant 0 : i32
    return %c0_i32, %c0_i32_0 : i32, i32
  }
  func.func @transform_10(%arg0: i32, %arg1: i32) -> (i32, i32) {
    %c0_i32 = arith.constant 0 : i32
    %c0_i32_0 = arith.constant 0 : i32
    %c0_i32_1 = arith.constant 0 : i32
    return %c0_i32, %c0_i32_0 : i32, i32
  }
  func.func @transform_11(%arg0: i32, %arg1: i32) -> (i32, i32) {
    %c0_i32 = arith.constant 0 : i32
    %c0_i32_0 = arith.constant 0 : i32
    %c0_i32_1 = arith.constant 0 : i32
    return %c0_i32, %c0_i32_0 : i32, i32
  }
  func.func @transform_12(%arg0: i32, %arg1: i32) -> (i32, i32) {
    %c0_i32 = arith.constant 0 : i32
    %c0_i32_0 = arith.constant 0 : i32
    %c0_i32_1 = arith.constant 0 : i32
    return %c0_i32, %c0_i32_0 : i32, i32
  }
  func.func @transform_13(%arg0: i32, %arg1: i32) -> (i32, i32) {
    %c0_i32 = arith.constant 0 : i32
    %c0_i32_0 = arith.constant 0 : i32
    %c0_i32_1 = arith.constant 0 : i32
    return %c0_i32, %c0_i32_0 : i32, i32
  }
  func.func @transform_14(%arg0: i32, %arg1: i32) -> (i32, i32) {
    %c0_i32 = arith.constant 0 : i32
    %c0_i32_0 = arith.constant 0 : i32
    %c0_i32_1 = arith.constant 0 : i32
    return %c0_i32, %c0_i32_0 : i32, i32
  }
  func.func @transform_15(%arg0: i32, %arg1: i32) -> (i32, i32) {
    %c0_i32 = arith.constant 0 : i32
    %c0_i32_0 = arith.constant 0 : i32
    %c0_i32_1 = arith.constant 0 : i32
    return %c0_i32, %c0_i32_0 : i32, i32
  }
  func.func @transform_16(%arg0: i32, %arg1: i32) -> (i32, i32) {
    %c0_i32 = arith.constant 0 : i32
    %c0_i32_0 = arith.constant 0 : i32
    %c0_i32_1 = arith.constant 0 : i32
    return %c0_i32, %c0_i32_0 : i32, i32
  }
  func.func @transform_17(%arg0: i32, %arg1: i32) -> (i32, i32, i32) {
    %c0_i32 = arith.constant 0 : i32
    %c0_i32_0 = arith.constant 0 : i32
    return %arg0, %arg1, %c0_i32 : i32, i32, i32
  }
}

</mosaic_0001>

<llo_original>
// kernel: tpu_custom_call.1
$region0: #{tpu_custom_call.1}
  #allocation0 [shape = 'u32[]', space=smem, size = 0x4, offset = 0x4, fixed_abs, tag = 'smem constant byte address 0x4 - core index']
  #allocation1 [shape = 'u32[144,128]{1,0:T(1,128)}', space=vmem, size = 0x12000, scoped, tag = 'internal scratch']
  #allocation2 [shape = 'bf16[128,128]{1,0:T(8,128)(2,1)}', space=vmem, size = 0x8000, scoped, tag = 'scratch operand']
  #allocation3 [shape = 'bf16[128,128]{1,0:T(8,128)(2,1)}', space=vmem, size = 0x8000, scoped, tag = 'scratch operand']
  #allocation4 [shape = 'bf16[128,128]{1,0:T(8,128)(2,1)}', space=vmem, size = 0x8000, scoped, tag = 'scratch operand']
  #allocation5 [shape = 'bf16[128,128]{1,0:T(8,128)(2,1)}', space=vmem, size = 0x8000, scoped, tag = 'scratch operand']
  %s0 = inlined_call_operand.hbm [shape: f32[2,128,128], index: 0, kind: input, shape index: {}]
  %s1 = inlined_call_operand.vmem [shape: f32[1,128], index: 1, kind: input, shape index: {}]
  %s2 = inlined_call_operand.hbm [shape: f32[1,128], index: 2, kind: input, shape index: {}]
  %s3 = inlined_call_operand.hbm [shape: bf16[128,128], index: 3, kind: input, shape index: {}]
  %s4 = inlined_call_operand.vmem [shape: f32[1,128], index: 4, kind: input, shape index: {}]
  %s5 = inlined_call_operand.hbm [shape: bf16[128,128], index: 5, kind: input, shape index: {}]
  %s6 = inlined_call_operand.vmem [shape: f32[1,128], index: 6, kind: input, shape index: {}]
  %s7 = inlined_call_operand.hbm [shape: bf16[128,128], index: 7, kind: input, shape index: {}]
  %s8 = inlined_call_operand.vmem [shape: f32[1,128], index: 8, kind: input, shape index: {}]
  %s9 = inlined_call_operand.hbm [shape: bf16[128,128], index: 9, kind: input, shape index: {}]
  %s10 = inlined_call_operand.vmem [shape: f32[1,128], index: 10, kind: input, shape index: {}]
  %s11 = inlined_call_operand.vmem [shape: f32[1,128], index: 11, kind: input, shape index: {}]
  %s12 = inlined_call_operand.vmem [shape: f32[1,128], index: 12, kind: input, shape index: {}]
  %s13 = inlined_call_operand.hbm [shape: bf16[128,256], index: 13, kind: input, shape index: {}]
  %s14 = inlined_call_operand.vmem [shape: f32[1,256], index: 14, kind: input, shape index: {}]
  %s15 = inlined_call_operand.hbm [shape: bf16[256,128], index: 15, kind: input, shape index: {}]
  %s16 = inlined_call_operand.vmem [shape: f32[1,128], index: 16, kind: input, shape index: {}]
  %s17 = inlined_call_operand.hbm [shape: f32[2,128,128], index: 17, kind: output, shape index: {}]
  %s18 = sld [smem:[#allocation0]]
  $region137: #{tpu_custom_call.1} parent=0
    _
  %s20 = ssub.s32 1, %s18
  %s21 = scalar_select 0, %s20, %s18
  $region1: #{tpu_custom_call.1} parent=0
    #allocation6 [shape = 'u8[131072]{0}', space=vmem, size = 0x20000, scoped, tag = 'input window, operand 0']
    #allocation7 [shape = 's32[2]{0}', space=sflag, size = 0x8, scoped, tag = 'scoped memory for tpu_custom_call.1']
    #allocation8 [shape = 's32[2]{0}', space=sflag, size = 0x8, scoped, tag = 'scoped memory for tpu_custom_call.1']
    #allocation9 [shape = 'u8[512]{0}', space=vmem, size = 0x400, scoped, tag = 'input window, operand 2, single buffered']
    #allocation10 [shape = 's32[1]{0}', space=sflag, size = 0x4, scoped, tag = 'scoped memory for tpu_custom_call.1']
    #allocation11 [shape = 'u8[32768]{0}', space=vmem, size = 0x8000, scoped, tag = 'input window, operand 3, single buffered']
    #allocation12 [shape = 'u8[32768]{0}', space=vmem, size = 0x8000, scoped, tag = 'input window, operand 5, single buffered']
    #allocation13 [shape = 's32[1]{0}', space=sflag, size = 0x4, scoped, tag = 'scoped memory for tpu_custom_call.1']
    #allocation14 [shape = 'u8[32768]{0}', space=vmem, size = 0x8000, scoped, tag = 'input window, operand 7, single buffered']
    #allocation15 [shape = 'u8[32768]{0}', space=vmem, size = 0x8000, scoped, tag = 'input window, operand 9, single buffered']
    #allocation16 [shape = 's32[1]{0}', space=sflag, size = 0x4, scoped, tag = 'scoped memory for tpu_custom_call.1']
    #allocation17 [shape = 'u8[65536]{0}', space=vmem, size = 0x10000, scoped, tag = 'input window, operand 13, single buffered']
    #allocation18 [shape = 'u8[65536]{0}', space=vmem, size = 0x10000, scoped, tag = 'input window, operand 15, single buffered']
    #allocation19 [shape = 's32[1]{0}', space=sflag, size = 0x4, scoped, tag = 'scoped memory for tpu_custom_call.1']
    #allocation20 [shape = 'u8[131072]{0}', space=vmem, size = 0x20000, scoped, tag = 'output window, operand 0']
    %22 = vsyncpa [#allocation7], 0
    %s23 = scalar_lea.sflag [#allocation7], 1
    %24 = vsyncpa %s23, 0
    %25 = vsyncpa [#allocation10], 0
    %26 = vsyncpa [#allocation13], 0
    %27 = vsyncpa [#allocation16], 0
    %28 = vsyncpa [#allocation19], 0
    %29 = vsyncpa [#allocation8], 0
    %s30 = scalar_lea.sflag [#allocation8], 1
    %31 = vsyncpa %s30, 0
    loop: start=0, step=1, limit=4
    $region2: #{tpu_custom_call.1} parent=1 // loop_pre_header
      _
    $region3: #{tpu_custom_call.1} parent=1 // loop_header
      %s33 = sphi 0, %s37
      %p34 = scmp.ge.s32.totalorder %s33, 4
      %s40 = sphi 0, %s52
      %s41 = sphi 0, %s48
      %s42 = sphi 0, %s40
      %s43 = sphi 0, %s41
      %s44 = sphi 0, %s42
      %s45 = sphi 0, %s43
      %s55 = sphi 0, %s57
      %s58 = sphi 0, %s55
      %s59 = sphi 0, %s58
      %s75 = sphi 0, %s59
      %s79 = sphi 0, %s79
      %s81 = sphi 0, %s79
      %s82 = sphi 0, %s81
      %s96 = sphi 0, %s82
      %s100 = sphi 0, %s100
      %s102 = sphi 0, %s100
      %s103 = sphi 0, %s102
      %s117 = sphi 0, %s103
      %s121 = sphi 0, %s121
      %s123 = sphi 0, %s121
      %s124 = sphi 0, %s123
      %s138 = sphi 0, %s124
      %s142 = sphi 0, %s142
      %s144 = sphi 0, %s142
      %s145 = sphi 0, %s144
      %s159 = sphi 0, %s145
      %s163 = sphi 0, %s163
      %s165 = sphi 0, %s163
      %s166 = sphi 0, %s165
      %s180 = sphi 0, %s166
      %s184 = sphi 0, %s184
      %s186 = sphi 0, %s184
      %s187 = sphi 0, %s186
      %s201 = sphi 0, %s187
      %s205 = sphi 0, %s205
      %s207 = sphi 0, %s205
      %s208 = sphi 0, %s207
      %s222 = sphi 0, %s208
      %s226 = sphi 0, %s226
      %s228 = sphi 0, %s226
      %s229 = sphi 0, %s228
      %s243 = sphi 0, %s229
      %s247 = sphi 0, %s247
      %s249 = sphi 0, %s247
      %s250 = sphi 0, %s249
      %s264 = sphi 0, %s250
      %s268 = sphi 0, %s268
      %s270 = sphi 0, %s268
      %s271 = sphi 0, %s270
      %s285 = sphi 0, %s271
      %s289 = sphi 0, %s289
      %s291 = sphi 0, %s289
      %s292 = sphi 0, %s291
      %s306 = sphi 0, %s292
      %s310 = sphi 0, %s310
      %s312 = sphi 0, %s310
      %s313 = sphi 0, %s312
      %s327 = sphi 0, %s313
      %s331 = sphi 0, %s331
      %s333 = sphi 0, %s331
      %s334 = sphi 0, %s333
      %s348 = sphi 0, %s334
      %s352 = sphi 0, %s352
      %s354 = sphi 0, %s352
      %s355 = sphi 0, %s354
      %s369 = sphi 0, %s355
      %s373 = sphi 0, %s373
      %s375 = sphi 0, %s373
      %s376 = sphi 0, %s375
      %s390 = sphi 0, %s376
      %s394 = sphi 0, %s394
      %s396 = sphi 0, %s394
      %s397 = sphi 0, %s396
      %s411 = sphi 0, %s397
      %s419 = sphi 0, %s421
      %s422 = sphi 0, %s419
      %s423 = sphi 0, %s422
      %s439 = sphi 0, %s423
    $region4: #{tpu_custom_call.1} parent=1 // loop_header_branch
      %36 = sbr.rel (%p34) target = $region8
    $region5: #{tpu_custom_call.1} parent=1 // loop_body
      %s38 = ssub.s32 %s33, 1
      %s39 = ssub.s32 %s33, 2
      %s46 = sadd.s32 1, %s41
      %p47 = scmp.ge.s32.totalorder %s46, 1
      %s48 = scalar_select %p47, 0, %s46
      %s49 = sadd.s32 1, %s40
      %s50 = scalar_select %p47, %s49, %s40
      %p51 = scmp.ge.s32.totalorder %s50, 2
      %s52 = scalar_select %p51, 0, %s50
      %s53 = ssub.s32 %s40, %s52
      %p54 = scmp.eq.s32.totalorder %s53, 0
      %s56 = sadd.s32 %s55, 1
      %s57 = scalar_select %p54, %s55, %s56
      %p60 = pneg %p54
      %p61 = scmp.eq.s32.totalorder %s33, 1
      %p62 = por %p60, %p61
      %p63 = scmp.ne.s32.totalorder %s55, %s58
      %p64 = scmp.eq.s32.totalorder %s33, 0
      %p65 = por %p63, %p64
      %p66 = scmp.ne.s32.totalorder %s55, %s58
      %p67 = scmp.eq.s32.totalorder %s38, 1
      %p68 = por %p66, %p67
      %p69 = scmp.ne.s32.totalorder %s58, %s59
      %p70 = scmp.eq.s32.totalorder %s38, 0
      %p71 = por %p69, %p70
      %p72 = scmp.ne.s32.totalorder %s58, %s59
      %p73 = scmp.eq.s32.totalorder %s39, 1
      %p74 = por %p72, %p73
      %p76 = scmp.ne.s32.totalorder %s59, %s75
      %p77 = scmp.eq.s32.totalorder %s39, 0
      %p78 = por %p76, %p77
      %s80 = sadd.s32 %s79, 1
      %p83 = scmp.eq.s32.totalorder %s33, 1
      %p84 = scmp.ne.s32.totalorder %s79, %s81
      %p85 = scmp.eq.s32.totalorder %s33, 0
      %p86 = por %p84, %p85
      %p87 = scmp.ne.s32.totalorder %s79, %s81
      %p88 = scmp.eq.s32.totalorder %s38, 1
      %p89 = por %p87, %p88
      %p90 = scmp.ne.s32.totalorder %s81, %s82
      %p91 = scmp.eq.s32.totalorder %s38, 0
      %p92 = por %p90, %p91
      %p93 = scmp.ne.s32.totalorder %s81, %s82
      %p94 = scmp.eq.s32.totalorder %s39, 1
      %p95 = por %p93, %p94
      %p97 = scmp.ne.s32.totalorder %s82, %s96
      %p98 = scmp.eq.s32.totalorder %s39, 0
      %p99 = por %p97, %p98
      %s101 = sadd.s32 %s100, 1
      %p104 = scmp.eq.s32.totalorder %s33, 1
      %p105 = scmp.ne.s32.totalorder %s100, %s102
      %p106 = scmp.eq.s32.totalorder %s33, 0
      %p107 = por %p105, %p106
      %p108 = scmp.ne.s32.totalorder %s100, %s102
      %p109 = scmp.eq.s32.totalorder %s38, 1
      %p110 = por %p108, %p109
      %p111 = scmp.ne.s32.totalorder %s102, %s103
      %p112 = scmp.eq.s32.totalorder %s38, 0
      %p113 = por %p111, %p112
      %p114 = scmp.ne.s32.totalorder %s102, %s103
      %p115 = scmp.eq.s32.totalorder %s39, 1
      %p116 = por %p114, %p115
      %p118 = scmp.ne.s32.totalorder %s103, %s117
      %p119 = scmp.eq.s32.totalorder %s39, 0
      %p120 = por %p118, %p119
      %s122 = sadd.s32 %s121, 1
      %p125 = scmp.eq.s32.totalorder %s33, 1
      %p126 = scmp.ne.s32.totalorder %s121, %s123
      %p127 = scmp.eq.s32.totalorder %s33, 0
      %p128 = por %p126, %p127
      %p129 = scmp.ne.s32.totalorder %s121, %s123
      %p130 = scmp.eq.s32.totalorder %s38, 1
      %p131 = por %p129, %p130
      %p132 = scmp.ne.s32.totalorder %s123, %s124
      %p133 = scmp.eq.s32.totalorder %s38, 0
      %p134 = por %p132, %p133
      %p135 = scmp.ne.s32.totalorder %s123, %s124
      %p136 = scmp.eq.s32.totalorder %s39, 1
      %p137 = por %p135, %p136
      %p139 = scmp.ne.s32.totalorder %s124, %s138
      %p140 = scmp.eq.s32.totalorder %s39, 0
      %p141 = por %p139, %p140
      %s143 = sadd.s32 %s142, 1
      %p146 = scmp.eq.s32.totalorder %s33, 1
      %p147 = scmp.ne.s32.totalorder %s142, %s144
      %p148 = scmp.eq.s32.totalorder %s33, 0
      %p149 = por %p147, %p148
      %p150 = scmp.ne.s32.totalorder %s142, %s144
      %p151 = scmp.eq.s32.totalorder %s38, 1
      %p152 = por %p150, %p151
      %p153 = scmp.ne.s32.totalorder %s144, %s145
      %p154 = scmp.eq.s32.totalorder %s38, 0
      %p155 = por %p153, %p154
      %p156 = scmp.ne.s32.totalorder %s144, %s145
      %p157 = scmp.eq.s32.totalorder %s39, 1
      %p158 = por %p156, %p157
      %p160 = scmp.ne.s32.totalorder %s145, %s159
      %p161 = scmp.eq.s32.totalorder %s39, 0
      %p162 = por %p160, %p161
      %s164 = sadd.s32 %s163, 1
      %p167 = scmp.eq.s32.totalorder %s33, 1
      %p168 = scmp.ne.s32.totalorder %s163, %s165
      %p169 = scmp.eq.s32.totalorder %s33, 0
      %p170 = por %p168, %p169
      %p171 = scmp.ne.s32.totalorder %s163, %s165
      %p172 = scmp.eq.s32.totalorder %s38, 1
      %p173 = por %p171, %p172
      %p174 = scmp.ne.s32.totalorder %s165, %s166
      %p175 = scmp.eq.s32.totalorder %s38, 0
      %p176 = por %p174, %p175
      %p177 = scmp.ne.s32.totalorder %s165, %s166
      %p178 = scmp.eq.s32.totalorder %s39, 1
      %p179 = por %p177, %p178
      %p181 = scmp.ne.s32.totalorder %s166, %s180
      %p182 = scmp.eq.s32.totalorder %s39, 0
      %p183 = por %p181, %p182
      %s185 = sadd.s32 %s184, 1
      %p188 = scmp.eq.s32.totalorder %s33, 1
      %p189 = scmp.ne.s32.totalorder %s184, %s186
      %p190 = scmp.eq.s32.totalorder %s33, 0
      %p191 = por %p189, %p190
      %p192 = scmp.ne.s32.totalorder %s184, %s186
      %p193 = scmp.eq.s32.totalorder %s38, 1
      %p194 = por %p192, %p193
      %p195 = scmp.ne.s32.totalorder %s186, %s187
      %p196 = scmp.eq.s32.totalorder %s38, 0
      %p197 = por %p195, %p196
      %p198 = scmp.ne.s32.totalorder %s186, %s187
      %p199 = scmp.eq.s32.totalorder %s39, 1
      %p200 = por %p198, %p199
      %p202 = scmp.ne.s32.totalorder %s187, %s201
      %p203 = scmp.eq.s32.totalorder %s39, 0
      %p204 = por %p202, %p203
      %s206 = sadd.s32 %s205, 1
      %p209 = scmp.eq.s32.totalorder %s33, 1
      %p210 = scmp.ne.s32.totalorder %s205, %s207
      %p211 = scmp.eq.s32.totalorder %s33, 0
      %p212 = por %p210, %p211
      %p213 = scmp.ne.s32.totalorder %s205, %s207
      %p214 = scmp.eq.s32.totalorder %s38, 1
      %p215 = por %p213, %p214
      %p216 = scmp.ne.s32.totalorder %s207, %s208
      %p217 = scmp.eq.s32.totalorder %s38, 0
      %p218 = por %p216, %p217
      %p219 = scmp.ne.s32.totalorder %s207, %s208
      %p220 = scmp.eq.s32.totalorder %s39, 1
      %p221 = por %p219, %p220
      %p223 = scmp.ne.s32.totalorder %s208, %s222
      %p224 = scmp.eq.s32.totalorder %s39, 0
      %p225 = por %p223, %p224
      %s227 = sadd.s32 %s226, 1
      %p230 = scmp.eq.s32.totalorder %s33, 1
      %p231 = scmp.ne.s32.totalorder %s226, %s228
      %p232 = scmp.eq.s32.totalorder %s33, 0
      %p233 = por %p231, %p232
      %p234 = scmp.ne.s32.totalorder %s226, %s228
      %p235 = scmp.eq.s32.totalorder %s38, 1
      %p236 = por %p234, %p235
      %p237 = scmp.ne.s32.totalorder %s228, %s229
      %p238 = scmp.eq.s32.totalorder %s38, 0
      %p239 = por %p237, %p238
      %p240 = scmp.ne.s32.totalorder %s228, %s229
      %p241 = scmp.eq.s32.totalorder %s39, 1
      %p242 = por %p240, %p241
      %p244 = scmp.ne.s32.totalorder %s229, %s243
      %p245 = scmp.eq.s32.totalorder %s39, 0
      %p246 = por %p244, %p245
      %s248 = sadd.s32 %s247, 1
      %p251 = scmp.eq.s32.totalorder %s33, 1
      %p252 = scmp.ne.s32.totalorder %s247, %s249
      %p253 = scmp.eq.s32.totalorder %s33, 0
      %p254 = por %p252, %p253
      %p255 = scmp.ne.s32.totalorder %s247, %s249
      %p256 = scmp.eq.s32.totalorder %s38, 1
      %p257 = por %p255, %p256
      %p258 = scmp.ne.s32.totalorder %s249, %s250
      %p259 = scmp.eq.s32.totalorder %s38, 0
      %p260 = por %p258, %p259
      %p261 = scmp.ne.s32.totalorder %s249, %s250
      %p262 = scmp.eq.s32.totalorder %s39, 1
      %p263 = por %p261, %p262
      %p265 = scmp.ne.s32.totalorder %s250, %s264
      %p266 = scmp.eq.s32.totalorder %s39, 0
      %p267 = por %p265, %p266
      %s269 = sadd.s32 %s268, 1
      %p272 = scmp.eq.s32.totalorder %s33, 1
      %p273 = scmp.ne.s32.totalorder %s268, %s270
      %p274 = scmp.eq.s32.totalorder %s33, 0
      %p275 = por %p273, %p274
      %p276 = scmp.ne.s32.totalorder %s268, %s270
      %p277 = scmp.eq.s32.totalorder %s38, 1
      %p278 = por %p276, %p277
      %p279 = scmp.ne.s32.totalorder %s270, %s271
      %p280 = scmp.eq.s32.totalorder %s38, 0
      %p281 = por %p279, %p280
      %p282 = scmp.ne.s32.totalorder %s270, %s271
      %p283 = scmp.eq.s32.totalorder %s39, 1
      %p284 = por %p282, %p283
      %p286 = scmp.ne.s32.totalorder %s271, %s285
      %p287 = scmp.eq.s32.totalorder %s39, 0
      %p288 = por %p286, %p287
      %s290 = sadd.s32 %s289, 1
      %p293 = scmp.eq.s32.totalorder %s33, 1
      %p294 = scmp.ne.s32.totalorder %s289, %s291
      %p295 = scmp.eq.s32.totalorder %s33, 0
      %p296 = por %p294, %p295
      %p297 = scmp.ne.s32.totalorder %s289, %s291
      %p298 = scmp.eq.s32.totalorder %s38, 1
      %p299 = por %p297, %p298
      %p300 = scmp.ne.s32.totalorder %s291, %s292
      %p301 = scmp.eq.s32.totalorder %s38, 0
      %p302 = por %p300, %p301
      %p303 = scmp.ne.s32.totalorder %s291, %s292
      %p304 = scmp.eq.s32.totalorder %s39, 1
      %p305 = por %p303, %p304
      %p307 = scmp.ne.s32.totalorder %s292, %s306
      %p308 = scmp.eq.s32.totalorder %s39, 0
      %p309 = por %p307, %p308
      %s311 = sadd.s32 %s310, 1
      %p314 = scmp.eq.s32.totalorder %s33, 1
      %p315 = scmp.ne.s32.totalorder %s310, %s312
      %p316 = scmp.eq.s32.totalorder %s33, 0
      %p317 = por %p315, %p316
      %p318 = scmp.ne.s32.totalorder %s310, %s312
      %p319 = scmp.eq.s32.totalorder %s38, 1
      %p320 = por %p318, %p319
      %p321 = scmp.ne.s32.totalorder %s312, %s313
      %p322 = scmp.eq.s32.totalorder %s38, 0
      %p323 = por %p321, %p322
      %p324 = scmp.ne.s32.totalorder %s312, %s313
      %p325 = scmp.eq.s32.totalorder %s39, 1
      %p326 = por %p324, %p325
      %p328 = scmp.ne.s32.totalorder %s313, %s327
      %p329 = scmp.eq.s32.totalorder %s39, 0
      %p330 = por %p328, %p329
      %s332 = sadd.s32 %s331, 1
      %p335 = scmp.eq.s32.totalorder %s33, 1
      %p336 = scmp.ne.s32.totalorder %s331, %s333
      %p337 = scmp.eq.s32.totalorder %s33, 0
      %p338 = por %p336, %p337
      %p339 = scmp.ne.s32.totalorder %s331, %s333
      %p340 = scmp.eq.s32.totalorder %s38, 1
      %p341 = por %p339, %p340
      %p342 = scmp.ne.s32.totalorder %s333, %s334
      %p343 = scmp.eq.s32.totalorder %s38, 0
      %p344 = por %p342, %p343
      %p345 = scmp.ne.s32.totalorder %s333, %s334
      %p346 = scmp.eq.s32.totalorder %s39, 1
      %p347 = por %p345, %p346
      %p349 = scmp.ne.s32.totalorder %s334, %s348
      %p350 = scmp.eq.s32.totalorder %s39, 0
      %p351 = por %p349, %p350
      %s353 = sadd.s32 %s352, 1
      %p356 = scmp.eq.s32.totalorder %s33, 1
      %p357 = scmp.ne.s32.totalorder %s352, %s354
      %p358 = scmp.eq.s32.totalorder %s33, 0
      %p359 = por %p357, %p358
      %p360 = scmp.ne.s32.totalorder %s352, %s354
      %p361 = scmp.eq.s32.totalorder %s38, 1
      %p362 = por %p360, %p361
      %p363 = scmp.ne.s32.totalorder %s354, %s355
      %p364 = scmp.eq.s32.totalorder %s38, 0
      %p365 = por %p363, %p364
      %p366 = scmp.ne.s32.totalorder %s354, %s355
      %p367 = scmp.eq.s32.totalorder %s39, 1
      %p368 = por %p366, %p367
      %p370 = scmp.ne.s32.totalorder %s355, %s369
      %p371 = scmp.eq.s32.totalorder %s39, 0
      %p372 = por %p370, %p371
      %s374 = sadd.s32 %s373, 1
      %p377 = scmp.eq.s32.totalorder %s33, 1
      %p378 = scmp.ne.s32.totalorder %s373, %s375
      %p379 = scmp.eq.s32.totalorder %s33, 0
      %p380 = por %p378, %p379
      %p381 = scmp.ne.s32.totalorder %s373, %s375
      %p382 = scmp.eq.s32.totalorder %s38, 1
      %p383 = por %p381, %p382
      %p384 = scmp.ne.s32.totalorder %s375, %s376
      %p385 = scmp.eq.s32.totalorder %s38, 0
      %p386 = por %p384, %p385
      %p387 = scmp.ne.s32.totalorder %s375, %s376
      %p388 = scmp.eq.s32.totalorder %s39, 1
      %p389 = por %p387, %p388
      %p391 = scmp.ne.s32.totalorder %s376, %s390
      %p392 = scmp.eq.s32.totalorder %s39, 0
      %p393 = por %p391, %p392
      %s395 = sadd.s32 %s394, 1
      %p398 = scmp.eq.s32.totalorder %s33, 1
      %p399 = scmp.ne.s32.totalorder %s394, %s396
      %p400 = scmp.eq.s32.totalorder %s33, 0
      %p401 = por %p399, %p400
      %p402 = scmp.ne.s32.totalorder %s394, %s396
      %p403 = scmp.eq.s32.totalorder %s38, 1
      %p404 = por %p402, %p403
      %p405 = scmp.ne.s32.totalorder %s396, %s397
      %p406 = scmp.eq.s32.totalorder %s38, 0
      %p407 = por %p405, %p406
      %p408 = scmp.ne.s32.totalorder %s396, %s397
      %p409 = scmp.eq.s32.totalorder %s39, 1
      %p410 = por %p408, %p409
      %p412 = scmp.ne.s32.totalorder %s397, %s411
      %p413 = scmp.eq.s32.totalorder %s39, 0
      %p414 = por %p412, %p413
      %s415 = ssub.s32 %s40, %s52
      %s416 = ssub.s32 %s41, %s48
      %s417 = sor.u32 %s415, %s416
      %p418 = scmp.eq.s32.totalorder %s417, 0
      %s420 = sadd.s32 %s419, 1
      %s421 = scalar_select %p418, %s419, %s420
      %p424 = pneg %p418
      %p425 = scmp.eq.s32.totalorder %s33, 1
      %p426 = por %p424, %p425
      %p427 = scmp.ne.s32.totalorder %s419, %s422
      %p428 = scmp.eq.s32.totalorder %s33, 0
      %p429 = por %p427, %p428
      %p430 = scmp.ne.s32.totalorder %s419, %s422
      %p431 = scmp.eq.s32.totalorder %s38, 1
      %p432 = por %p430, %p431
      %p433 = scmp.ne.s32.totalorder %s422, %s423
      %p434 = scmp.eq.s32.totalorder %s38, 0
      %p435 = por %p433, %p434
      %p436 = scmp.ne.s32.totalorder %s422, %s423
      %p437 = scmp.eq.s32.totalorder %s39, 1
      %p438 = por %p436, %p437
      %p440 = scmp.ne.s32.totalorder %s423, %s439
      %p441 = scmp.eq.s32.totalorder %s39, 0
      %p442 = por %p440, %p441
      %p443 = scmp.le.s32.totalorder 1, %s33
      %p444 = scmp.lt.s32.totalorder %s33, 3
      %p445 = pnand %p443, %p444
      %p446 = pneg %p445
      // Predicated region
      $region9: #{tpu_custom_call.1} parent=5 // pred_check
        _
      $region10: #{tpu_custom_call.1} parent=5 // pred_check_branch
        %448 = sbr.rel (%p445) target = $region12
      $region11: #{tpu_custom_call.1} parent=5 // pred_region
        %s449 = ssub.s32 %s33, 1
        // Predicated region
        $region13: #{tpu_custom_call.1} parent=11 // pred_check
          %p450 = pneg %p92
        $region14: #{tpu_custom_call.1} parent=11 // pred_check_branch
          %452 = sbr.rel (%p450) target = $region16
        $region15: #{tpu_custom_call.1} parent=11 // pred_region
          _
        $region16: #{tpu_custom_call.1} parent=11 // pred_fallthru
          _
        // Predicated region
        $region17: #{tpu_custom_call.1} parent=11 // pred_check
          %p453 = pneg %p113
        $region18: #{tpu_custom_call.1} parent=11 // pred_check_branch
          %455 = sbr.rel (%p453) target = $region20
        $region19: #{tpu_custom_call.1} parent=11 // pred_region
          %s457 = ssub.s32 16, 16
          %458 = vsyncadd [#allocation10], %s457
          %s460 = sshll.u32 [#allocation9], 4
          %s461 = int_to_ptr.vmem [resolvable:$true] %s460
          %463 = dma.hbm_to_vmem [thread:$0]  %s2, 16, %s461, [#allocation10]
        $region20: #{tpu_custom_call.1} parent=11 // pred_fallthru
          _
        // Predicated region
        $region21: #{tpu_custom_call.1} parent=11 // pred_check
          %p464 = pneg %p134
        $region22: #{tpu_custom_call.1} parent=11 // pred_check_branch
          %466 = sbr.rel (%p464) target = $region24
        $region23: #{tpu_custom_call.1} parent=11 // pred_region
          %s468 = ssub.s32 1024, 1024
          %469 = vsyncadd [#allocation10], %s468
          %s470 = sshll.u32 [#allocation11], 4
          %s471 = int_to_ptr.vmem [resolvable:$true] %s470
          %476 = dma.hbm_to_vmem [thread:$0]  %s3, 1024, %s471, [#allocation10], 64, 64, 4
        $region24: #{tpu_custom_call.1} parent=11 // pred_fallthru
          _
        // Predicated region
        $region25: #{tpu_custom_call.1} parent=11 // pred_check
          %p477 = pneg %p155
        $region26: #{tpu_custom_call.1} parent=11 // pred_check_branch
          %479 = sbr.rel (%p477) target = $region28
        $region27: #{tpu_custom_call.1} parent=11 // pred_region
          _
        $region28: #{tpu_custom_call.1} parent=11 // pred_fallthru
          _
        // Predicated region
        $region29: #{tpu_custom_call.1} parent=11 // pred_check
          %p480 = pneg %p176
        $region30: #{tpu_custom_call.1} parent=11 // pred_check_branch
          %482 = sbr.rel (%p480) target = $region32
        $region31: #{tpu_custom_call.1} parent=11 // pred_region
          %s484 = ssub.s32 1024, 1024
          %485 = vsyncadd [#allocation13], %s484
          %s486 = sshll.u32 [#allocation12], 4
          %s487 = int_to_ptr.vmem [resolvable:$true] %s486
          %492 = dma.hbm_to_vmem [thread:$0]  %s5, 1024, %s487, [#allocation13], 64, 64, 4
        $region32: #{tpu_custom_call.1} parent=11 // pred_fallthru
          _
        // Predicated region
        $region33: #{tpu_custom_call.1} parent=11 // pred_check
          %p493 = pneg %p197
        $region34: #{tpu_custom_call.1} parent=11 // pred_check_branch
          %495 = sbr.rel (%p493) target = $region36
        $region35: #{tpu_custom_call.1} parent=11 // pred_region
          _
        $region36: #{tpu_custom_call.1} parent=11 // pred_fallthru
          _
        // Predicated region
        $region37: #{tpu_custom_call.1} parent=11 // pred_check
          %p496 = pneg %p218
        $region38: #{tpu_custom_call.1} parent=11 // pred_check_branch
          %498 = sbr.rel (%p496) target = $region40
        $region39: #{tpu_custom_call.1} parent=11 // pred_region
          %s500 = ssub.s32 1024, 1024
          %501 = vsyncadd [#allocation13], %s500
          %s502 = sshll.u32 [#allocation14], 4
          %s503 = int_to_ptr.vmem [resolvable:$true] %s502
          %508 = dma.hbm_to_vmem [thread:$0]  %s7, 1024, %s503, [#allocation13], 64, 64, 4
        $region40: #{tpu_custom_call.1} parent=11 // pred_fallthru
          _
        // Predicated region
        $region41: #{tpu_custom_call.1} parent=11 // pred_check
          %p509 = pneg %p239
        $region42: #{tpu_custom_call.1} parent=11 // pred_check_branch
          %511 = sbr.rel (%p509) target = $region44
        $region43: #{tpu_custom_call.1} parent=11 // pred_region
          _
        $region44: #{tpu_custom_call.1} parent=11 // pred_fallthru
          _
        // Predicated region
        $region45: #{tpu_custom_call.1} parent=11 // pred_check
          %p512 = pneg %p260
        $region46: #{tpu_custom_call.1} parent=11 // pred_check_branch
          %514 = sbr.rel (%p512) target = $region48
        $region47: #{tpu_custom_call.1} parent=11 // pred_region
          %s516 = ssub.s32 1024, 1024
          %517 = vsyncadd [#allocation16], %s516
          %s518 = sshll.u32 [#allocation15], 4
          %s519 = int_to_ptr.vmem [resolvable:$true] %s518
          %524 = dma.hbm_to_vmem [thread:$0]  %s9, 1024, %s519, [#allocation16], 64, 64, 4
        $region48: #{tpu_custom_call.1} parent=11 // pred_fallthru
          _
        // Predicated region
        $region49: #{tpu_custom_call.1} parent=11 // pred_check
          %p525 = pneg %p281
        $region50: #{tpu_custom_call.1} parent=11 // pred_check_branch
          %527 = sbr.rel (%p525) target = $region52
        $region51: #{tpu_custom_call.1} parent=11 // pred_region
          _
        $region52: #{tpu_custom_call.1} parent=11 // pred_fallthru
          _
        // Predicated region
        $region53: #{tpu_custom_call.1} parent=11 // pred_check
          %p528 = pneg %p302
        $region54: #{tpu_custom_call.1} parent=11 // pred_check_branch
          %530 = sbr.rel (%p528) target = $region56
        $region55: #{tpu_custom_call.1} parent=11 // pred_region
          _
        $region56: #{tpu_custom_call.1} parent=11 // pred_fallthru
          _
        // Predicated region
        $region57: #{tpu_custom_call.1} parent=11 // pred_check
          %p531 = pneg %p323
        $region58: #{tpu_custom_call.1} parent=11 // pred_check_branch
          %533 = sbr.rel (%p531) target = $region60
        $region59: #{tpu_custom_call.1} parent=11 // pred_region
          _
        $region60: #{tpu_custom_call.1} parent=11 // pred_fallthru
          _
        // Predicated region
        $region61: #{tpu_custom_call.1} parent=11 // pred_check
          %p534 = pneg %p344
        $region62: #{tpu_custom_call.1} parent=11 // pred_check_branch
          %536 = sbr.rel (%p534) target = $region64
        $region63: #{tpu_custom_call.1} parent=11 // pred_region
          %s538 = ssub.s32 2048, 2048
          %539 = vsyncadd [#allocation16], %s538
          %s540 = sshll.u32 [#allocation17], 4
          %s541 = int_to_ptr.vmem [resolvable:$true] %s540
          %546 = dma.hbm_to_vmem [thread:$0]  %s13, 2048, %s541, [#allocation16], 128, 128, 8
        $region64: #{tpu_custom_call.1} parent=11 // pred_fallthru
          _
        // Predicated region
        $region65: #{tpu_custom_call.1} parent=11 // pred_check
          %p547 = pneg %p365
        $region66: #{tpu_custom_call.1} parent=11 // pred_check_branch
          %549 = sbr.rel (%p547) target = $region68
        $region67: #{tpu_custom_call.1} parent=11 // pred_region
          _
        $region68: #{tpu_custom_call.1} parent=11 // pred_fallthru
          _
        // Predicated region
        $region69: #{tpu_custom_call.1} parent=11 // pred_check
          %p550 = pneg %p386
        $region70: #{tpu_custom_call.1} parent=11 // pred_check_branch
          %552 = sbr.rel (%p550) target = $region72
        $region71: #{tpu_custom_call.1} parent=11 // pred_region
          %s554 = ssub.s32 2048, 2048
          %555 = vsyncadd [#allocation19], %s554
          %s556 = sshll.u32 [#allocation18], 4
          %s557 = int_to_ptr.vmem [resolvable:$true] %s556
          %562 = dma.hbm_to_vmem [thread:$0]  %s15, 2048, %s557, [#allocation19], 64, 64, 4
        $region72: #{tpu_custom_call.1} parent=11 // pred_fallthru
          _
        // Predicated region
        $region73: #{tpu_custom_call.1} parent=11 // pred_check
          %p563 = pneg %p407
        $region74: #{tpu_custom_call.1} parent=11 // pred_check_branch
          %565 = sbr.rel (%p563) target = $region76
        $region75: #{tpu_custom_call.1} parent=11 // pred_region
          _
        $region76: #{tpu_custom_call.1} parent=11 // pred_fallthru
          _
      $region12: #{tpu_custom_call.1} parent=5 // pred_fallthru
        _
      %p566 = scmp.lt.s32.totalorder %s33, 2
      // Predicated region
      $region77: #{tpu_custom_call.1} parent=5 // pred_check
        %p567 = pneg %p566
      $region78: #{tpu_custom_call.1} parent=5 // pred_check_branch
        %569 = sbr.rel (%p567) target = $region80
      $region79: #{tpu_custom_call.1} parent=5 // pred_region
        // Predicated region
        $region81: #{tpu_custom_call.1} parent=79 // pred_check
          %p570 = pneg %p65
        $region82: #{tpu_custom_call.1} parent=79 // pred_check_branch
          %572 = sbr.rel (%p570) target = $region84
        $region83: #{tpu_custom_call.1} parent=79 // pred_region
          %s573 = sand.u32 %s55, 1
          %s574 = scalar_lea.sflag [#allocation7], %s573
          %s575 = sand.u32 %s55, 1
          %s576 = smul.addr %s575, 128
          %s577 = scalar_lea.vmem [#allocation6], %s576
          %s579 = ssub.s32 2048, 2048
          %580 = vsyncadd %s574, %s579
          %s581 = smul.addr %s40, 16
          %s582 = smul.addr %s581, 128
          %s583 = scalar_lea.hbm %s0, %s582
          %s584 = sshll.u32 %s577, 4
          %s585 = int_to_ptr.vmem [resolvable:$true] %s584
          %590 = dma.hbm_to_vmem [thread:$0]  %s583, 2048, %s585, %s574, 128, 128, 8
        $region84: #{tpu_custom_call.1} parent=79 // pred_fallthru
          _
      $region80: #{tpu_custom_call.1} parent=5 // pred_fallthru
        _
      %p591 = scmp.le.s32.totalorder 1, %s33
      %p592 = scmp.lt.s32.totalorder %s33, 3
      %p593 = pnand %p591, %p592
      %p594 = pneg %p593
      // Predicated region
      $region85: #{tpu_custom_call.1} parent=5 // pred_check
        _
      $region86: #{tpu_custom_call.1} parent=5 // pred_check_branch
        %596 = sbr.rel (%p593) target = $region88
      $region87: #{tpu_custom_call.1} parent=5 // pred_region
        %s597 = ssub.s32 %s33, 1
        %s598 = sand.u32 %s58, 1
        %s599 = scalar_lea.sflag [#allocation7], %s598
        %s600 = sand.u32 %s58, 1
        %s601 = smul.addr %s600, 128
        %s602 = scalar_lea.vmem [#allocation6], %s601
        // Predicated region
        $region89: #{tpu_custom_call.1} parent=87 // pred_check
          %p603 = pneg %p71
        $region90: #{tpu_custom_call.1} parent=87 // pred_check_branch
          %605 = sbr.rel (%p603) target = $region92
        $region91: #{tpu_custom_call.1} parent=87 // pred_region
          %606 = dma.done %s599, 2048
        $region92: #{tpu_custom_call.1} parent=87 // pred_fallthru
          _
        // Predicated region
        $region93: #{tpu_custom_call.1} parent=87 // pred_check
          %p607 = pneg %p113
        $region94: #{tpu_custom_call.1} parent=87 // pred_check_branch
          %609 = sbr.rel (%p607) target = $region96
        $region95: #{tpu_custom_call.1} parent=87 // pred_region
          %610 = dma.done [#allocation10], 16
        $region96: #{tpu_custom_call.1} parent=87 // pred_fallthru
          _
        // Predicated region
        $region97: #{tpu_custom_call.1} parent=87 // pred_check
          %p611 = pneg %p134
        $region98: #{tpu_custom_call.1} parent=87 // pred_check_branch
          %613 = sbr.rel (%p611) target = $region100
        $region99: #{tpu_custom_call.1} parent=87 // pred_region
          %614 = dma.done [#allocation10], 1024
        $region100: #{tpu_custom_call.1} parent=87 // pred_fallthru
          _
        // Predicated region
        $region101: #{tpu_custom_call.1} parent=87 // pred_check
          %p615 = pneg %p176
        $region102: #{tpu_custom_call.1} parent=87 // pred_check_branch
          %617 = sbr.rel (%p615) target = $region104
        $region103: #{tpu_custom_call.1} parent=87 // pred_region
          %618 = dma.done [#allocation13], 1024
        $region104: #{tpu_custom_call.1} parent=87 // pred_fallthru
          _
        // Predicated region
        $region105: #{tpu_custom_call.1} parent=87 // pred_check
          %p619 = pneg %p218
        $region106: #{tpu_custom_call.1} parent=87 // pred_check_branch
          %621 = sbr.rel (%p619) target = $region108
        $region107: #{tpu_custom_call.1} parent=87 // pred_region
          %622 = dma.done [#allocation13], 1024
        $region108: #{tpu_custom_call.1} parent=87 // pred_fallthru
          _
        // Predicated region
        $region109: #{tpu_custom_call.1} parent=87 // pred_check
          %p623 = pneg %p260
        $region110: #{tpu_custom_call.1} parent=87 // pred_check_branch
          %625 = sbr.rel (%p623) target = $region112
        $region111: #{tpu_custom_call.1} parent=87 // pred_region
          %626 = dma.done [#allocation16], 1024
        $region112: #{tpu_custom_call.1} parent=87 // pred_fallthru
          _
        // Predicated region
        $region113: #{tpu_custom_call.1} parent=87 // pred_check
          %p627 = pneg %p344
        $region114: #{tpu_custom_call.1} parent=87 // pred_check_branch
          %629 = sbr.rel (%p627) target = $region116
        $region115: #{tpu_custom_call.1} parent=87 // pred_region
          %630 = dma.done [#allocation16], 2048
        $region116: #{tpu_custom_call.1} parent=87 // pred_fallthru
          _
        // Predicated region
        $region117: #{tpu_custom_call.1} parent=87 // pred_check
          %p631 = pneg %p386
        $region118: #{tpu_custom_call.1} parent=87 // pred_check_branch
          %633 = sbr.rel (%p631) target = $region120
        $region119: #{tpu_custom_call.1} parent=87 // pred_region
          %634 = dma.done [#allocation19], 2048
        $region120: #{tpu_custom_call.1} parent=87 // pred_fallthru
          _
        %s635 = sand.u32 %s58, 1
        %s636 = scalar_lea.sflag [#allocation7], %s635
        %s637 = sand.u32 %s58, 1
        %s638 = smul.addr %s637, 128
        %s639 = scalar_lea.vmem [#allocation6], %s638
        %p640 = pneg %p71
        %p641 = pneg %p68
        %p642 = pneg %p92
        %p643 = pneg %p89
        %p644 = pneg %p113
        %p645 = pneg %p110
        %p646 = pneg %p134
        %p647 = pneg %p131
        %p648 = pneg %p155
        %p649 = pneg %p152
        %p650 = pneg %p176
        %p651 = pneg %p173
        %p652 = pneg %p197
        %p653 = pneg %p194
        %p654 = pneg %p218
        %p655 = pneg %p215
        %p656 = pneg %p239
        %p657 = pneg %p236
        %p658 = pneg %p260
        %p659 = pneg %p257
        %p660 = pneg %p281
        %p661 = pneg %p278
        %p662 = pneg %p302
        %p663 = pneg %p299
        %p664 = pneg %p323
        %p665 = pneg %p320
        %p666 = pneg %p344
        %p667 = pneg %p341
        %p668 = pneg %p365
        %p669 = pneg %p362
        %p670 = pneg %p386
        %p671 = pneg %p383
        %p672 = pneg %p407
        %p673 = pneg %p404
        %p674 = pneg %p435
        %p675 = pneg %p432
        %s676 = sand.u32 %s422, 1
        %s677 = scalar_lea.sflag [#allocation8], %s676
        %s678 = sand.u32 %s422, 1
        %s679 = smul.addr %s678, 128
        %s680 = scalar_lea.vmem [#allocation20], %s679
        %s681 = smul.u32 16, %s43
        %p683 = scmp.eq.s32.totalorder %s43, 0
        // Predicated region
        $region121: #{tpu_custom_call.1} parent=87 // pred_check
          %p684 = pneg %p683
        $region122: #{tpu_custom_call.1} parent=87 // pred_check_branch
          %686 = sbr.rel (%p684) target = $region124
        $region123: #{tpu_custom_call.1} parent=87 // pred_region
          %v687 = vld [vmem:[%s602] sm:$0xff]
          %v688 = vld [vmem:[%s602 + $0x8] sm:$0xff]
          %v689 = vld [vmem:[%s602 + $0x10] sm:$0xff]
          %v690 = vld [vmem:[%s602 + $0x18] sm:$0xff]
          %v691 = vld [vmem:[%s602 + $0x20] sm:$0xff]
          %v692 = vld [vmem:[%s602 + $0x28] sm:$0xff]
          %v693 = vld [vmem:[%s602 + $0x30] sm:$0xff]
          %v694 = vld [vmem:[%s602 + $0x38] sm:$0xff]
          %v695 = vld [vmem:[%s602 + $0x40] sm:$0xff]
          %v696 = vld [vmem:[%s602 + $0x48] sm:$0xff]
          %v697 = vld [vmem:[%s602 + $0x50] sm:$0xff]
          %v698 = vld [vmem:[%s602 + $0x58] sm:$0xff]
          %v699 = vld [vmem:[%s602 + $0x60] sm:$0xff]
          %v700 = vld [vmem:[%s602 + $0x68] sm:$0xff]
          %v701 = vld [vmem:[%s602 + $0x70] sm:$0xff]
          %v702 = vld [vmem:[%s602 + $0x78] sm:$0xff]
          %v703 = vld [vmem:[%s1] sm:$0x1]
          %v704 = vld [vmem:[#allocation9] sm:$0x1]
          %705 = vadd.xlane.f32.xlu0 %v687
          %v706 = vpop.xlane.xlu0 %705
          %707 = vadd.xlane.f32.xlu0 %v688
          %v708 = vpop.xlane.xlu0 %707
          %709 = vadd.xlane.f32.xlu0 %v689
          %v710 = vpop.xlane.xlu0 %709
          %711 = vadd.xlane.f32.xlu0 %v690
          %v712 = vpop.xlane.xlu0 %711
          %713 = vadd.xlane.f32.xlu0 %v691
          %v714 = vpop.xlane.xlu0 %713
          %715 = vadd.xlane.f32.xlu0 %v692
          %v716 = vpop.xlane.xlu0 %715
          %717 = vadd.xlane.f32.xlu0 %v693
          %v718 = vpop.xlane.xlu0 %717
          %719 = vadd.xlane.f32.xlu0 %v694
          %v720 = vpop.xlane.xlu0 %719
          %721 = vadd.xlane.f32.xlu0 %v695
          %v722 = vpop.xlane.xlu0 %721
          %723 = vadd.xlane.f32.xlu0 %v696
          %v724 = vpop.xlane.xlu0 %723
          %725 = vadd.xlane.f32.xlu0 %v697
          %v726 = vpop.xlane.xlu0 %725
          %727 = vadd.xlane.f32.xlu0 %v698
          %v728 = vpop.xlane.xlu0 %727
          %729 = vadd.xlane.f32.xlu0 %v699
          %v730 = vpop.xlane.xlu0 %729
          %731 = vadd.xlane.f32.xlu0 %v700
          %v732 = vpop.xlane.xlu0 %731
          %733 = vadd.xlane.f32.xlu0 %v701
          %v734 = vpop.xlane.xlu0 %733
          %735 = vadd.xlane.f32.xlu0 %v702
          %v736 = vpop.xlane.xlu0 %735
          %v737 = vrcp.pop 128.0
          %v738 = vmul.f32 %v706, %v737
          %v739 = vmul.f32 %v708, %v737
          %v740 = vmul.f32 %v710, %v737
          %v741 = vmul.f32 %v712, %v737
          %v742 = vmul.f32 %v714, %v737
          %v743 = vmul.f32 %v716, %v737
          %v744 = vmul.f32 %v718, %v737
          %v745 = vmul.f32 %v720, %v737
          %v746 = vmul.f32 %v722, %v737
          %v747 = vmul.f32 %v724, %v737
          %v748 = vmul.f32 %v726, %v737
          %v749 = vmul.f32 %v728, %v737
          %v750 = vmul.f32 %v730, %v737
          %v751 = vmul.f32 %v732, %v737
          %v752 = vmul.f32 %v734, %v737
          %v753 = vmul.f32 %v736, %v737
          %v754 = vsub.f32 %v687, %v738
          %v755 = vsub.f32 %v688, %v739
          %v756 = vsub.f32 %v689, %v740
          %v757 = vsub.f32 %v690, %v741
          %v758 = vsub.f32 %v691, %v742
          %v759 = vsub.f32 %v692, %v743
          %v760 = vsub.f32 %v693, %v744
          %v761 = vsub.f32 %v694, %v745
          %v762 = vsub.f32 %v695, %v746
          %v763 = vsub.f32 %v696, %v747
          %v764 = vsub.f32 %v697, %v748
          %v765 = vsub.f32 %v698, %v749
          %v766 = vsub.f32 %v699, %v750
          %v767 = vsub.f32 %v700, %v751
          %v768 = vsub.f32 %v701, %v752
          %v769 = vsub.f32 %v702, %v753
          %v770 = vmul.f32 %v754, %v754
          %v771 = vmul.f32 %v755, %v755
          %v772 = vmul.f32 %v756, %v756
          %v773 = vmul.f32 %v757, %v757
          %v774 = vmul.f32 %v758, %v758
          %v775 = vmul.f32 %v759, %v759
          %v776 = vmul.f32 %v760, %v760
          %v777 = vmul.f32 %v761, %v761
          %v778 = vmul.f32 %v762, %v762
          %v779 = vmul.f32 %v763, %v763
          %v780 = vmul.f32 %v764, %v764
          %v781 = vmul.f32 %v765, %v765
          %v782 = vmul.f32 %v766, %v766
          %v783 = vmul.f32 %v767, %v767
          %v784 = vmul.f32 %v768, %v768
          %v785 = vmul.f32 %v769, %v769
          %786 = vadd.xlane.f32.xlu0 %v770
          %v787 = vpop.xlane.xlu0 %786
          %788 = vadd.xlane.f32.xlu0 %v771
          %v789 = vpop.xlane.xlu0 %788
          %790 = vadd.xlane.f32.xlu0 %v772
          %v791 = vpop.xlane.xlu0 %790
          %792 = vadd.xlane.f32.xlu0 %v773
          %v793 = vpop.xlane.xlu0 %792
          %794 = vadd.xlane.f32.xlu0 %v774
          %v795 = vpop.xlane.xlu0 %794
          %796 = vadd.xlane.f32.xlu0 %v775
          %v797 = vpop.xlane.xlu0 %796
          %798 = vadd.xlane.f32.xlu0 %v776
          %v799 = vpop.xlane.xlu0 %798
          %800 = vadd.xlane.f32.xlu0 %v777
          %v801 = vpop.xlane.xlu0 %800
          %802 = vadd.xlane.f32.xlu0 %v778
          %v803 = vpop.xlane.xlu0 %802
          %804 = vadd.xlane.f32.xlu0 %v779
          %v805 = vpop.xlane.xlu0 %804
          %806 = vadd.xlane.f32.xlu0 %v780
          %v807 = vpop.xlane.xlu0 %806
          %808 = vadd.xlane.f32.xlu0 %v781
          %v809 = vpop.xlane.xlu0 %808
          %810 = vadd.xlane.f32.xlu0 %v782
          %v811 = vpop.xlane.xlu0 %810
          %812 = vadd.xlane.f32.xlu0 %v783
          %v813 = vpop.xlane.xlu0 %812
          %814 = vadd.xlane.f32.xlu0 %v784
          %v815 = vpop.xlane.xlu0 %814
          %816 = vadd.xlane.f32.xlu0 %v785
          %v817 = vpop.xlane.xlu0 %816
          %v818 = vmul.f32 %v787, 0.007874016
          %v819 = vmul.f32 %v789, 0.007874016
          %v820 = vmul.f32 %v791, 0.007874016
          %v821 = vmul.f32 %v793, 0.007874016
          %v822 = vmul.f32 %v795, 0.007874016
          %v823 = vmul.f32 %v797, 0.007874016
          %v824 = vmul.f32 %v799, 0.007874016
          %v825 = vmul.f32 %v801, 0.007874016
          %v826 = vmul.f32 %v803, 0.007874016
          %v827 = vmul.f32 %v805, 0.007874016
          %v828 = vmul.f32 %v807, 0.007874016
          %v829 = vmul.f32 %v809, 0.007874016
          %v830 = vmul.f32 %v811, 0.007874016
          %v831 = vmul.f32 %v813, 0.007874016
          %v832 = vmul.f32 %v815, 0.007874016
          %v833 = vmul.f32 %v817, 0.007874016
          %v834 = vrsqrt.pop %v818
          %v835 = vmul.f32 %v818, %v834
          %vm836 = vcmp.eq.f32.partialorder %v818, inf
          %v837 = vsel %vm836, %v818, %v835
          %vm838 = vcmp.eq.f32.partialorder %v818, 0.0
          %v839 = vand.u32 %v818, 2147483648
          %v840 = vsel %vm838, %v839, %v837
          %v841 = vrsqrt.pop %v819
          %v842 = vmul.f32 %v819, %v841
          %vm843 = vcmp.eq.f32.partialorder %v819, inf
          %v844 = vsel %vm843, %v819, %v842
          %vm845 = vcmp.eq.f32.partialorder %v819, 0.0
          %v846 = vand.u32 %v819, 2147483648
          %v847 = vsel %vm845, %v846, %v844
          %v848 = vrsqrt.pop %v820
          %v849 = vmul.f32 %v820, %v848
          %vm850 = vcmp.eq.f32.partialorder %v820, inf
          %v851 = vsel %vm850, %v820, %v849
          %vm852 = vcmp.eq.f32.partialorder %v820, 0.0
          %v853 = vand.u32 %v820, 2147483648
          %v854 = vsel %vm852, %v853, %v851
          %v855 = vrsqrt.pop %v821
          %v856 = vmul.f32 %v821, %v855
          %vm857 = vcmp.eq.f32.partialorder %v821, inf
          %v858 = vsel %vm857, %v821, %v856
          %vm859 = vcmp.eq.f32.partialorder %v821, 0.0
          %v860 = vand.u32 %v821, 2147483648
          %v861 = vsel %vm859, %v860, %v858
          %v862 = vrsqrt.pop %v822
          %v863 = vmul.f32 %v822, %v862
          %vm864 = vcmp.eq.f32.partialorder %v822, inf
          %v865 = vsel %vm864, %v822, %v863
          %vm866 = vcmp.eq.f32.partialorder %v822, 0.0
          %v867 = vand.u32 %v822, 2147483648
          %v868 = vsel %vm866, %v867, %v865
          %v869 = vrsqrt.pop %v823
          %v870 = vmul.f32 %v823, %v869
          %vm871 = vcmp.eq.f32.partialorder %v823, inf
          %v872 = vsel %vm871, %v823, %v870
          %vm873 = vcmp.eq.f32.partialorder %v823, 0.0
          %v874 = vand.u32 %v823, 2147483648
          %v875 = vsel %vm873, %v874, %v872
          %v876 = vrsqrt.pop %v824
          %v877 = vmul.f32 %v824, %v876
          %vm878 = vcmp.eq.f32.partialorder %v824, inf
          %v879 = vsel %vm878, %v824, %v877
          %vm880 = vcmp.eq.f32.partialorder %v824, 0.0
          %v881 = vand.u32 %v824, 2147483648
          %v882 = vsel %vm880, %v881, %v879
          %v883 = vrsqrt.pop %v825
          %v884 = vmul.f32 %v825, %v883
          %vm885 = vcmp.eq.f32.partialorder %v825, inf
          %v886 = vsel %vm885, %v825, %v884
          %vm887 = vcmp.eq.f32.partialorder %v825, 0.0
          %v888 = vand.u32 %v825, 2147483648
          %v889 = vsel %vm887, %v888, %v886
          %v890 = vrsqrt.pop %v826
          %v891 = vmul.f32 %v826, %v890
          %vm892 = vcmp.eq.f32.partialorder %v826, inf
          %v893 = vsel %vm892, %v826, %v891
          %vm894 = vcmp.eq.f32.partialorder %v826, 0.0
          %v895 = vand.u32 %v826, 2147483648
          %v896 = vsel %vm894, %v895, %v893
          %v897 = vrsqrt.pop %v827
          %v898 = vmul.f32 %v827, %v897
          %vm899 = vcmp.eq.f32.partialorder %v827, inf
          %v900 = vsel %vm899, %v827, %v898
          %vm901 = vcmp.eq.f32.partialorder %v827, 0.0
          %v902 = vand.u32 %v827, 2147483648
          %v903 = vsel %vm901, %v902, %v900
          %v904 = vrsqrt.pop %v828
          %v905 = vmul.f32 %v828, %v904
          %vm906 = vcmp.eq.f32.partialorder %v828, inf
          %v907 = vsel %vm906, %v828, %v905
          %vm908 = vcmp.eq.f32.partialorder %v828, 0.0
          %v909 = vand.u32 %v828, 2147483648
          %v910 = vsel %vm908, %v909, %v907
          %v911 = vrsqrt.pop %v829
          %v912 = vmul.f32 %v829, %v911
          %vm913 = vcmp.eq.f32.partialorder %v829, inf
          %v914 = vsel %vm913, %v829, %v912
          %vm915 = vcmp.eq.f32.partialorder %v829, 0.0
          %v916 = vand.u32 %v829, 2147483648
          %v917 = vsel %vm915, %v916, %v914
          %v918 = vrsqrt.pop %v830
          %v919 = vmul.f32 %v830, %v918
          %vm920 = vcmp.eq.f32.partialorder %v830, inf
          %v921 = vsel %vm920, %v830, %v919
          %vm922 = vcmp.eq.f32.partialorder %v830, 0.0
          %v923 = vand.u32 %v830, 2147483648
          %v924 = vsel %vm922, %v923, %v921
          %v925 = vrsqrt.pop %v831
          %v926 = vmul.f32 %v831, %v925
          %vm927 = vcmp.eq.f32.partialorder %v831, inf
          %v928 = vsel %vm927, %v831, %v926
          %vm929 = vcmp.eq.f32.partialorder %v831, 0.0
          %v930 = vand.u32 %v831, 2147483648
          %v931 = vsel %vm929, %v930, %v928
          %v932 = vrsqrt.pop %v832
          %v933 = vmul.f32 %v832, %v932
          %vm934 = vcmp.eq.f32.partialorder %v832, inf
          %v935 = vsel %vm934, %v832, %v933
          %vm936 = vcmp.eq.f32.partialorder %v832, 0.0
          %v937 = vand.u32 %v832, 2147483648
          %v938 = vsel %vm936, %v937, %v935
          %v939 = vrsqrt.pop %v833
          %v940 = vmul.f32 %v833, %v939
          %vm941 = vcmp.eq.f32.partialorder %v833, inf
          %v942 = vsel %vm941, %v833, %v940
          %vm943 = vcmp.eq.f32.partialorder %v833, 0.0
          %v944 = vand.u32 %v833, 2147483648
          %v945 = vsel %vm943, %v944, %v942
          %v946 = vadd.f32 %v840, 1e-05
          %v947 = vadd.f32 %v847, 1e-05
          %v948 = vadd.f32 %v854, 1e-05
          %v949 = vadd.f32 %v861, 1e-05
          %v950 = vadd.f32 %v868, 1e-05
          %v951 = vadd.f32 %v875, 1e-05
          %v952 = vadd.f32 %v882, 1e-05
          %v953 = vadd.f32 %v889, 1e-05
          %v954 = vadd.f32 %v896, 1e-05
          %v955 = vadd.f32 %v903, 1e-05
          %v956 = vadd.f32 %v910, 1e-05
          %v957 = vadd.f32 %v917, 1e-05
          %v958 = vadd.f32 %v924, 1e-05
          %v959 = vadd.f32 %v931, 1e-05
          %v960 = vadd.f32 %v938, 1e-05
          %v961 = vadd.f32 %v945, 1e-05
          %v962 = vrcp.pop %v946
          %v963 = vrcp.pop %v947
          %v964 = vrcp.pop %v948
          %v965 = vrcp.pop %v949
          %v966 = vrcp.pop %v950
          %v967 = vrcp.pop %v951
          %v968 = vrcp.pop %v952
          %v969 = vrcp.pop %v953
          %v970 = vrcp.pop %v954
          %v971 = vrcp.pop %v955
          %v972 = vrcp.pop %v956
          %v973 = vrcp.pop %v957
          %v974 = vrcp.pop %v958
          %v975 = vrcp.pop %v959
          %v976 = vrcp.pop %v960
          %v977 = vrcp.pop %v961
          %v978 = vmul.f32 %v754, %v962
          %v979 = vmul.f32 %v755, %v963
          %v980 = vmul.f32 %v756, %v964
          %v981 = vmul.f32 %v757, %v965
          %v982 = vmul.f32 %v758, %v966
          %v983 = vmul.f32 %v759, %v967
          %v984 = vmul.f32 %v760, %v968
          %v985 = vmul.f32 %v761, %v969
          %v986 = vmul.f32 %v762, %v970
          %v987 = vmul.f32 %v763, %v971
          %v988 = vmul.f32 %v764, %v972
          %v989 = vmul.f32 %v765, %v973
          %v990 = vmul.f32 %v766, %v974
          %v991 = vmul.f32 %v767, %v975
          %v992 = vmul.f32 %v768, %v976
          %v993 = vmul.f32 %v769, %v977
          %v995 = vlaneseq
          %v996 = vshrl.u32 %v995, 7
          %v997 = vsub.s32 0, %v996
          %v998 = vrot.slane %v703, %v997
          %v1000 = vmul.f32 %v998, %v978
          %v1001 = vmul.f32 %v998, %v979
          %v1002 = vmul.f32 %v998, %v980
          %v1003 = vmul.f32 %v998, %v981
          %v1004 = vmul.f32 %v998, %v982
          %v1005 = vmul.f32 %v998, %v983
          %v1006 = vmul.f32 %v998, %v984
          %v1007 = vmul.f32 %v998, %v985
          %v1008 = vmul.f32 %v998, %v986
          %v1009 = vmul.f32 %v998, %v987
          %v1010 = vmul.f32 %v998, %v988
          %v1011 = vmul.f32 %v998, %v989
          %v1012 = vmul.f32 %v998, %v990
          %v1013 = vmul.f32 %v998, %v991
          %v1014 = vmul.f32 %v998, %v992
          %v1015 = vmul.f32 %v998, %v993
          %v1017 = vlaneseq
          %v1018 = vshrl.u32 %v1017, 7
          %v1019 = vsub.s32 0, %v1018
          %v1020 = vrot.slane %v704, %v1019
          %v1022 = vadd.f32 %v1000, %v1020
          %v1023 = vadd.f32 %v1001, %v1020
          %v1024 = vadd.f32 %v1002, %v1020
          %v1025 = vadd.f32 %v1003, %v1020
          %v1026 = vadd.f32 %v1004, %v1020
          %v1027 = vadd.f32 %v1005, %v1020
          %v1028 = vadd.f32 %v1006, %v1020
          %v1029 = vadd.f32 %v1007, %v1020
          %v1030 = vadd.f32 %v1008, %v1020
          %v1031 = vadd.f32 %v1009, %v1020
          %v1032 = vadd.f32 %v1010, %v1020
          %v1033 = vadd.f32 %v1011, %v1020
          %v1034 = vadd.f32 %v1012, %v1020
          %v1035 = vadd.f32 %v1013, %v1020
          %v1036 = vadd.f32 %v1014, %v1020
          %v1037 = vadd.f32 %v1015, %v1020
          %v1038 = vpack.c.bf16 %v1023, %v1022
          %v1039 = vpack.c.bf16 %v1025, %v1024
          %v1040 = vpack.c.bf16 %v1027, %v1026
          %v1041 = vpack.c.bf16 %v1029, %v1028
          %v1042 = vpack.c.bf16 %v1031, %v1030
          %v1043 = vpack.c.bf16 %v1033, %v1032
          %v1044 = vpack.c.bf16 %v1035, %v1034
          %v1045 = vpack.c.bf16 %v1037, %v1036
          %v1054 = vunpack.c.l.b16 %v1038
          %v1055 = vunpack.c.h.b16 %v1038
          %v1056 = vunpack.c.l.b16 %v1039
          %v1057 = vunpack.c.h.b16 %v1039
          %v1058 = vunpack.c.l.b16 %v1040
          %v1059 = vunpack.c.h.b16 %v1040
          %v1060 = vunpack.c.l.b16 %v1041
          %v1061 = vunpack.c.h.b16 %v1041
          %v1062 = vunpack.c.l.b16 %v1042
          %v1063 = vunpack.c.h.b16 %v1042
          %v1064 = vunpack.c.l.b16 %v1043
          %v1065 = vunpack.c.h.b16 %v1043
          %v1066 = vunpack.c.l.b16 %v1044
          %v1067 = vunpack.c.h.b16 %v1044
          %v1068 = vunpack.c.l.b16 %v1045
          %v1069 = vunpack.c.h.b16 %v1045
          %v1070 = vpack.c.b16 %v1054, %v1054
          %v1071 = vpack.c.b16 %v1055, %v1055
          %v1072 = vpack.c.b16 %v1056, %v1056
          %v1073 = vpack.c.b16 %v1057, %v1057
          %v1074 = vpack.c.b16 %v1058, %v1058
          %v1075 = vpack.c.b16 %v1059, %v1059
          %v1076 = vpack.c.b16 %v1060, %v1060
          %v1077 = vpack.c.b16 %v1061, %v1061
          %v1078 = vpack.c.b16 %v1062, %v1062
          %v1079 = vpack.c.b16 %v1063, %v1063
          %v1080 = vpack.c.b16 %v1064, %v1064
          %v1081 = vpack.c.b16 %v1065, %v1065
          %v1082 = vpack.c.b16 %v1066, %v1066
          %v1083 = vpack.c.b16 %v1067, %v1067
          %v1084 = vpack.c.b16 %v1068, %v1068
          %v1085 = vpack.c.b16 %v1069, %v1069
          %1102 = vst [vmem:[#allocation2] sm:$0xf] %v1070
          %1103 = vst [vmem:[#allocation2 + $0x4] sm:$0xf] %v1071
          %1104 = vst [vmem:[#allocation2 + $0x8] sm:$0xf] %v1072
          %1105 = vst [vmem:[#allocation2 + $0xc] sm:$0xf] %v1073
          %1106 = vst [vmem:[#allocation2 + $0x10] sm:$0xf] %v1074
          %1107 = vst [vmem:[#allocation2 + $0x14] sm:$0xf] %v1075
          %1108 = vst [vmem:[#allocation2 + $0x18] sm:$0xf] %v1076
          %1109 = vst [vmem:[#allocation2 + $0x1c] sm:$0xf] %v1077
          %1110 = vst [vmem:[#allocation2 + $0x20] sm:$0xf] %v1078
          %1111 = vst [vmem:[#allocation2 + $0x24] sm:$0xf] %v1079
          %1112 = vst [vmem:[#allocation2 + $0x28] sm:$0xf] %v1080
          %1113 = vst [vmem:[#allocation2 + $0x2c] sm:$0xf] %v1081
          %1114 = vst [vmem:[#allocation2 + $0x30] sm:$0xf] %v1082
          %1115 = vst [vmem:[#allocation2 + $0x34] sm:$0xf] %v1083
          %1116 = vst [vmem:[#allocation2 + $0x38] sm:$0xf] %v1084
          %1117 = vst [vmem:[#allocation2 + $0x3c] sm:$0xf] %v1085
          %v1118 = vld [vmem:[#allocation12] sm:$0xf]
          %v1119 = vld [vmem:[#allocation12 + $0x4] sm:$0xf]
          %v1120 = vld [vmem:[#allocation12 + $0x8] sm:$0xf]
          %v1121 = vld [vmem:[#allocation12 + $0xc] sm:$0xf]
          %v1122 = vld [vmem:[#allocation12 + $0x10] sm:$0xf]
          %v1123 = vld [vmem:[#allocation12 + $0x14] sm:$0xf]
          %v1124 = vld [vmem:[#allocation12 + $0x18] sm:$0xf]
          %v1125 = vld [vmem:[#allocation12 + $0x1c] sm:$0xf]
          %v1126 = vld [vmem:[#allocation12 + $0x20] sm:$0xf]
          %v1127 = vld [vmem:[#allocation12 + $0x24] sm:$0xf]
          %v1128 = vld [vmem:[#allocation12 + $0x28] sm:$0xf]
          %v1129 = vld [vmem:[#allocation12 + $0x2c] sm:$0xf]
          %v1130 = vld [vmem:[#allocation12 + $0x30] sm:$0xf]
          %v1131 = vld [vmem:[#allocation12 + $0x34] sm:$0xf]
          %v1132 = vld [vmem:[#allocation12 + $0x38] sm:$0xf]
          %v1133 = vld [vmem:[#allocation12 + $0x3c] sm:$0xf]
          %v1134 = vld [vmem:[%s6] sm:$0x1]
          %v1136 = vlaneseq
          %v1137 = vshrl.u32 %v1136, 7
          %v1138 = vsub.s32 0, %v1137
          %v1139 = vrot.slane %v1134, %v1138
          %v1157 = vunpack.c.l.b16 %v1118
          %v1158 = vunpack.c.l.b16 %v1119
          %v1159 = vunpack.c.l.b16 %v1120
          %v1160 = vunpack.c.l.b16 %v1121
          %v1161 = vunpack.c.l.b16 %v1122
          %v1162 = vunpack.c.l.b16 %v1123
          %v1163 = vunpack.c.l.b16 %v1124
          %v1164 = vunpack.c.l.b16 %v1125
          %v1165 = vunpack.c.l.b16 %v1126
          %v1166 = vunpack.c.l.b16 %v1127
          %v1167 = vunpack.c.l.b16 %v1128
          %v1168 = vunpack.c.l.b16 %v1129
          %v1169 = vunpack.c.l.b16 %v1130
          %v1170 = vunpack.c.l.b16 %v1131
          %v1171 = vunpack.c.l.b16 %v1132
          %v1172 = vunpack.c.l.b16 %v1133
          %v1173 = vpack.c.b16 %v1158, %v1157
          %v1174 = vpack.c.b16 %v1160, %v1159
          %v1175 = vpack.c.b16 %v1162, %v1161
          %v1176 = vpack.c.b16 %v1164, %v1163
          %v1177 = vpack.c.b16 %v1166, %v1165
          %v1178 = vpack.c.b16 %v1168, %v1167
          %v1179 = vpack.c.b16 %v1170, %v1169
          %v1180 = vpack.c.b16 %v1172, %v1171
          %1189 = vmatprep.subr.bf16.mxu0 0
          %1190 = vmatpush1.bf16.msra.mxu0 %v1180
          %1191 = vmatprep.subr.bf16.mxu0 0
          %1192 = vmatpush1.bf16.msra.mxu0 %v1179
          %1193 = vmatprep.subr.bf16.mxu0 0
          %1194 = vmatpush1.bf16.msra.mxu0 %v1178
          %1195 = vmatprep.subr.bf16.mxu0 0
          %1196 = vmatpush1.bf16.msra.mxu0 %v1177
          %1197 = vmatprep.subr.bf16.mxu0 0
          %1198 = vmatpush1.bf16.msra.mxu0 %v1176
          %1199 = vmatprep.subr.bf16.mxu0 0
          %1200 = vmatpush1.bf16.msra.mxu0 %v1175
          %1201 = vmatprep.subr.bf16.mxu0 0
          %1202 = vmatpush1.bf16.msra.mxu0 %v1174
          %1203 = vmatprep.subr.bf16.mxu0 0
          %1204 = vmatpush1.bf16.msra.mxu0 %v1173
          %1205 = vmatprep.subr.bf16.mxu0 0
          %1206 = vmatpush2.bf16.msra.mxu0 0
          %1207 = vmatprep.subr.bf16.mxu0 0
          %1208 = vmatpush2.bf16.msra.mxu0 0
          %1209 = vmatprep.subr.bf16.mxu0 0
          %1210 = vmatpush2.bf16.msra.mxu0 0
          %1211 = vmatprep.subr.bf16.mxu0 0
          %1212 = vmatpush2.bf16.msra.mxu0 0
          %1213 = vmatprep.subr.bf16.mxu0 0
          %1214 = vmatpush2.bf16.msra.mxu0 0
          %1215 = vmatprep.subr.bf16.mxu0 0
          %1216 = vmatpush2.bf16.msra.mxu0 0
          %1217 = vmatprep.subr.bf16.mxu0 0
          %1218 = vmatpush2.bf16.msra.mxu0 0
          %1219 = vmatprep.subr.bf16.mxu0 0
          %1220 = vmatpush2.bf16.msra.mxu0 0
          %1221 = vmatprep.mubr.bf16.mxu0 0
          %1222 = vmatmul.mubr.bf16.gmra.mxu0 %v1038
          %v1223 = vpop.f32.mrf.mxu0
          %v1224 = vadd.f32 %v1139, %v1223
          %v1225 = vpop.f32.mrf.mxu0
          %v1226 = vpop.f32.mrf.mxu0
          %v1227 = vadd.f32 %v1139, %v1226
          %v1228 = vpop.f32.mrf.mxu0
          %1229 = vmatprep.mubr.bf16.mxu0 0
          %1230 = vmatmul.mubr.bf16.gmra.mxu0 %v1039
          %v1231 = vpop.f32.mrf.mxu0
          %v1232 = vadd.f32 %v1139, %v1231
          %v1233 = vpop.f32.mrf.mxu0
          %v1234 = vpop.f32.mrf.mxu0
          %v1235 = vadd.f32 %v1139, %v1234
          %v1236 = vpop.f32.mrf.mxu0
          %1237 = vmatprep.mubr.bf16.mxu0 0
          %1238 = vmatmul.mubr.bf16.gmra.mxu0 %v1040
          %v1239 = vpop.f32.mrf.mxu0
          %v1240 = vadd.f32 %v1139, %v1239
          %v1241 = vpop.f32.mrf.mxu0
          %v1242 = vpop.f32.mrf.mxu0
          %v1243 = vadd.f32 %v1139, %v1242
          %v1244 = vpop.f32.mrf.mxu0
          %1245 = vmatprep.mubr.bf16.mxu0 0
          %1246 = vmatmul.mubr.bf16.gmra.mxu0 %v1041
          %v1247 = vpop.f32.mrf.mxu0
          %v1248 = vadd.f32 %v1139, %v1247
          %v1249 = vpop.f32.mrf.mxu0
          %v1250 = vpop.f32.mrf.mxu0
          %v1251 = vadd.f32 %v1139, %v1250
          %v1252 = vpop.f32.mrf.mxu0
          %1253 = vmatprep.mubr.bf16.mxu0 0
          %1254 = vmatmul.mubr.bf16.gmra.mxu0 %v1042
          %v1255 = vpop.f32.mrf.mxu0
          %v1256 = vadd.f32 %v1139, %v1255
          %v1257 = vpop.f32.mrf.mxu0
          %v1258 = vpop.f32.mrf.mxu0
          %v1259 = vadd.f32 %v1139, %v1258
          %v1260 = vpop.f32.mrf.mxu0
          %1261 = vmatprep.mubr.bf16.mxu0 0
          %1262 = vmatmul.mubr.bf16.gmra.mxu0 %v1043
          %v1263 = vpop.f32.mrf.mxu0
          %v1264 = vadd.f32 %v1139, %v1263
          %v1265 = vpop.f32.mrf.mxu0
          %v1266 = vpop.f32.mrf.mxu0
          %v1267 = vadd.f32 %v1139, %v1266
          %v1268 = vpop.f32.mrf.mxu0
          %1269 = vmatprep.mubr.bf16.mxu0 0
          %1270 = vmatmul.mubr.bf16.gmra.mxu0 %v1044
          %v1271 = vpop.f32.mrf.mxu0
          %v1272 = vadd.f32 %v1139, %v1271
          %v1273 = vpop.f32.mrf.mxu0
          %v1274 = vpop.f32.mrf.mxu0
          %v1275 = vadd.f32 %v1139, %v1274
          %v1276 = vpop.f32.mrf.mxu0
          %1277 = vmatprep.mubr.bf16.mxu0 0
          %1278 = vmatmul.mubr.bf16.gmra.mxu0 %v1045
          %v1279 = vpop.f32.mrf.mxu0
          %v1280 = vadd.f32 %v1139, %v1279
          %v1281 = vpop.f32.mrf.mxu0
          %v1282 = vpop.f32.mrf.mxu0
          %v1283 = vadd.f32 %v1139, %v1282
          %v1284 = vpop.f32.mrf.mxu0
          %1285 = vdwg.mxu0
          %v1286 = vld [vmem:[#allocation14] sm:$0xf]
          %v1287 = vld [vmem:[#allocation14 + $0x4] sm:$0xf]
          %v1288 = vld [vmem:[#allocation14 + $0x8] sm:$0xf]
          %v1289 = vld [vmem:[#allocation14 + $0xc] sm:$0xf]
          %v1290 = vld [vmem:[#allocation14 + $0x10] sm:$0xf]
          %v1291 = vld [vmem:[#allocation14 + $0x14] sm:$0xf]
          %v1292 = vld [vmem:[#allocation14 + $0x18] sm:$0xf]
          %v1293 = vld [vmem:[#allocation14 + $0x1c] sm:$0xf]
          %v1294 = vld [vmem:[#allocation14 + $0x20] sm:$0xf]
          %v1295 = vld [vmem:[#allocation14 + $0x24] sm:$0xf]
          %v1296 = vld [vmem:[#allocation14 + $0x28] sm:$0xf]
          %v1297 = vld [vmem:[#allocation14 + $0x2c] sm:$0xf]
          %v1298 = vld [vmem:[#allocation14 + $0x30] sm:$0xf]
          %v1299 = vld [vmem:[#allocation14 + $0x34] sm:$0xf]
          %v1300 = vld [vmem:[#allocation14 + $0x38] sm:$0xf]
          %v1301 = vld [vmem:[#allocation14 + $0x3c] sm:$0xf]
          %v1302 = vld [vmem:[%s8] sm:$0x1]
          %v1304 = vlaneseq
          %v1305 = vshrl.u32 %v1304, 7
          %v1306 = vsub.s32 0, %v1305
          %v1307 = vrot.slane %v1302, %v1306
          %v1325 = vunpack.c.l.b16 %v1286
          %v1326 = vunpack.c.l.b16 %v1287
          %v1327 = vunpack.c.l.b16 %v1288
          %v1328 = vunpack.c.l.b16 %v1289
          %v1329 = vunpack.c.l.b16 %v1290
          %v1330 = vunpack.c.l.b16 %v1291
          %v1331 = vunpack.c.l.b16 %v1292
          %v1332 = vunpack.c.l.b16 %v1293
          %v1333 = vunpack.c.l.b16 %v1294
          %v1334 = vunpack.c.l.b16 %v1295
          %v1335 = vunpack.c.l.b16 %v1296
          %v1336 = vunpack.c.l.b16 %v1297
          %v1337 = vunpack.c.l.b16 %v1298
          %v1338 = vunpack.c.l.b16 %v1299
          %v1339 = vunpack.c.l.b16 %v1300
          %v1340 = vunpack.c.l.b16 %v1301
          %v1341 = vpack.c.b16 %v1326, %v1325
          %v1342 = vpack.c.b16 %v1328, %v1327
          %v1343 = vpack.c.b16 %v1330, %v1329
          %v1344 = vpack.c.b16 %v1332, %v1331
          %v1345 = vpack.c.b16 %v1334, %v1333
          %v1346 = vpack.c.b16 %v1336, %v1335
          %v1347 = vpack.c.b16 %v1338, %v1337
          %v1348 = vpack.c.b16 %v1340, %v1339
          %1357 = vmatprep.subr.bf16.mxu0 0
          %1358 = vmatpush1.bf16.msra.mxu0 %v1348
          %1359 = vmatprep.subr.bf16.mxu0 0
          %1360 = vmatpush1.bf16.msra.mxu0 %v1347
          %1361 = vmatprep.subr.bf16.mxu0 0
          %1362 = vmatpush1.bf16.msra.mxu0 %v1346
          %1363 = vmatprep.subr.bf16.mxu0 0
          %1364 = vmatpush1.bf16.msra.mxu0 %v1345
          %1365 = vmatprep.subr.bf16.mxu0 0
          %1366 = vmatpush1.bf16.msra.mxu0 %v1344
          %1367 = vmatprep.subr.bf16.mxu0 0
          %1368 = vmatpush1.bf16.msra.mxu0 %v1343
          %1369 = vmatprep.subr.bf16.mxu0 0
          %1370 = vmatpush1.bf16.msra.mxu0 %v1342
          %1371 = vmatprep.subr.bf16.mxu0 0
          %1372 = vmatpush1.bf16.msra.mxu0 %v1341
          %1373 = vmatprep.subr.bf16.mxu0 0
          %1374 = vmatpush2.bf16.msra.mxu0 0
          %1375 = vmatprep.subr.bf16.mxu0 0
          %1376 = vmatpush2.bf16.msra.mxu0 0
          %1377 = vmatprep.subr.bf16.mxu0 0
          %1378 = vmatpush2.bf16.msra.mxu0 0
          %1379 = vmatprep.subr.bf16.mxu0 0
          %1380 = vmatpush2.bf16.msra.mxu0 0
          %1381 = vmatprep.subr.bf16.mxu0 0
          %1382 = vmatpush2.bf16.msra.mxu0 0
          %1383 = vmatprep.subr.bf16.mxu0 0
          %1384 = vmatpush2.bf16.msra.mxu0 0
          %1385 = vmatprep.subr.bf16.mxu0 0
          %1386 = vmatpush2.bf16.msra.mxu0 0
          %1387 = vmatprep.subr.bf16.mxu0 0
          %1388 = vmatpush2.bf16.msra.mxu0 0
          %1389 = vmatprep.mubr.bf16.mxu0 0
          %1390 = vmatmul.mubr.bf16.gmra.mxu0 %v1038
          %v1391 = vpop.f32.mrf.mxu0
          %v1392 = vadd.f32 %v1307, %v1391
          %v1393 = vpop.f32.mrf.mxu0
          %v1394 = vpop.f32.mrf.mxu0
          %v1395 = vadd.f32 %v1307, %v1394
          %v1396 = vpop.f32.mrf.mxu0
          %1397 = vmatprep.mubr.bf16.mxu0 0
          %1398 = vmatmul.mubr.bf16.gmra.mxu0 %v1039
          %v1399 = vpop.f32.mrf.mxu0
          %v1400 = vadd.f32 %v1307, %v1399
          %v1401 = vpop.f32.mrf.mxu0
          %v1402 = vpop.f32.mrf.mxu0
          %v1403 = vadd.f32 %v1307, %v1402
          %v1404 = vpop.f32.mrf.mxu0
          %1405 = vmatprep.mubr.bf16.mxu0 0
          %1406 = vmatmul.mubr.bf16.gmra.mxu0 %v1040
          %v1407 = vpop.f32.mrf.mxu0
          %v1408 = vadd.f32 %v1307, %v1407
          %v1409 = vpop.f32.mrf.mxu0
          %v1410 = vpop.f32.mrf.mxu0
          %v1411 = vadd.f32 %v1307, %v1410
          %v1412 = vpop.f32.mrf.mxu0
          %1413 = vmatprep.mubr.bf16.mxu0 0
          %1414 = vmatmul.mubr.bf16.gmra.mxu0 %v1041
          %v1415 = vpop.f32.mrf.mxu0
          %v1416 = vadd.f32 %v1307, %v1415
          %v1417 = vpop.f32.mrf.mxu0
          %v1418 = vpop.f32.mrf.mxu0
          %v1419 = vadd.f32 %v1307, %v1418
          %v1420 = vpop.f32.mrf.mxu0
          %1421 = vmatprep.mubr.bf16.mxu0 0
          %1422 = vmatmul.mubr.bf16.gmra.mxu0 %v1042
          %v1423 = vpop.f32.mrf.mxu0
          %v1424 = vadd.f32 %v1307, %v1423
          %v1425 = vpop.f32.mrf.mxu0
          %v1426 = vpop.f32.mrf.mxu0
          %v1427 = vadd.f32 %v1307, %v1426
          %v1428 = vpop.f32.mrf.mxu0
          %1429 = vmatprep.mubr.bf16.mxu0 0
          %1430 = vmatmul.mubr.bf16.gmra.mxu0 %v1043
          %v1431 = vpop.f32.mrf.mxu0
          %v1432 = vadd.f32 %v1307, %v1431
          %v1433 = vpop.f32.mrf.mxu0
          %v1434 = vpop.f32.mrf.mxu0
          %v1435 = vadd.f32 %v1307, %v1434
          %v1436 = vpop.f32.mrf.mxu0
          %1437 = vmatprep.mubr.bf16.mxu0 0
          %1438 = vmatmul.mubr.bf16.gmra.mxu0 %v1044
          %v1439 = vpop.f32.mrf.mxu0
          %v1440 = vadd.f32 %v1307, %v1439
          %v1441 = vpop.f32.mrf.mxu0
          %v1442 = vpop.f32.mrf.mxu0
          %v1443 = vadd.f32 %v1307, %v1442
          %v1444 = vpop.f32.mrf.mxu0
          %1445 = vmatprep.mubr.bf16.mxu0 0
          %1446 = vmatmul.mubr.bf16.gmra.mxu0 %v1045
          %v1447 = vpop.f32.mrf.mxu0
          %v1448 = vadd.f32 %v1307, %v1447
          %v1449 = vpop.f32.mrf.mxu0
          %v1450 = vpop.f32.mrf.mxu0
          %v1451 = vadd.f32 %v1307, %v1450
          %v1452 = vpop.f32.mrf.mxu0
          %1453 = vdwg.mxu0
          %v1454 = vpack.c.bf16 %v1227, %v1224
          %v1455 = vpack.c.bf16 %v1235, %v1232
          %v1456 = vpack.c.bf16 %v1243, %v1240
          %v1457 = vpack.c.bf16 %v1251, %v1248
          %v1458 = vpack.c.bf16 %v1259, %v1256
          %v1459 = vpack.c.bf16 %v1267, %v1264
          %v1460 = vpack.c.bf16 %v1275, %v1272
          %v1461 = vpack.c.bf16 %v1283, %v1280
          %v1470 = vunpack.c.l.b16 %v1454
          %v1471 = vunpack.c.h.b16 %v1454
          %v1472 = vunpack.c.l.b16 %v1455
          %v1473 = vunpack.c.h.b16 %v1455
          %v1474 = vunpack.c.l.b16 %v1456
          %v1475 = vunpack.c.h.b16 %v1456
          %v1476 = vunpack.c.l.b16 %v1457
          %v1477 = vunpack.c.h.b16 %v1457
          %v1478 = vunpack.c.l.b16 %v1458
          %v1479 = vunpack.c.h.b16 %v1458
          %v1480 = vunpack.c.l.b16 %v1459
          %v1481 = vunpack.c.h.b16 %v1459
          %v1482 = vunpack.c.l.b16 %v1460
          %v1483 = vunpack.c.h.b16 %v1460
          %v1484 = vunpack.c.l.b16 %v1461
          %v1485 = vunpack.c.h.b16 %v1461
          %v1486 = vpack.c.b16 %v1470, %v1470
          %v1487 = vpack.c.b16 %v1471, %v1471
          %v1488 = vpack.c.b16 %v1472, %v1472
          %v1489 = vpack.c.b16 %v1473, %v1473
          %v1490 = vpack.c.b16 %v1474, %v1474
          %v1491 = vpack.c.b16 %v1475, %v1475
          %v1492 = vpack.c.b16 %v1476, %v1476
          %v1493 = vpack.c.b16 %v1477, %v1477
          %v1494 = vpack.c.b16 %v1478, %v1478
          %v1495 = vpack.c.b16 %v1479, %v1479
          %v1496 = vpack.c.b16 %v1480, %v1480
          %v1497 = vpack.c.b16 %v1481, %v1481
          %v1498 = vpack.c.b16 %v1482, %v1482
          %v1499 = vpack.c.b16 %v1483, %v1483
          %v1500 = vpack.c.b16 %v1484, %v1484
          %v1501 = vpack.c.b16 %v1485, %v1485
          %1518 = vst [vmem:[#allocation3] sm:$0xf] %v1486
          %1519 = vst [vmem:[#allocation3 + $0x4] sm:$0xf] %v1487
          %1520 = vst [vmem:[#allocation3 + $0x8] sm:$0xf] %v1488
          %1521 = vst [vmem:[#allocation3 + $0xc] sm:$0xf] %v1489
          %1522 = vst [vmem:[#allocation3 + $0x10] sm:$0xf] %v1490
          %1523 = vst [vmem:[#allocation3 + $0x14] sm:$0xf] %v1491
          %1524 = vst [vmem:[#allocation3 + $0x18] sm:$0xf] %v1492
          %1525 = vst [vmem:[#allocation3 + $0x1c] sm:$0xf] %v1493
          %1526 = vst [vmem:[#allocation3 + $0x20] sm:$0xf] %v1494
          %1527 = vst [vmem:[#allocation3 + $0x24] sm:$0xf] %v1495
          %1528 = vst [vmem:[#allocation3 + $0x28] sm:$0xf] %v1496
          %1529 = vst [vmem:[#allocation3 + $0x2c] sm:$0xf] %v1497
          %1530 = vst [vmem:[#allocation3 + $0x30] sm:$0xf] %v1498
          %1531 = vst [vmem:[#allocation3 + $0x34] sm:$0xf] %v1499
          %1532 = vst [vmem:[#allocation3 + $0x38] sm:$0xf] %v1500
          %1533 = vst [vmem:[#allocation3 + $0x3c] sm:$0xf] %v1501
          %v1534 = vpack.c.bf16 %v1395, %v1392
          %v1535 = vpack.c.bf16 %v1403, %v1400
          %v1536 = vpack.c.bf16 %v1411, %v1408
          %v1537 = vpack.c.bf16 %v1419, %v1416
          %v1538 = vpack.c.bf16 %v1427, %v1424
          %v1539 = vpack.c.bf16 %v1435, %v1432
          %v1540 = vpack.c.bf16 %v1443, %v1440
          %v1541 = vpack.c.bf16 %v1451, %v1448
          %v1550 = vunpack.c.l.b16 %v1534
          %v1551 = vunpack.c.h.b16 %v1534
          %v1552 = vunpack.c.l.b16 %v1535
          %v1553 = vunpack.c.h.b16 %v1535
          %v1554 = vunpack.c.l.b16 %v1536
          %v1555 = vunpack.c.h.b16 %v1536
          %v1556 = vunpack.c.l.b16 %v1537
          %v1557 = vunpack.c.h.b16 %v1537
          %v1558 = vunpack.c.l.b16 %v1538
          %v1559 = vunpack.c.h.b16 %v1538
          %v1560 = vunpack.c.l.b16 %v1539
          %v1561 = vunpack.c.h.b16 %v1539
          %v1562 = vunpack.c.l.b16 %v1540
          %v1563 = vunpack.c.h.b16 %v1540
          %v1564 = vunpack.c.l.b16 %v1541
          %v1565 = vunpack.c.h.b16 %v1541
          %v1566 = vpack.c.b16 %v1550, %v1550
          %v1567 = vpack.c.b16 %v1551, %v1551
          %v1568 = vpack.c.b16 %v1552, %v1552
          %v1569 = vpack.c.b16 %v1553, %v1553
          %v1570 = vpack.c.b16 %v1554, %v1554
          %v1571 = vpack.c.b16 %v1555, %v1555
          %v1572 = vpack.c.b16 %v1556, %v1556
          %v1573 = vpack.c.b16 %v1557, %v1557
          %v1574 = vpack.c.b16 %v1558, %v1558
          %v1575 = vpack.c.b16 %v1559, %v1559
          %v1576 = vpack.c.b16 %v1560, %v1560
          %v1577 = vpack.c.b16 %v1561, %v1561
          %v1578 = vpack.c.b16 %v1562, %v1562
          %v1579 = vpack.c.b16 %v1563, %v1563
          %v1580 = vpack.c.b16 %v1564, %v1564
          %v1581 = vpack.c.b16 %v1565, %v1565
          %1598 = vst [vmem:[#allocation4] sm:$0xf] %v1566
          %1599 = vst [vmem:[#allocation4 + $0x4] sm:$0xf] %v1567
          %1600 = vst [vmem:[#allocation4 + $0x8] sm:$0xf] %v1568
          %1601 = vst [vmem:[#allocation4 + $0xc] sm:$0xf] %v1569
          %1602 = vst [vmem:[#allocation4 + $0x10] sm:$0xf] %v1570
          %1603 = vst [vmem:[#allocation4 + $0x14] sm:$0xf] %v1571
          %1604 = vst [vmem:[#allocation4 + $0x18] sm:$0xf] %v1572
          %1605 = vst [vmem:[#allocation4 + $0x1c] sm:$0xf] %v1573
          %1606 = vst [vmem:[#allocation4 + $0x20] sm:$0xf] %v1574
          %1607 = vst [vmem:[#allocation4 + $0x24] sm:$0xf] %v1575
          %1608 = vst [vmem:[#allocation4 + $0x28] sm:$0xf] %v1576
          %1609 = vst [vmem:[#allocation4 + $0x2c] sm:$0xf] %v1577
          %1610 = vst [vmem:[#allocation4 + $0x30] sm:$0xf] %v1578
          %1611 = vst [vmem:[#allocation4 + $0x34] sm:$0xf] %v1579
          %1612 = vst [vmem:[#allocation4 + $0x38] sm:$0xf] %v1580
          %1613 = vst [vmem:[#allocation4 + $0x3c] sm:$0xf] %v1581
        $region124: #{tpu_custom_call.1} parent=87 // pred_fallthru
          _
        %s1614 = smul.u32 %s43, 128
        %s1615 = scalar_lea.vmem %s602, %s1614 [#allocation6]
        %v1616 = vld [vmem:[%s1615] sm:$0xff]
        %v1617 = vld [vmem:[%s1615 + $0x8] sm:$0xff]
        %v1618 = vld [vmem:[%s1615 + $0x10] sm:$0xff]
        %v1619 = vld [vmem:[%s1615 + $0x18] sm:$0xff]
        %v1620 = vld [vmem:[%s1615 + $0x20] sm:$0xff]
        %v1621 = vld [vmem:[%s1615 + $0x28] sm:$0xff]
        %v1622 = vld [vmem:[%s1615 + $0x30] sm:$0xff]
        %v1623 = vld [vmem:[%s1615 + $0x38] sm:$0xff]
        %v1624 = vld [vmem:[%s1615 + $0x40] sm:$0xff]
        %v1625 = vld [vmem:[%s1615 + $0x48] sm:$0xff]
        %v1626 = vld [vmem:[%s1615 + $0x50] sm:$0xff]
        %v1627 = vld [vmem:[%s1615 + $0x58] sm:$0xff]
        %v1628 = vld [vmem:[%s1615 + $0x60] sm:$0xff]
        %v1629 = vld [vmem:[%s1615 + $0x68] sm:$0xff]
        %v1630 = vld [vmem:[%s1615 + $0x70] sm:$0xff]
        %v1631 = vld [vmem:[%s1615 + $0x78] sm:$0xff]
        %s1632 = sshra.s32 %s1614, 3
        %s1633 = sand.u32 %s1614, 7
        %s1634 = smul.addr %s1632, 4
        %s1635 = scalar_lea.vmem [#allocation2], %s1634
        %v1636 = vld [vmem:[%s1635] sm:$0xf]
        %v1637 = vld [vmem:[%s1635 + $0x4] sm:$0xf]
        %v1638 = vld [vmem:[%s1635 + $0x8] sm:$0xf]
        %v1639 = vld [vmem:[%s1635 + $0xc] sm:$0xf]
        %v1640 = vld [vmem:[%s1635 + $0x10] sm:$0xf]
        %v1641 = vld [vmem:[%s1635 + $0x14] sm:$0xf]
        %v1642 = vld [vmem:[%s1635 + $0x18] sm:$0xf]
        %v1643 = vld [vmem:[%s1635 + $0x1c] sm:$0xf]
        %v1644 = vld [vmem:[%s1635 + $0x20] sm:$0xf]
        %v1645 = vld [vmem:[%s1635 + $0x24] sm:$0xf]
        %v1646 = vld [vmem:[%s1635 + $0x28] sm:$0xf]
        %v1647 = vld [vmem:[%s1635 + $0x2c] sm:$0xf]
        %v1648 = vld [vmem:[%s1635 + $0x30] sm:$0xf]
        %v1649 = vld [vmem:[%s1635 + $0x34] sm:$0xf]
        %v1650 = vld [vmem:[%s1635 + $0x38] sm:$0xf]
        %v1651 = vld [vmem:[%s1635 + $0x3c] sm:$0xf]
        %v1652 = vld [vmem:[#allocation11] sm:$0xf]
        %v1653 = vld [vmem:[#allocation11 + $0x4] sm:$0xf]
        %v1654 = vld [vmem:[#allocation11 + $0x8] sm:$0xf]
        %v1655 = vld [vmem:[#allocation11 + $0xc] sm:$0xf]
        %v1656 = vld [vmem:[#allocation11 + $0x10] sm:$0xf]
        %v1657 = vld [vmem:[#allocation11 + $0x14] sm:$0xf]
        %v1658 = vld [vmem:[#allocation11 + $0x18] sm:$0xf]
        %v1659 = vld [vmem:[#allocation11 + $0x1c] sm:$0xf]
        %v1660 = vld [vmem:[#allocation11 + $0x20] sm:$0xf]
        %v1661 = vld [vmem:[#allocation11 + $0x24] sm:$0xf]
        %v1662 = vld [vmem:[#allocation11 + $0x28] sm:$0xf]
        %v1663 = vld [vmem:[#allocation11 + $0x2c] sm:$0xf]
        %v1664 = vld [vmem:[#allocation11 + $0x30] sm:$0xf]
        %v1665 = vld [vmem:[#allocation11 + $0x34] sm:$0xf]
        %v1666 = vld [vmem:[#allocation11 + $0x38] sm:$0xf]
        %v1667 = vld [vmem:[#allocation11 + $0x3c] sm:$0xf]
        %v1668 = vld [vmem:[%s4] sm:$0x1]
        %v1670 = vlaneseq
        %v1671 = vshrl.u32 %v1670, 7
        %v1672 = vsub.s32 0, %v1671
        %v1673 = vrot.slane %v1668, %v1672
        %v1691 = vunpack.c.l.b16 %v1636
        %v1692 = vunpack.c.l.b16 %v1637
        %v1693 = vunpack.c.l.b16 %v1638
        %v1694 = vunpack.c.l.b16 %v1639
        %v1695 = vunpack.c.l.b16 %v1640
        %v1696 = vunpack.c.l.b16 %v1641
        %v1697 = vunpack.c.l.b16 %v1642
        %v1698 = vunpack.c.l.b16 %v1643
        %v1699 = vunpack.c.l.b16 %v1644
        %v1700 = vunpack.c.l.b16 %v1645
        %v1701 = vunpack.c.l.b16 %v1646
        %v1702 = vunpack.c.l.b16 %v1647
        %v1703 = vunpack.c.l.b16 %v1648
        %v1704 = vunpack.c.l.b16 %v1649
        %v1705 = vunpack.c.l.b16 %v1650
        %v1706 = vunpack.c.l.b16 %v1651
        %v1707 = vpack.c.b16 %v1692, %v1691
        %v1708 = vpack.c.b16 %v1694, %v1693
        %v1709 = vpack.c.b16 %v1696, %v1695
        %v1710 = vpack.c.b16 %v1698, %v1697
        %v1711 = vpack.c.b16 %v1700, %v1699
        %v1712 = vpack.c.b16 %v1702, %v1701
        %v1713 = vpack.c.b16 %v1704, %v1703
        %v1714 = vpack.c.b16 %v1706, %v1705
        %v1739 = vunpack.c.l.b16 %v1652
        %v1740 = vunpack.c.l.b16 %v1653
        %v1741 = vunpack.c.l.b16 %v1654
        %v1742 = vunpack.c.l.b16 %v1655
        %v1743 = vunpack.c.l.b16 %v1656
        %v1744 = vunpack.c.l.b16 %v1657
        %v1745 = vunpack.c.l.b16 %v1658
        %v1746 = vunpack.c.l.b16 %v1659
        %v1747 = vunpack.c.l.b16 %v1660
        %v1748 = vunpack.c.l.b16 %v1661
        %v1749 = vunpack.c.l.b16 %v1662
        %v1750 = vunpack.c.l.b16 %v1663
        %v1751 = vunpack.c.l.b16 %v1664
        %v1752 = vunpack.c.l.b16 %v1665
        %v1753 = vunpack.c.l.b16 %v1666
        %v1754 = vunpack.c.l.b16 %v1667
        %v1755 = vpack.c.b16 %v1740, %v1739
        %v1756 = vpack.c.b16 %v1742, %v1741
        %v1757 = vpack.c.b16 %v1744, %v1743
        %v1758 = vpack.c.b16 %v1746, %v1745
        %v1759 = vpack.c.b16 %v1748, %v1747
        %v1760 = vpack.c.b16 %v1750, %v1749
        %v1761 = vpack.c.b16 %v1752, %v1751
        %v1762 = vpack.c.b16 %v1754, %v1753
        %1771 = vmatprep.subr.bf16.mxu0 0
        %1772 = vmatpush1.bf16.msra.mxu0 %v1762
        %1773 = vmatprep.subr.bf16.mxu0 0
        %1774 = vmatpush1.bf16.msra.mxu0 %v1761
        %1775 = vmatprep.subr.bf16.mxu0 0
        %1776 = vmatpush1.bf16.msra.mxu0 %v1760
        %1777 = vmatprep.subr.bf16.mxu0 0
        %1778 = vmatpush1.bf16.msra.mxu0 %v1759
        %1779 = vmatprep.subr.bf16.mxu0 0
        %1780 = vmatpush1.bf16.msra.mxu0 %v1758
        %1781 = vmatprep.subr.bf16.mxu0 0
        %1782 = vmatpush1.bf16.msra.mxu0 %v1757
        %1783 = vmatprep.subr.bf16.mxu0 0
        %1784 = vmatpush1.bf16.msra.mxu0 %v1756
        %1785 = vmatprep.subr.bf16.mxu0 0
        %1786 = vmatpush1.bf16.msra.mxu0 %v1755
        %1787 = vmatprep.subr.bf16.mxu0 0
        %1788 = vmatpush2.bf16.msra.mxu0 0
        %1789 = vmatprep.subr.bf16.mxu0 0
        %1790 = vmatpush2.bf16.msra.mxu0 0
        %1791 = vmatprep.subr.bf16.mxu0 0
        %1792 = vmatpush2.bf16.msra.mxu0 0
        %1793 = vmatprep.subr.bf16.mxu0 0
        %1794 = vmatpush2.bf16.msra.mxu0 0
        %1795 = vmatprep.subr.bf16.mxu0 0
        %1796 = vmatpush2.bf16.msra.mxu0 0
        %1797 = vmatprep.subr.bf16.mxu0 0
        %1798 = vmatpush2.bf16.msra.mxu0 0
        %1799 = vmatprep.subr.bf16.mxu0 0
        %1800 = vmatpush2.bf16.msra.mxu0 0
        %1801 = vmatprep.subr.bf16.mxu0 0
        %1802 = vmatpush2.bf16.msra.mxu0 0
        %1803 = vmatprep.mubr.bf16.mxu0 0
        %1804 = vmatmul.mubr.bf16.gmra.mxu0 %v1707
        %v1805 = vpop.f32.mrf.mxu0
        %v1806 = vadd.f32 %v1673, %v1805
        %v1807 = vpop.f32.mrf.mxu0
        %v1808 = vpop.f32.mrf.mxu0
        %v1809 = vadd.f32 %v1673, %v1808
        %v1810 = vpop.f32.mrf.mxu0
        %1811 = vmatprep.mubr.bf16.mxu0 0
        %1812 = vmatmul.mubr.bf16.gmra.mxu0 %v1708
        %v1813 = vpop.f32.mrf.mxu0
        %v1814 = vadd.f32 %v1673, %v1813
        %v1815 = vpop.f32.mrf.mxu0
        %v1816 = vpop.f32.mrf.mxu0
        %v1817 = vadd.f32 %v1673, %v1816
        %v1818 = vpop.f32.mrf.mxu0
        %1819 = vmatprep.mubr.bf16.mxu0 0
        %1820 = vmatmul.mubr.bf16.gmra.mxu0 %v1709
        %v1821 = vpop.f32.mrf.mxu0
        %v1822 = vadd.f32 %v1673, %v1821
        %v1823 = vpop.f32.mrf.mxu0
        %v1824 = vpop.f32.mrf.mxu0
        %v1825 = vadd.f32 %v1673, %v1824
        %v1826 = vpop.f32.mrf.mxu0
        %1827 = vmatprep.mubr.bf16.mxu0 0
        %1828 = vmatmul.mubr.bf16.gmra.mxu0 %v1710
        %v1829 = vpop.f32.mrf.mxu0
        %v1830 = vadd.f32 %v1673, %v1829
        %v1831 = vpop.f32.mrf.mxu0
        %v1832 = vpop.f32.mrf.mxu0
        %v1833 = vadd.f32 %v1673, %v1832
        %v1834 = vpop.f32.mrf.mxu0
        %1835 = vmatprep.mubr.bf16.mxu0 0
        %1836 = vmatmul.mubr.bf16.gmra.mxu0 %v1711
        %v1837 = vpop.f32.mrf.mxu0
        %v1838 = vadd.f32 %v1673, %v1837
        %v1839 = vpop.f32.mrf.mxu0
        %v1840 = vpop.f32.mrf.mxu0
        %v1841 = vadd.f32 %v1673, %v1840
        %v1842 = vpop.f32.mrf.mxu0
        %1843 = vmatprep.mubr.bf16.mxu0 0
        %1844 = vmatmul.mubr.bf16.gmra.mxu0 %v1712
        %v1845 = vpop.f32.mrf.mxu0
        %v1846 = vadd.f32 %v1673, %v1845
        %v1847 = vpop.f32.mrf.mxu0
        %v1848 = vpop.f32.mrf.mxu0
        %v1849 = vadd.f32 %v1673, %v1848
        %v1850 = vpop.f32.mrf.mxu0
        %1851 = vmatprep.mubr.bf16.mxu0 0
        %1852 = vmatmul.mubr.bf16.gmra.mxu0 %v1713
        %v1853 = vpop.f32.mrf.mxu0
        %v1854 = vadd.f32 %v1673, %v1853
        %v1855 = vpop.f32.mrf.mxu0
        %v1856 = vpop.f32.mrf.mxu0
        %v1857 = vadd.f32 %v1673, %v1856
        %v1858 = vpop.f32.mrf.mxu0
        %1859 = vmatprep.mubr.bf16.mxu0 0
        %1860 = vmatmul.mubr.bf16.gmra.mxu0 %v1714
        %v1861 = vpop.f32.mrf.mxu0
        %v1862 = vadd.f32 %v1673, %v1861
        %v1863 = vpop.f32.mrf.mxu0
        %v1864 = vpop.f32.mrf.mxu0
        %v1865 = vadd.f32 %v1673, %v1864
        %v1866 = vpop.f32.mrf.mxu0
        %1867 = vdwg.mxu0
        %v1868 = vmul.f32 %v1806, 0.17677669
        %v1869 = vmul.f32 %v1809, 0.17677669
        %v1870 = vmul.f32 %v1814, 0.17677669
        %v1871 = vmul.f32 %v1817, 0.17677669
        %v1872 = vmul.f32 %v1822, 0.17677669
        %v1873 = vmul.f32 %v1825, 0.17677669
        %v1874 = vmul.f32 %v1830, 0.17677669
        %v1875 = vmul.f32 %v1833, 0.17677669
        %v1876 = vmul.f32 %v1838, 0.17677669
        %v1877 = vmul.f32 %v1841, 0.17677669
        %v1878 = vmul.f32 %v1846, 0.17677669
        %v1879 = vmul.f32 %v1849, 0.17677669
        %v1880 = vmul.f32 %v1854, 0.17677669
        %v1881 = vmul.f32 %v1857, 0.17677669
        %v1882 = vmul.f32 %v1862, 0.17677669
        %v1883 = vmul.f32 %v1865, 0.17677669
        %v1884 = vpack.c.bf16 %v1869, %v1868
        %v1885 = vpack.c.bf16 %v1871, %v1870
        %v1886 = vpack.c.bf16 %v1873, %v1872
        %v1887 = vpack.c.bf16 %v1875, %v1874
        %v1888 = vpack.c.bf16 %v1877, %v1876
        %v1889 = vpack.c.bf16 %v1879, %v1878
        %v1890 = vpack.c.bf16 %v1881, %v1880
        %v1891 = vpack.c.bf16 %v1883, %v1882
        %v1892 = vld [vmem:[#allocation3] sm:$0xf]
        %v1893 = vld [vmem:[#allocation3 + $0x4] sm:$0xf]
        %v1894 = vld [vmem:[#allocation3 + $0x8] sm:$0xf]
        %v1895 = vld [vmem:[#allocation3 + $0xc] sm:$0xf]
        %v1896 = vld [vmem:[#allocation3 + $0x10] sm:$0xf]
        %v1897 = vld [vmem:[#allocation3 + $0x14] sm:$0xf]
        %v1898 = vld [vmem:[#allocation3 + $0x18] sm:$0xf]
        %v1899 = vld [vmem:[#allocation3 + $0x1c] sm:$0xf]
        %v1900 = vld [vmem:[#allocation3 + $0x20] sm:$0xf]
        %v1901 = vld [vmem:[#allocation3 + $0x24] sm:$0xf]
        %v1902 = vld [vmem:[#allocation3 + $0x28] sm:$0xf]
        %v1903 = vld [vmem:[#allocation3 + $0x2c] sm:$0xf]
        %v1904 = vld [vmem:[#allocation3 + $0x30] sm:$0xf]
        %v1905 = vld [vmem:[#allocation3 + $0x34] sm:$0xf]
        %v1906 = vld [vmem:[#allocation3 + $0x38] sm:$0xf]
        %v1907 = vld [vmem:[#allocation3 + $0x3c] sm:$0xf]
        %v1908 = vld [vmem:[#allocation4] sm:$0xf]
        %v1909 = vld [vmem:[#allocation4 + $0x4] sm:$0xf]
        %v1910 = vld [vmem:[#allocation4 + $0x8] sm:$0xf]
        %v1911 = vld [vmem:[#allocation4 + $0xc] sm:$0xf]
        %v1912 = vld [vmem:[#allocation4 + $0x10] sm:$0xf]
        %v1913 = vld [vmem:[#allocation4 + $0x14] sm:$0xf]
        %v1914 = vld [vmem:[#allocation4 + $0x18] sm:$0xf]
        %v1915 = vld [vmem:[#allocation4 + $0x1c] sm:$0xf]
        %v1916 = vld [vmem:[#allocation4 + $0x20] sm:$0xf]
        %v1917 = vld [vmem:[#allocation4 + $0x24] sm:$0xf]
        %v1918 = vld [vmem:[#allocation4 + $0x28] sm:$0xf]
        %v1919 = vld [vmem:[#allocation4 + $0x2c] sm:$0xf]
        %v1920 = vld [vmem:[#allocation4 + $0x30] sm:$0xf]
        %v1921 = vld [vmem:[#allocation4 + $0x34] sm:$0xf]
        %v1922 = vld [vmem:[#allocation4 + $0x38] sm:$0xf]
        %v1923 = vld [vmem:[#allocation4 + $0x3c] sm:$0xf]
        %v1940 = vunpack.c.l.b16 %v1892
        %v1941 = vunpack.c.l.b16 %v1893
        %v1942 = vunpack.c.l.b16 %v1894
        %v1943 = vunpack.c.l.b16 %v1895
        %v1944 = vunpack.c.l.b16 %v1896
        %v1945 = vunpack.c.l.b16 %v1897
        %v1946 = vunpack.c.l.b16 %v1898
        %v1947 = vunpack.c.l.b16 %v1899
        %v1948 = vunpack.c.l.b16 %v1900
        %v1949 = vunpack.c.l.b16 %v1901
        %v1950 = vunpack.c.l.b16 %v1902
        %v1951 = vunpack.c.l.b16 %v1903
        %v1952 = vunpack.c.l.b16 %v1904
        %v1953 = vunpack.c.l.b16 %v1905
        %v1954 = vunpack.c.l.b16 %v1906
        %v1955 = vunpack.c.l.b16 %v1907
        %v1956 = vpack.c.b16 %v1941, %v1940
        %v1957 = vpack.c.b16 %v1943, %v1942
        %v1958 = vpack.c.b16 %v1945, %v1944
        %v1959 = vpack.c.b16 %v1947, %v1946
        %v1960 = vpack.c.b16 %v1949, %v1948
        %v1961 = vpack.c.b16 %v1951, %v1950
        %v1962 = vpack.c.b16 %v1953, %v1952
        %v1963 = vpack.c.b16 %v1955, %v1954
        %vm1964 = vcmask 261120
        %v1966 = vsel %vm1964, %v1884, 0
        %v1969 = vsel %vm1964, %v1885, 0
        %v1972 = vsel %vm1964, %v1886, 0
        %v1975 = vsel %vm1964, %v1887, 0
        %v1978 = vsel %vm1964, %v1888, 0
        %v1981 = vsel %vm1964, %v1889, 0
        %v1984 = vsel %vm1964, %v1890, 0
        %v1987 = vsel %vm1964, %v1891, 0
        %v1990 = vsel %vm1964, %v1956, 0
        %v1993 = vsel %vm1964, %v1957, 0
        %v1996 = vsel %vm1964, %v1958, 0
        %v1999 = vsel %vm1964, %v1959, 0
        %v2002 = vsel %vm1964, %v1960, 0
        %v2005 = vsel %vm1964, %v1961, 0
        %v2008 = vsel %vm1964, %v1962, 0
        %v2011 = vsel %vm1964, %v1963, 0
        %2013 = vmatprep.subr.bf16.mxu0 0
        %2014 = vmatpush1.bf16.xpose.msra.mxu0 %v2011
        %2015 = vmatprep.subr.bf16.mxu0 0
        %2016 = vmatpush1.bf16.xpose.msra.mxu0 %v2008
        %2017 = vmatprep.subr.bf16.mxu0 0
        %2018 = vmatpush1.bf16.xpose.msra.mxu0 %v2005
        %2019 = vmatprep.subr.bf16.mxu0 0
        %2020 = vmatpush1.bf16.xpose.msra.mxu0 %v2002
        %2021 = vmatprep.subr.bf16.mxu0 0
        %2022 = vmatpush1.bf16.xpose.msra.mxu0 %v1999
        %2023 = vmatprep.subr.bf16.mxu0 0
        %2024 = vmatpush1.bf16.xpose.msra.mxu0 %v1996
        %2025 = vmatprep.subr.bf16.mxu0 0
        %2026 = vmatpush1.bf16.xpose.msra.mxu0 %v1993
        %2027 = vmatprep.subr.bf16.mxu0 0
        %2028 = vmatpush1.bf16.xpose.msra.mxu0 %v1990
        %2029 = vmatprep.subr.bf16.mxu0 0
        %2030 = vmatpush2.bf16.xpose.msra.mxu0 0
        %2031 = vmatprep.subr.bf16.mxu0 0
        %2032 = vmatpush2.bf16.xpose.msra.mxu0 0
        %2033 = vmatprep.subr.bf16.mxu0 0
        %2034 = vmatpush2.bf16.xpose.msra.mxu0 0
        %2035 = vmatprep.subr.bf16.mxu0 0
        %2036 = vmatpush2.bf16.xpose.msra.mxu0 0
        %2037 = vmatprep.subr.bf16.mxu0 0
        %2038 = vmatpush2.bf16.xpose.msra.mxu0 0
        %2039 = vmatprep.subr.bf16.mxu0 0
        %2040 = vmatpush2.bf16.xpose.msra.mxu0 0
        %2041 = vmatprep.subr.bf16.mxu0 0
        %2042 = vmatpush2.bf16.xpose.msra.mxu0 0
        %2043 = vmatprep.subr.bf16.mxu0 0
        %2044 = vmatpush2.bf16.xpose.msra.mxu0 0
        %2045 = vmatprep.mubr.bf16.mxu0 0
        %2046 = vmatmul.mubr.bf16.gmra.mxu0 %v1966
        %v2047 = vpop.f32.mrf.mxu0
        %v2048 = vadd.f32 0.0, %v2047
        %v2049 = vpop.f32.mrf.mxu0
        %v2050 = vpop.f32.mrf.mxu0
        %v2051 = vadd.f32 0.0, %v2050
        %v2052 = vpop.f32.mrf.mxu0
        %2053 = vmatprep.mubr.bf16.mxu0 0
        %2054 = vmatmul.mubr.bf16.gmra.mxu0 %v1969
        %v2055 = vpop.f32.mrf.mxu0
        %v2056 = vadd.f32 0.0, %v2055
        %v2057 = vpop.f32.mrf.mxu0
        %v2058 = vpop.f32.mrf.mxu0
        %v2059 = vadd.f32 0.0, %v2058
        %v2060 = vpop.f32.mrf.mxu0
        %2061 = vmatprep.mubr.bf16.mxu0 0
        %2062 = vmatmul.mubr.bf16.gmra.mxu0 %v1972
        %v2063 = vpop.f32.mrf.mxu0
        %v2064 = vadd.f32 0.0, %v2063
        %v2065 = vpop.f32.mrf.mxu0
        %v2066 = vpop.f32.mrf.mxu0
        %v2067 = vadd.f32 0.0, %v2066
        %v2068 = vpop.f32.mrf.mxu0
        %2069 = vmatprep.mubr.bf16.mxu0 0
        %2070 = vmatmul.mubr.bf16.gmra.mxu0 %v1975
        %v2071 = vpop.f32.mrf.mxu0
        %v2072 = vadd.f32 0.0, %v2071
        %v2073 = vpop.f32.mrf.mxu0
        %v2074 = vpop.f32.mrf.mxu0
        %v2075 = vadd.f32 0.0, %v2074
        %v2076 = vpop.f32.mrf.mxu0
        %2077 = vmatprep.mubr.bf16.mxu0 0
        %2078 = vmatmul.mubr.bf16.gmra.mxu0 %v1978
        %v2079 = vpop.f32.mrf.mxu0
        %v2080 = vadd.f32 0.0, %v2079
        %v2081 = vpop.f32.mrf.mxu0
        %v2082 = vpop.f32.mrf.mxu0
        %v2083 = vadd.f32 0.0, %v2082
        %v2084 = vpop.f32.mrf.mxu0
        %2085 = vmatprep.mubr.bf16.mxu0 0
        %2086 = vmatmul.mubr.bf16.gmra.mxu0 %v1981
        %v2087 = vpop.f32.mrf.mxu0
        %v2088 = vadd.f32 0.0, %v2087
        %v2089 = vpop.f32.mrf.mxu0
        %v2090 = vpop.f32.mrf.mxu0
        %v2091 = vadd.f32 0.0, %v2090
        %v2092 = vpop.f32.mrf.mxu0
        %2093 = vmatprep.mubr.bf16.mxu0 0
        %2094 = vmatmul.mubr.bf16.gmra.mxu0 %v1984
        %v2095 = vpop.f32.mrf.mxu0
        %v2096 = vadd.f32 0.0, %v2095
        %v2097 = vpop.f32.mrf.mxu0
        %v2098 = vpop.f32.mrf.mxu0
        %v2099 = vadd.f32 0.0, %v2098
        %v2100 = vpop.f32.mrf.mxu0
        %2101 = vmatprep.mubr.bf16.mxu0 0
        %2102 = vmatmul.mubr.bf16.gmra.mxu0 %v1987
        %v2103 = vpop.f32.mrf.mxu0
        %v2104 = vadd.f32 0.0, %v2103
        %v2105 = vpop.f32.mrf.mxu0
        %v2106 = vpop.f32.mrf.mxu0
        %v2107 = vadd.f32 0.0, %v2106
        %v2108 = vpop.f32.mrf.mxu0
        %2109 = vdwg.mxu0
        %2110 = vmax.xlane.f32.xlu0 %v2048
        %v2111 = vpop.xlane.xlu0 %2110
        %2112 = vmax.xlane.f32.xlu0 %v2051
        %v2113 = vpop.xlane.xlu0 %2112
        %2114 = vmax.xlane.f32.xlu0 %v2056
        %v2115 = vpop.xlane.xlu0 %2114
        %2116 = vmax.xlane.f32.xlu0 %v2059
        %v2117 = vpop.xlane.xlu0 %2116
        %2118 = vmax.xlane.f32.xlu0 %v2064
        %v2119 = vpop.xlane.xlu0 %2118
        %2120 = vmax.xlane.f32.xlu0 %v2067
        %v2121 = vpop.xlane.xlu0 %2120
        %2122 = vmax.xlane.f32.xlu0 %v2072
        %v2123 = vpop.xlane.xlu0 %2122
        %2124 = vmax.xlane.f32.xlu0 %v2075
        %v2125 = vpop.xlane.xlu0 %2124
        %2126 = vmax.xlane.f32.xlu0 %v2080
        %v2127 = vpop.xlane.xlu0 %2126
        %2128 = vmax.xlane.f32.xlu0 %v2083
        %v2129 = vpop.xlane.xlu0 %2128
        %2130 = vmax.xlane.f32.xlu0 %v2088
        %v2131 = vpop.xlane.xlu0 %2130
        %2132 = vmax.xlane.f32.xlu0 %v2091
        %v2133 = vpop.xlane.xlu0 %2132
        %2134 = vmax.xlane.f32.xlu0 %v2096
        %v2135 = vpop.xlane.xlu0 %2134
        %2136 = vmax.xlane.f32.xlu0 %v2099
        %v2137 = vpop.xlane.xlu0 %2136
        %2138 = vmax.xlane.f32.xlu0 %v2104
        %v2139 = vpop.xlane.xlu0 %2138
        %2140 = vmax.xlane.f32.xlu0 %v2107
        %v2141 = vpop.xlane.xlu0 %2140
        %v2142 = vsub.f32 %v2048, %v2111
        %v2143 = vsub.f32 %v2051, %v2113
        %v2144 = vsub.f32 %v2056, %v2115
        %v2145 = vsub.f32 %v2059, %v2117
        %v2146 = vsub.f32 %v2064, %v2119
        %v2147 = vsub.f32 %v2067, %v2121
        %v2148 = vsub.f32 %v2072, %v2123
        %v2149 = vsub.f32 %v2075, %v2125
        %v2150 = vsub.f32 %v2080, %v2127
        %v2151 = vsub.f32 %v2083, %v2129
        %v2152 = vsub.f32 %v2088, %v2131
        %v2153 = vsub.f32 %v2091, %v2133
        %v2154 = vsub.f32 %v2096, %v2135
        %v2155 = vsub.f32 %v2099, %v2137
        %v2156 = vsub.f32 %v2104, %v2139
        %v2157 = vsub.f32 %v2107, %v2141
        %v2158 = vmul.f32 %v2142, 1.442695
        %v2159 = vpow.pop %v2158
        %v2160 = vmul.f32 %v2143, 1.442695
        %v2161 = vpow.pop %v2160
        %v2162 = vmul.f32 %v2144, 1.442695
        %v2163 = vpow.pop %v2162
        %v2164 = vmul.f32 %v2145, 1.442695
        %v2165 = vpow.pop %v2164
        %v2166 = vmul.f32 %v2146, 1.442695
        %v2167 = vpow.pop %v2166
        %v2168 = vmul.f32 %v2147, 1.442695
        %v2169 = vpow.pop %v2168
        %v2170 = vmul.f32 %v2148, 1.442695
        %v2171 = vpow.pop %v2170
        %v2172 = vmul.f32 %v2149, 1.442695
        %v2173 = vpow.pop %v2172
        %v2174 = vmul.f32 %v2150, 1.442695
        %v2175 = vpow.pop %v2174
        %v2176 = vmul.f32 %v2151, 1.442695
        %v2177 = vpow.pop %v2176
        %v2178 = vmul.f32 %v2152, 1.442695
        %v2179 = vpow.pop %v2178
        %v2180 = vmul.f32 %v2153, 1.442695
        %v2181 = vpow.pop %v2180
        %v2182 = vmul.f32 %v2154, 1.442695
        %v2183 = vpow.pop %v2182
        %v2184 = vmul.f32 %v2155, 1.442695
        %v2185 = vpow.pop %v2184
        %v2186 = vmul.f32 %v2156, 1.442695
        %v2187 = vpow.pop %v2186
        %v2188 = vmul.f32 %v2157, 1.442695
        %v2189 = vpow.pop %v2188
        %2190 = vadd.xlane.f32.xlu0 %v2159
        %v2191 = vpop.xlane.xlu0 %2190
        %2192 = vadd.xlane.f32.xlu0 %v2161
        %v2193 = vpop.xlane.xlu0 %2192
        %2194 = vadd.xlane.f32.xlu0 %v2163
        %v2195 = vpop.xlane.xlu0 %2194
        %2196 = vadd.xlane.f32.xlu0 %v2165
        %v2197 = vpop.xlane.xlu0 %2196
        %2198 = vadd.xlane.f32.xlu0 %v2167
        %v2199 = vpop.xlane.xlu0 %2198
        %2200 = vadd.xlane.f32.xlu0 %v2169
        %v2201 = vpop.xlane.xlu0 %2200
        %2202 = vadd.xlane.f32.xlu0 %v2171
        %v2203 = vpop.xlane.xlu0 %2202
        %2204 = vadd.xlane.f32.xlu0 %v2173
        %v2205 = vpop.xlane.xlu0 %2204
        %2206 = vadd.xlane.f32.xlu0 %v2175
        %v2207 = vpop.xlane.xlu0 %2206
        %2208 = vadd.xlane.f32.xlu0 %v2177
        %v2209 = vpop.xlane.xlu0 %2208
        %2210 = vadd.xlane.f32.xlu0 %v2179
        %v2211 = vpop.xlane.xlu0 %2210
        %2212 = vadd.xlane.f32.xlu0 %v2181
        %v2213 = vpop.xlane.xlu0 %2212
        %2214 = vadd.xlane.f32.xlu0 %v2183
        %v2215 = vpop.xlane.xlu0 %2214
        %2216 = vadd.xlane.f32.xlu0 %v2185
        %v2217 = vpop.xlane.xlu0 %2216
        %2218 = vadd.xlane.f32.xlu0 %v2187
        %v2219 = vpop.xlane.xlu0 %2218
        %2220 = vadd.xlane.f32.xlu0 %v2189
        %v2221 = vpop.xlane.xlu0 %2220
        %v2222 = vrcp.pop %v2191
        %v2223 = vrcp.pop %v2193
        %v2224 = vrcp.pop %v2195
        %v2225 = vrcp.pop %v2197
        %v2226 = vrcp.pop %v2199
        %v2227 = vrcp.pop %v2201
        %v2228 = vrcp.pop %v2203
        %v2229 = vrcp.pop %v2205
        %v2230 = vrcp.pop %v2207
        %v2231 = vrcp.pop %v2209
        %v2232 = vrcp.pop %v2211
        %v2233 = vrcp.pop %v2213
        %v2234 = vrcp.pop %v2215
        %v2235 = vrcp.pop %v2217
        %v2236 = vrcp.pop %v2219
        %v2237 = vrcp.pop %v2221
        %v2238 = vmul.f32 %v2159, %v2222
        %v2239 = vmul.f32 %v2161, %v2223
        %v2240 = vmul.f32 %v2163, %v2224
        %v2241 = vmul.f32 %v2165, %v2225
        %v2242 = vmul.f32 %v2167, %v2226
        %v2243 = vmul.f32 %v2169, %v2227
        %v2244 = vmul.f32 %v2171, %v2228
        %v2245 = vmul.f32 %v2173, %v2229
        %v2246 = vmul.f32 %v2175, %v2230
        %v2247 = vmul.f32 %v2177, %v2231
        %v2248 = vmul.f32 %v2179, %v2232
        %v2249 = vmul.f32 %v2181, %v2233
        %v2250 = vmul.f32 %v2183, %v2234
        %v2251 = vmul.f32 %v2185, %v2235
        %v2252 = vmul.f32 %v2187, %v2236
        %v2253 = vmul.f32 %v2189, %v2237
        %v2254 = vpack.c.bf16 %v2239, %v2238
        %v2255 = vpack.c.bf16 %v2241, %v2240
        %v2256 = vpack.c.bf16 %v2243, %v2242
        %v2257 = vpack.c.bf16 %v2245, %v2244
        %v2258 = vpack.c.bf16 %v2247, %v2246
        %v2259 = vpack.c.bf16 %v2249, %v2248
        %v2260 = vpack.c.bf16 %v2251, %v2250
        %v2261 = vpack.c.bf16 %v2253, %v2252
        %v2278 = vunpack.c.l.b16 %v1908
        %v2279 = vunpack.c.l.b16 %v1909
        %v2280 = vunpack.c.l.b16 %v1910
        %v2281 = vunpack.c.l.b16 %v1911
        %v2282 = vunpack.c.l.b16 %v1912
        %v2283 = vunpack.c.l.b16 %v1913
        %v2284 = vunpack.c.l.b16 %v1914
        %v2285 = vunpack.c.l.b16 %v1915
        %v2286 = vunpack.c.l.b16 %v1916
        %v2287 = vunpack.c.l.b16 %v1917
        %v2288 = vunpack.c.l.b16 %v1918
        %v2289 = vunpack.c.l.b16 %v1919
        %v2290 = vunpack.c.l.b16 %v1920
        %v2291 = vunpack.c.l.b16 %v1921
        %v2292 = vunpack.c.l.b16 %v1922
        %v2293 = vunpack.c.l.b16 %v1923
        %v2294 = vpack.c.b16 %v2279, %v2278
        %v2295 = vpack.c.b16 %v2281, %v2280
        %v2296 = vpack.c.b16 %v2283, %v2282
        %v2297 = vpack.c.b16 %v2285, %v2284
        %v2298 = vpack.c.b16 %v2287, %v2286
        %v2299 = vpack.c.b16 %v2289, %v2288
        %v2300 = vpack.c.b16 %v2291, %v2290
        %v2301 = vpack.c.b16 %v2293, %v2292
        %2310 = vmatprep.subr.bf16.mxu0 0
        %2311 = vmatpush1.bf16.msra.mxu0 %v2301
        %2312 = vmatprep.subr.bf16.mxu0 0
        %2313 = vmatpush1.bf16.msra.mxu0 %v2300
        %2314 = vmatprep.subr.bf16.mxu0 0
        %2315 = vmatpush1.bf16.msra.mxu0 %v2299
        %2316 = vmatprep.subr.bf16.mxu0 0
        %2317 = vmatpush1.bf16.msra.mxu0 %v2298
        %2318 = vmatprep.subr.bf16.mxu0 0
        %2319 = vmatpush1.bf16.msra.mxu0 %v2297
        %2320 = vmatprep.subr.bf16.mxu0 0
        %2321 = vmatpush1.bf16.msra.mxu0 %v2296
        %2322 = vmatprep.subr.bf16.mxu0 0
        %2323 = vmatpush1.bf16.msra.mxu0 %v2295
        %2324 = vmatprep.subr.bf16.mxu0 0
        %2325 = vmatpush1.bf16.msra.mxu0 %v2294
        %2326 = vmatprep.subr.bf16.mxu0 0
        %2327 = vmatpush2.bf16.msra.mxu0 0
        %2328 = vmatprep.subr.bf16.mxu0 0
        %2329 = vmatpush2.bf16.msra.mxu0 0
        %2330 = vmatprep.subr.bf16.mxu0 0
        %2331 = vmatpush2.bf16.msra.mxu0 0
        %2332 = vmatprep.subr.bf16.mxu0 0
        %2333 = vmatpush2.bf16.msra.mxu0 0
        %2334 = vmatprep.subr.bf16.mxu0 0
        %2335 = vmatpush2.bf16.msra.mxu0 0
        %2336 = vmatprep.subr.bf16.mxu0 0
        %2337 = vmatpush2.bf16.msra.mxu0 0
        %2338 = vmatprep.subr.bf16.mxu0 0
        %2339 = vmatpush2.bf16.msra.mxu0 0
        %2340 = vmatprep.subr.bf16.mxu0 0
        %2341 = vmatpush2.bf16.msra.mxu0 0
        %2342 = vmatprep.mubr.bf16.mxu0 0
        %2343 = vmatmul.mubr.bf16.gmra.mxu0 %v2254
        %v2344 = vpop.f32.mrf.mxu0
        %v2345 = vadd.f32 0.0, %v2344
        %v2346 = vpop.f32.mrf.mxu0
        %v2347 = vpop.f32.mrf.mxu0
        %v2348 = vadd.f32 0.0, %v2347
        %v2349 = vpop.f32.mrf.mxu0
        %2350 = vmatprep.mubr.bf16.mxu0 0
        %2351 = vmatmul.mubr.bf16.gmra.mxu0 %v2255
        %v2352 = vpop.f32.mrf.mxu0
        %v2353 = vadd.f32 0.0, %v2352
        %v2354 = vpop.f32.mrf.mxu0
        %v2355 = vpop.f32.mrf.mxu0
        %v2356 = vadd.f32 0.0, %v2355
        %v2357 = vpop.f32.mrf.mxu0
        %2358 = vmatprep.mubr.bf16.mxu0 0
        %2359 = vmatmul.mubr.bf16.gmra.mxu0 %v2256
        %v2360 = vpop.f32.mrf.mxu0
        %v2361 = vadd.f32 0.0, %v2360
        %v2362 = vpop.f32.mrf.mxu0
        %v2363 = vpop.f32.mrf.mxu0
        %v2364 = vadd.f32 0.0, %v2363
        %v2365 = vpop.f32.mrf.mxu0
        %2366 = vmatprep.mubr.bf16.mxu0 0
        %2367 = vmatmul.mubr.bf16.gmra.mxu0 %v2257
        %v2368 = vpop.f32.mrf.mxu0
        %v2369 = vadd.f32 0.0, %v2368
        %v2370 = vpop.f32.mrf.mxu0
        %v2371 = vpop.f32.mrf.mxu0
        %v2372 = vadd.f32 0.0, %v2371
        %v2373 = vpop.f32.mrf.mxu0
        %2374 = vmatprep.mubr.bf16.mxu0 0
        %2375 = vmatmul.mubr.bf16.gmra.mxu0 %v2258
        %v2376 = vpop.f32.mrf.mxu0
        %v2377 = vadd.f32 0.0, %v2376
        %v2378 = vpop.f32.mrf.mxu0
        %v2379 = vpop.f32.mrf.mxu0
        %v2380 = vadd.f32 0.0, %v2379
        %v2381 = vpop.f32.mrf.mxu0
        %2382 = vmatprep.mubr.bf16.mxu0 0
        %2383 = vmatmul.mubr.bf16.gmra.mxu0 %v2259
        %v2384 = vpop.f32.mrf.mxu0
        %v2385 = vadd.f32 0.0, %v2384
        %v2386 = vpop.f32.mrf.mxu0
        %v2387 = vpop.f32.mrf.mxu0
        %v2388 = vadd.f32 0.0, %v2387
        %v2389 = vpop.f32.mrf.mxu0
        %2390 = vmatprep.mubr.bf16.mxu0 0
        %2391 = vmatmul.mubr.bf16.gmra.mxu0 %v2260
        %v2392 = vpop.f32.mrf.mxu0
        %v2393 = vadd.f32 0.0, %v2392
        %v2394 = vpop.f32.mrf.mxu0
        %v2395 = vpop.f32.mrf.mxu0
        %v2396 = vadd.f32 0.0, %v2395
        %v2397 = vpop.f32.mrf.mxu0
        %2398 = vmatprep.mubr.bf16.mxu0 0
        %2399 = vmatmul.mubr.bf16.gmra.mxu0 %v2261
        %v2400 = vpop.f32.mrf.mxu0
        %v2401 = vadd.f32 0.0, %v2400
        %v2402 = vpop.f32.mrf.mxu0
        %v2403 = vpop.f32.mrf.mxu0
        %v2404 = vadd.f32 0.0, %v2403
        %v2405 = vpop.f32.mrf.mxu0
        %2406 = vdwg.mxu0
        %v2407 = vpack.c.bf16 %v2348, %v2345
        %v2408 = vpack.c.bf16 %v2356, %v2353
        %v2409 = vpack.c.bf16 %v2364, %v2361
        %v2410 = vpack.c.bf16 %v2372, %v2369
        %v2411 = vpack.c.bf16 %v2380, %v2377
        %v2412 = vpack.c.bf16 %v2388, %v2385
        %v2413 = vpack.c.bf16 %v2396, %v2393
        %v2414 = vpack.c.bf16 %v2404, %v2401
        %v2423 = vunpack.c.l.b16 %v2407
        %v2424 = vunpack.c.h.b16 %v2407
        %v2425 = vunpack.c.l.b16 %v2408
        %v2426 = vunpack.c.h.b16 %v2408
        %v2427 = vunpack.c.l.b16 %v2409
        %v2428 = vunpack.c.h.b16 %v2409
        %v2429 = vunpack.c.l.b16 %v2410
        %v2430 = vunpack.c.h.b16 %v2410
        %v2431 = vunpack.c.l.b16 %v2411
        %v2432 = vunpack.c.h.b16 %v2411
        %v2433 = vunpack.c.l.b16 %v2412
        %v2434 = vunpack.c.h.b16 %v2412
        %v2435 = vunpack.c.l.b16 %v2413
        %v2436 = vunpack.c.h.b16 %v2413
        %v2437 = vunpack.c.l.b16 %v2414
        %v2438 = vunpack.c.h.b16 %v2414
        %v2439 = vpack.c.b16 %v2423, %v2423
        %v2440 = vpack.c.b16 %v2424, %v2424
        %v2441 = vpack.c.b16 %v2425, %v2425
        %v2442 = vpack.c.b16 %v2426, %v2426
        %v2443 = vpack.c.b16 %v2427, %v2427
        %v2444 = vpack.c.b16 %v2428, %v2428
        %v2445 = vpack.c.b16 %v2429, %v2429
        %v2446 = vpack.c.b16 %v2430, %v2430
        %v2447 = vpack.c.b16 %v2431, %v2431
        %v2448 = vpack.c.b16 %v2432, %v2432
        %v2449 = vpack.c.b16 %v2433, %v2433
        %v2450 = vpack.c.b16 %v2434, %v2434
        %v2451 = vpack.c.b16 %v2435, %v2435
        %v2452 = vpack.c.b16 %v2436, %v2436
        %v2453 = vpack.c.b16 %v2437, %v2437
        %v2454 = vpack.c.b16 %v2438, %v2438
        %vm2471 = vcmask 257024
        %2472 = vst.msk [vmem:[#allocation5] sm:$0xf] %vm2471, %v2439
        %2473 = vst.msk [vmem:[#allocation5 + $0x4] sm:$0xf] %vm2471, %v2440
        %2474 = vst.msk [vmem:[#allocation5 + $0x8] sm:$0xf] %vm2471, %v2441
        %2475 = vst.msk [vmem:[#allocation5 + $0xc] sm:$0xf] %vm2471, %v2442
        %2476 = vst.msk [vmem:[#allocation5 + $0x10] sm:$0xf] %vm2471, %v2443
        %2477 = vst.msk [vmem:[#allocation5 + $0x14] sm:$0xf] %vm2471, %v2444
        %2478 = vst.msk [vmem:[#allocation5 + $0x18] sm:$0xf] %vm2471, %v2445
        %2479 = vst.msk [vmem:[#allocation5 + $0x1c] sm:$0xf] %vm2471, %v2446
        %2480 = vst.msk [vmem:[#allocation5 + $0x20] sm:$0xf] %vm2471, %v2447
        %2481 = vst.msk [vmem:[#allocation5 + $0x24] sm:$0xf] %vm2471, %v2448
        %2482 = vst.msk [vmem:[#allocation5 + $0x28] sm:$0xf] %vm2471, %v2449
        %2483 = vst.msk [vmem:[#allocation5 + $0x2c] sm:$0xf] %vm2471, %v2450
        %2484 = vst.msk [vmem:[#allocation5 + $0x30] sm:$0xf] %vm2471, %v2451
        %2485 = vst.msk [vmem:[#allocation5 + $0x34] sm:$0xf] %vm2471, %v2452
        %2486 = vst.msk [vmem:[#allocation5 + $0x38] sm:$0xf] %vm2471, %v2453
        %2487 = vst.msk [vmem:[#allocation5 + $0x3c] sm:$0xf] %vm2471, %v2454
        %v2488 = vld [vmem:[#allocation3] sm:$0xf]
        %v2489 = vld [vmem:[#allocation3 + $0x4] sm:$0xf]
        %v2490 = vld [vmem:[#allocation3 + $0x8] sm:$0xf]
        %v2491 = vld [vmem:[#allocation3 + $0xc] sm:$0xf]
        %v2492 = vld [vmem:[#allocation3 + $0x10] sm:$0xf]
        %v2493 = vld [vmem:[#allocation3 + $0x14] sm:$0xf]
        %v2494 = vld [vmem:[#allocation3 + $0x18] sm:$0xf]
        %v2495 = vld [vmem:[#allocation3 + $0x1c] sm:$0xf]
        %v2496 = vld [vmem:[#allocation3 + $0x20] sm:$0xf]
        %v2497 = vld [vmem:[#allocation3 + $0x24] sm:$0xf]
        %v2498 = vld [vmem:[#allocation3 + $0x28] sm:$0xf]
        %v2499 = vld [vmem:[#allocation3 + $0x2c] sm:$0xf]
        %v2500 = vld [vmem:[#allocation3 + $0x30] sm:$0xf]
        %v2501 = vld [vmem:[#allocation3 + $0x34] sm:$0xf]
        %v2502 = vld [vmem:[#allocation3 + $0x38] sm:$0xf]
        %v2503 = vld [vmem:[#allocation3 + $0x3c] sm:$0xf]
        %v2504 = vld [vmem:[#allocation4] sm:$0xf]
        %v2505 = vld [vmem:[#allocation4 + $0x4] sm:$0xf]
        %v2506 = vld [vmem:[#allocation4 + $0x8] sm:$0xf]
        %v2507 = vld [vmem:[#allocation4 + $0xc] sm:$0xf]
        %v2508 = vld [vmem:[#allocation4 + $0x10] sm:$0xf]
        %v2509 = vld [vmem:[#allocation4 + $0x14] sm:$0xf]
        %v2510 = vld [vmem:[#allocation4 + $0x18] sm:$0xf]
        %v2511 = vld [vmem:[#allocation4 + $0x1c] sm:$0xf]
        %v2512 = vld [vmem:[#allocation4 + $0x20] sm:$0xf]
        %v2513 = vld [vmem:[#allocation4 + $0x24] sm:$0xf]
        %v2514 = vld [vmem:[#allocation4 + $0x28] sm:$0xf]
        %v2515 = vld [vmem:[#allocation4 + $0x2c] sm:$0xf]
        %v2516 = vld [vmem:[#allocation4 + $0x30] sm:$0xf]
        %v2517 = vld [vmem:[#allocation4 + $0x34] sm:$0xf]
        %v2518 = vld [vmem:[#allocation4 + $0x38] sm:$0xf]
        %v2519 = vld [vmem:[#allocation4 + $0x3c] sm:$0xf]
        %2528 = vrot.lane.b32.xlu0 %v1884, 96
        %v2529 = vpop.permute.xlu0 %2528
        %2530 = vrot.lane.b32.xlu0 %v1885, 96
        %v2531 = vpop.permute.xlu0 %2530
        %2532 = vrot.lane.b32.xlu0 %v1886, 96
        %v2533 = vpop.permute.xlu0 %2532
        %2534 = vrot.lane.b32.xlu0 %v1887, 96
        %v2535 = vpop.permute.xlu0 %2534
        %2536 = vrot.lane.b32.xlu0 %v1888, 96
        %v2537 = vpop.permute.xlu0 %2536
        %2538 = vrot.lane.b32.xlu0 %v1889, 96
        %v2539 = vpop.permute.xlu0 %2538
        %2540 = vrot.lane.b32.xlu0 %v1890, 96
        %v2541 = vpop.permute.xlu0 %2540
        %2542 = vrot.lane.b32.xlu0 %v1891, 96
        %v2543 = vpop.permute.xlu0 %2542
        %v2560 = vunpack.c.l.b16 %v2488
        %v2561 = vunpack.c.l.b16 %v2489
        %v2562 = vunpack.c.l.b16 %v2490
        %v2563 = vunpack.c.l.b16 %v2491
        %v2564 = vunpack.c.l.b16 %v2492
        %v2565 = vunpack.c.l.b16 %v2493
        %v2566 = vunpack.c.l.b16 %v2494
        %v2567 = vunpack.c.l.b16 %v2495
        %v2568 = vunpack.c.l.b16 %v2496
        %v2569 = vunpack.c.l.b16 %v2497
        %v2570 = vunpack.c.l.b16 %v2498
        %v2571 = vunpack.c.l.b16 %v2499
        %v2572 = vunpack.c.l.b16 %v2500
        %v2573 = vunpack.c.l.b16 %v2501
        %v2574 = vunpack.c.l.b16 %v2502
        %v2575 = vunpack.c.l.b16 %v2503
        %v2576 = vpack.c.b16 %v2561, %v2560
        %v2577 = vpack.c.b16 %v2563, %v2562
        %v2578 = vpack.c.b16 %v2565, %v2564
        %v2579 = vpack.c.b16 %v2567, %v2566
        %v2580 = vpack.c.b16 %v2569, %v2568
        %v2581 = vpack.c.b16 %v2571, %v2570
        %v2582 = vpack.c.b16 %v2573, %v2572
        %v2583 = vpack.c.b16 %v2575, %v2574
        %2584 = vrot.lane.b32.xlu0 %v2576, 96
        %v2585 = vpop.permute.xlu0 %2584
        %2586 = vrot.lane.b32.xlu0 %v2577, 96
        %v2587 = vpop.permute.xlu0 %2586
        %2588 = vrot.lane.b32.xlu0 %v2578, 96
        %v2589 = vpop.permute.xlu0 %2588
        %2590 = vrot.lane.b32.xlu0 %v2579, 96
        %v2591 = vpop.permute.xlu0 %2590
        %2592 = vrot.lane.b32.xlu0 %v2580, 96
        %v2593 = vpop.permute.xlu0 %2592
        %2594 = vrot.lane.b32.xlu0 %v2581, 96
        %v2595 = vpop.permute.xlu0 %2594
        %2596 = vrot.lane.b32.xlu0 %v2582, 96
        %v2597 = vpop.permute.xlu0 %2596
        %2598 = vrot.lane.b32.xlu0 %v2583, 96
        %v2599 = vpop.permute.xlu0 %2598
        %v2601 = vsel %vm1964, %v2529, 0
        %v2604 = vsel %vm1964, %v2531, 0
        %v2607 = vsel %vm1964, %v2533, 0
        %v2610 = vsel %vm1964, %v2535, 0
        %v2613 = vsel %vm1964, %v2537, 0
        %v2616 = vsel %vm1964, %v2539, 0
        %v2619 = vsel %vm1964, %v2541, 0
        %v2622 = vsel %vm1964, %v2543, 0
        %v2625 = vsel %vm1964, %v2585, 0
        %v2628 = vsel %vm1964, %v2587, 0
        %v2631 = vsel %vm1964, %v2589, 0
        %v2634 = vsel %vm1964, %v2591, 0
        %v2637 = vsel %vm1964, %v2593, 0
        %v2640 = vsel %vm1964, %v2595, 0
        %v2643 = vsel %vm1964, %v2597, 0
        %v2646 = vsel %vm1964, %v2599, 0
        %2648 = vmatprep.subr.bf16.mxu0 0
        %2649 = vmatpush1.bf16.xpose.msra.mxu0 %v2646
        %2650 = vmatprep.subr.bf16.mxu0 0
        %2651 = vmatpush1.bf16.xpose.msra.mxu0 %v2643
        %2652 = vmatprep.subr.bf16.mxu0 0
        %2653 = vmatpush1.bf16.xpose.msra.mxu0 %v2640
        %2654 = vmatprep.subr.bf16.mxu0 0
        %2655 = vmatpush1.bf16.xpose.msra.mxu0 %v2637
        %2656 = vmatprep.subr.bf16.mxu0 0
        %2657 = vmatpush1.bf16.xpose.msra.mxu0 %v2634
        %2658 = vmatprep.subr.bf16.mxu0 0
        %2659 = vmatpush1.bf16.xpose.msra.mxu0 %v2631
        %2660 = vmatprep.subr.bf16.mxu0 0
        %2661 = vmatpush1.bf16.xpose.msra.mxu0 %v2628
        %2662 = vmatprep.subr.bf16.mxu0 0
        %2663 = vmatpush1.bf16.xpose.msra.mxu0 %v2625
        %2664 = vmatprep.subr.bf16.mxu0 0
        %2665 = vmatpush2.bf16.xpose.msra.mxu0 0
        %2666 = vmatprep.subr.bf16.mxu0 0
        %2667 = vmatpush2.bf16.xpose.msra.mxu0 0
        %2668 = vmatprep.subr.bf16.mxu0 0
        %2669 = vmatpush2.bf16.xpose.msra.mxu0 0
        %2670 = vmatprep.subr.bf16.mxu0 0
        %2671 = vmatpush2.bf16.xpose.msra.mxu0 0
        %2672 = vmatprep.subr.bf16.mxu0 0
        %2673 = vmatpush2.bf16.xpose.msra.mxu0 0
        %2674 = vmatprep.subr.bf16.mxu0 0
        %2675 = vmatpush2.bf16.xpose.msra.mxu0 0
        %2676 = vmatprep.subr.bf16.mxu0 0
        %2677 = vmatpush2.bf16.xpose.msra.mxu0 0
        %2678 = vmatprep.subr.bf16.mxu0 0
        %2679 = vmatpush2.bf16.xpose.msra.mxu0 0
        %2680 = vmatprep.mubr.bf16.mxu0 0
        %2681 = vmatmul.mubr.bf16.gmra.mxu0 %v2601
        %v2682 = vpop.f32.mrf.mxu0
        %v2683 = vadd.f32 0.0, %v2682
        %v2684 = vpop.f32.mrf.mxu0
        %v2685 = vpop.f32.mrf.mxu0
        %v2686 = vadd.f32 0.0, %v2685
        %v2687 = vpop.f32.mrf.mxu0
        %2688 = vmatprep.mubr.bf16.mxu0 0
        %2689 = vmatmul.mubr.bf16.gmra.mxu0 %v2604
        %v2690 = vpop.f32.mrf.mxu0
        %v2691 = vadd.f32 0.0, %v2690
        %v2692 = vpop.f32.mrf.mxu0
        %v2693 = vpop.f32.mrf.mxu0
        %v2694 = vadd.f32 0.0, %v2693
        %v2695 = vpop.f32.mrf.mxu0
        %2696 = vmatprep.mubr.bf16.mxu0 0
        %2697 = vmatmul.mubr.bf16.gmra.mxu0 %v2607
        %v2698 = vpop.f32.mrf.mxu0
        %v2699 = vadd.f32 0.0, %v2698
        %v2700 = vpop.f32.mrf.mxu0
        %v2701 = vpop.f32.mrf.mxu0
        %v2702 = vadd.f32 0.0, %v2701
        %v2703 = vpop.f32.mrf.mxu0
        %2704 = vmatprep.mubr.bf16.mxu0 0
        %2705 = vmatmul.mubr.bf16.gmra.mxu0 %v2610
        %v2706 = vpop.f32.mrf.mxu0
        %v2707 = vadd.f32 0.0, %v2706
        %v2708 = vpop.f32.mrf.mxu0
        %v2709 = vpop.f32.mrf.mxu0
        %v2710 = vadd.f32 0.0, %v2709
        %v2711 = vpop.f32.mrf.mxu0
        %2712 = vmatprep.mubr.bf16.mxu0 0
        %2713 = vmatmul.mubr.bf16.gmra.mxu0 %v2613
        %v2714 = vpop.f32.mrf.mxu0
        %v2715 = vadd.f32 0.0, %v2714
        %v2716 = vpop.f32.mrf.mxu0
        %v2717 = vpop.f32.mrf.mxu0
        %v2718 = vadd.f32 0.0, %v2717
        %v2719 = vpop.f32.mrf.mxu0
        %2720 = vmatprep.mubr.bf16.mxu0 0
        %2721 = vmatmul.mubr.bf16.gmra.mxu0 %v2616
        %v2722 = vpop.f32.mrf.mxu0
        %v2723 = vadd.f32 0.0, %v2722
        %v2724 = vpop.f32.mrf.mxu0
        %v2725 = vpop.f32.mrf.mxu0
        %v2726 = vadd.f32 0.0, %v2725
        %v2727 = vpop.f32.mrf.mxu0
        %2728 = vmatprep.mubr.bf16.mxu0 0
        %2729 = vmatmul.mubr.bf16.gmra.mxu0 %v2619
        %v2730 = vpop.f32.mrf.mxu0
        %v2731 = vadd.f32 0.0, %v2730
        %v2732 = vpop.f32.mrf.mxu0
        %v2733 = vpop.f32.mrf.mxu0
        %v2734 = vadd.f32 0.0, %v2733
        %v2735 = vpop.f32.mrf.mxu0
        %2736 = vmatprep.mubr.bf16.mxu0 0
        %2737 = vmatmul.mubr.bf16.gmra.mxu0 %v2622
        %v2738 = vpop.f32.mrf.mxu0
        %v2739 = vadd.f32 0.0, %v2738
        %v2740 = vpop.f32.mrf.mxu0
        %v2741 = vpop.f32.mrf.mxu0
        %v2742 = vadd.f32 0.0, %v2741
        %v2743 = vpop.f32.mrf.mxu0
        %2744 = vdwg.mxu0
        %2745 = vmax.xlane.f32.xlu0 %v2683
        %v2746 = vpop.xlane.xlu0 %2745
        %2747 = vmax.xlane.f32.xlu0 %v2686
        %v2748 = vpop.xlane.xlu0 %2747
        %2749 = vmax.xlane.f32.xlu0 %v2691
        %v2750 = vpop.xlane.xlu0 %2749
        %2751 = vmax.xlane.f32.xlu0 %v2694
        %v2752 = vpop.xlane.xlu0 %2751
        %2753 = vmax.xlane.f32.xlu0 %v2699
        %v2754 = vpop.xlane.xlu0 %2753
        %2755 = vmax.xlane.f32.xlu0 %v2702
        %v2756 = vpop.xlane.xlu0 %2755
        %2757 = vmax.xlane.f32.xlu0 %v2707
        %v2758 = vpop.xlane.xlu0 %2757
        %2759 = vmax.xlane.f32.xlu0 %v2710
        %v2760 = vpop.xlane.xlu0 %2759
        %2761 = vmax.xlane.f32.xlu0 %v2715
        %v2762 = vpop.xlane.xlu0 %2761
        %2763 = vmax.xlane.f32.xlu0 %v2718
        %v2764 = vpop.xlane.xlu0 %2763
        %2765 = vmax.xlane.f32.xlu0 %v2723
        %v2766 = vpop.xlane.xlu0 %2765
        %2767 = vmax.xlane.f32.xlu0 %v2726
        %v2768 = vpop.xlane.xlu0 %2767
        %2769 = vmax.xlane.f32.xlu0 %v2731
        %v2770 = vpop.xlane.xlu0 %2769
        %2771 = vmax.xlane.f32.xlu0 %v2734
        %v2772 = vpop.xlane.xlu0 %2771
        %2773 = vmax.xlane.f32.xlu0 %v2739
        %v2774 = vpop.xlane.xlu0 %2773
        %2775 = vmax.xlane.f32.xlu0 %v2742
        %v2776 = vpop.xlane.xlu0 %2775
        %v2777 = vsub.f32 %v2683, %v2746
        %v2778 = vsub.f32 %v2686, %v2748
        %v2779 = vsub.f32 %v2691, %v2750
        %v2780 = vsub.f32 %v2694, %v2752
        %v2781 = vsub.f32 %v2699, %v2754
        %v2782 = vsub.f32 %v2702, %v2756
        %v2783 = vsub.f32 %v2707, %v2758
        %v2784 = vsub.f32 %v2710, %v2760
        %v2785 = vsub.f32 %v2715, %v2762
        %v2786 = vsub.f32 %v2718, %v2764
        %v2787 = vsub.f32 %v2723, %v2766
        %v2788 = vsub.f32 %v2726, %v2768
        %v2789 = vsub.f32 %v2731, %v2770
        %v2790 = vsub.f32 %v2734, %v2772
        %v2791 = vsub.f32 %v2739, %v2774
        %v2792 = vsub.f32 %v2742, %v2776
        %v2793 = vmul.f32 %v2777, 1.442695
        %v2794 = vpow.pop %v2793
        %v2795 = vmul.f32 %v2778, 1.442695
        %v2796 = vpow.pop %v2795
        %v2797 = vmul.f32 %v2779, 1.442695
        %v2798 = vpow.pop %v2797
        %v2799 = vmul.f32 %v2780, 1.442695
        %v2800 = vpow.pop %v2799
        %v2801 = vmul.f32 %v2781, 1.442695
        %v2802 = vpow.pop %v2801
        %v2803 = vmul.f32 %v2782, 1.442695
        %v2804 = vpow.pop %v2803
        %v2805 = vmul.f32 %v2783, 1.442695
        %v2806 = vpow.pop %v2805
        %v2807 = vmul.f32 %v2784, 1.442695
        %v2808 = vpow.pop %v2807
        %v2809 = vmul.f32 %v2785, 1.442695
        %v2810 = vpow.pop %v2809
        %v2811 = vmul.f32 %v2786, 1.442695
        %v2812 = vpow.pop %v2811
        %v2813 = vmul.f32 %v2787, 1.442695
        %v2814 = vpow.pop %v2813
        %v2815 = vmul.f32 %v2788, 1.442695
        %v2816 = vpow.pop %v2815
        %v2817 = vmul.f32 %v2789, 1.442695
        %v2818 = vpow.pop %v2817
        %v2819 = vmul.f32 %v2790, 1.442695
        %v2820 = vpow.pop %v2819
        %v2821 = vmul.f32 %v2791, 1.442695
        %v2822 = vpow.pop %v2821
        %v2823 = vmul.f32 %v2792, 1.442695
        %v2824 = vpow.pop %v2823
        %2825 = vadd.xlane.f32.xlu0 %v2794
        %v2826 = vpop.xlane.xlu0 %2825
        %2827 = vadd.xlane.f32.xlu0 %v2796
        %v2828 = vpop.xlane.xlu0 %2827
        %2829 = vadd.xlane.f32.xlu0 %v2798
        %v2830 = vpop.xlane.xlu0 %2829
        %2831 = vadd.xlane.f32.xlu0 %v2800
        %v2832 = vpop.xlane.xlu0 %2831
        %2833 = vadd.xlane.f32.xlu0 %v2802
        %v2834 = vpop.xlane.xlu0 %2833
        %2835 = vadd.xlane.f32.xlu0 %v2804
        %v2836 = vpop.xlane.xlu0 %2835
        %2837 = vadd.xlane.f32.xlu0 %v2806
        %v2838 = vpop.xlane.xlu0 %2837
        %2839 = vadd.xlane.f32.xlu0 %v2808
        %v2840 = vpop.xlane.xlu0 %2839
        %2841 = vadd.xlane.f32.xlu0 %v2810
        %v2842 = vpop.xlane.xlu0 %2841
        %2843 = vadd.xlane.f32.xlu0 %v2812
        %v2844 = vpop.xlane.xlu0 %2843
        %2845 = vadd.xlane.f32.xlu0 %v2814
        %v2846 = vpop.xlane.xlu0 %2845
        %2847 = vadd.xlane.f32.xlu0 %v2816
        %v2848 = vpop.xlane.xlu0 %2847
        %2849 = vadd.xlane.f32.xlu0 %v2818
        %v2850 = vpop.xlane.xlu0 %2849
        %2851 = vadd.xlane.f32.xlu0 %v2820
        %v2852 = vpop.xlane.xlu0 %2851
        %2853 = vadd.xlane.f32.xlu0 %v2822
        %v2854 = vpop.xlane.xlu0 %2853
        %2855 = vadd.xlane.f32.xlu0 %v2824
        %v2856 = vpop.xlane.xlu0 %2855
        %v2857 = vrcp.pop %v2826
        %v2858 = vrcp.pop %v2828
        %v2859 = vrcp.pop %v2830
        %v2860 = vrcp.pop %v2832
        %v2861 = vrcp.pop %v2834
        %v2862 = vrcp.pop %v2836
        %v2863 = vrcp.pop %v2838
        %v2864 = vrcp.pop %v2840
        %v2865 = vrcp.pop %v2842
        %v2866 = vrcp.pop %v2844
        %v2867 = vrcp.pop %v2846
        %v2868 = vrcp.pop %v2848
        %v2869 = vrcp.pop %v2850
        %v2870 = vrcp.pop %v2852
        %v2871 = vrcp.pop %v2854
        %v2872 = vrcp.pop %v2856
        %v2873 = vmul.f32 %v2794, %v2857
        %v2874 = vmul.f32 %v2796, %v2858
        %v2875 = vmul.f32 %v2798, %v2859
        %v2876 = vmul.f32 %v2800, %v2860
        %v2877 = vmul.f32 %v2802, %v2861
        %v2878 = vmul.f32 %v2804, %v2862
        %v2879 = vmul.f32 %v2806, %v2863
        %v2880 = vmul.f32 %v2808, %v2864
        %v2881 = vmul.f32 %v2810, %v2865
        %v2882 = vmul.f32 %v2812, %v2866
        %v2883 = vmul.f32 %v2814, %v2867
        %v2884 = vmul.f32 %v2816, %v2868
        %v2885 = vmul.f32 %v2818, %v2869
        %v2886 = vmul.f32 %v2820, %v2870
        %v2887 = vmul.f32 %v2822, %v2871
        %v2888 = vmul.f32 %v2824, %v2872
        %v2889 = vpack.c.bf16 %v2874, %v2873
        %v2890 = vpack.c.bf16 %v2876, %v2875
        %v2891 = vpack.c.bf16 %v2878, %v2877
        %v2892 = vpack.c.bf16 %v2880, %v2879
        %v2893 = vpack.c.bf16 %v2882, %v2881
        %v2894 = vpack.c.bf16 %v2884, %v2883
        %v2895 = vpack.c.bf16 %v2886, %v2885
        %v2896 = vpack.c.bf16 %v2888, %v2887
        %v2913 = vunpack.c.l.b16 %v2504
        %v2914 = vunpack.c.l.b16 %v2505
        %v2915 = vunpack.c.l.b16 %v2506
        %v2916 = vunpack.c.l.b16 %v2507
        %v2917 = vunpack.c.l.b16 %v2508
        %v2918 = vunpack.c.l.b16 %v2509
        %v2919 = vunpack.c.l.b16 %v2510
        %v2920 = vunpack.c.l.b16 %v2511
        %v2921 = vunpack.c.l.b16 %v2512
        %v2922 = vunpack.c.l.b16 %v2513
        %v2923 = vunpack.c.l.b16 %v2514
        %v2924 = vunpack.c.l.b16 %v2515
        %v2925 = vunpack.c.l.b16 %v2516
        %v2926 = vunpack.c.l.b16 %v2517
        %v2927 = vunpack.c.l.b16 %v2518
        %v2928 = vunpack.c.l.b16 %v2519
        %v2929 = vpack.c.b16 %v2914, %v2913
        %v2930 = vpack.c.b16 %v2916, %v2915
        %v2931 = vpack.c.b16 %v2918, %v2917
        %v2932 = vpack.c.b16 %v2920, %v2919
        %v2933 = vpack.c.b16 %v2922, %v2921
        %v2934 = vpack.c.b16 %v2924, %v2923
        %v2935 = vpack.c.b16 %v2926, %v2925
        %v2936 = vpack.c.b16 %v2928, %v2927
        %2937 = vrot.lane.b32.xlu0 %v2929, 96
        %v2938 = vpop.permute.xlu0 %2937
        %2939 = vrot.lane.b32.xlu0 %v2930, 96
        %v2940 = vpop.permute.xlu0 %2939
        %2941 = vrot.lane.b32.xlu0 %v2931, 96
        %v2942 = vpop.permute.xlu0 %2941
        %2943 = vrot.lane.b32.xlu0 %v2932, 96
        %v2944 = vpop.permute.xlu0 %2943
        %2945 = vrot.lane.b32.xlu0 %v2933, 96
        %v2946 = vpop.permute.xlu0 %2945
        %2947 = vrot.lane.b32.xlu0 %v2934, 96
        %v2948 = vpop.permute.xlu0 %2947
        %2949 = vrot.lane.b32.xlu0 %v2935, 96
        %v2950 = vpop.permute.xlu0 %2949
        %2951 = vrot.lane.b32.xlu0 %v2936, 96
        %v2952 = vpop.permute.xlu0 %2951
        %2961 = vmatprep.subr.bf16.mxu0 0
        %2962 = vmatpush1.bf16.msra.mxu0 %v2952
        %2963 = vmatprep.subr.bf16.mxu0 0
        %2964 = vmatpush1.bf16.msra.mxu0 %v2950
        %2965 = vmatprep.subr.bf16.mxu0 0
        %2966 = vmatpush1.bf16.msra.mxu0 %v2948
        %2967 = vmatprep.subr.bf16.mxu0 0
        %2968 = vmatpush1.bf16.msra.mxu0 %v2946
        %2969 = vmatprep.subr.bf16.mxu0 0
        %2970 = vmatpush1.bf16.msra.mxu0 %v2944
        %2971 = vmatprep.subr.bf16.mxu0 0
        %2972 = vmatpush1.bf16.msra.mxu0 %v2942
        %2973 = vmatprep.subr.bf16.mxu0 0
        %2974 = vmatpush1.bf16.msra.mxu0 %v2940
        %2975 = vmatprep.subr.bf16.mxu0 0
        %2976 = vmatpush1.bf16.msra.mxu0 %v2938
        %2977 = vmatprep.subr.bf16.mxu0 0
        %2978 = vmatpush2.bf16.msra.mxu0 0
        %2979 = vmatprep.subr.bf16.mxu0 0
        %2980 = vmatpush2.bf16.msra.mxu0 0
        %2981 = vmatprep.subr.bf16.mxu0 0
        %2982 = vmatpush2.bf16.msra.mxu0 0
        %2983 = vmatprep.subr.bf16.mxu0 0
        %2984 = vmatpush2.bf16.msra.mxu0 0
        %2985 = vmatprep.subr.bf16.mxu0 0
        %2986 = vmatpush2.bf16.msra.mxu0 0
        %2987 = vmatprep.subr.bf16.mxu0 0
        %2988 = vmatpush2.bf16.msra.mxu0 0
        %2989 = vmatprep.subr.bf16.mxu0 0
        %2990 = vmatpush2.bf16.msra.mxu0 0
        %2991 = vmatprep.subr.bf16.mxu0 0
        %2992 = vmatpush2.bf16.msra.mxu0 0
        %2993 = vmatprep.mubr.bf16.mxu0 0
        %2994 = vmatmul.mubr.bf16.gmra.mxu0 %v2889
        %v2995 = vpop.f32.mrf.mxu0
        %v2996 = vadd.f32 0.0, %v2995
        %v2997 = vpop.f32.mrf.mxu0
        %v2998 = vpop.f32.mrf.mxu0
        %v2999 = vadd.f32 0.0, %v2998
        %v3000 = vpop.f32.mrf.mxu0
        %3001 = vmatprep.mubr.bf16.mxu0 0
        %3002 = vmatmul.mubr.bf16.gmra.mxu0 %v2890
        %v3003 = vpop.f32.mrf.mxu0
        %v3004 = vadd.f32 0.0, %v3003
        %v3005 = vpop.f32.mrf.mxu0
        %v3006 = vpop.f32.mrf.mxu0
        %v3007 = vadd.f32 0.0, %v3006
        %v3008 = vpop.f32.mrf.mxu0
        %3009 = vmatprep.mubr.bf16.mxu0 0
        %3010 = vmatmul.mubr.bf16.gmra.mxu0 %v2891
        %v3011 = vpop.f32.mrf.mxu0
        %v3012 = vadd.f32 0.0, %v3011
        %v3013 = vpop.f32.mrf.mxu0
        %v3014 = vpop.f32.mrf.mxu0
        %v3015 = vadd.f32 0.0, %v3014
        %v3016 = vpop.f32.mrf.mxu0
        %3017 = vmatprep.mubr.bf16.mxu0 0
        %3018 = vmatmul.mubr.bf16.gmra.mxu0 %v2892
        %v3019 = vpop.f32.mrf.mxu0
        %v3020 = vadd.f32 0.0, %v3019
        %v3021 = vpop.f32.mrf.mxu0
        %v3022 = vpop.f32.mrf.mxu0
        %v3023 = vadd.f32 0.0, %v3022
        %v3024 = vpop.f32.mrf.mxu0
        %3025 = vmatprep.mubr.bf16.mxu0 0
        %3026 = vmatmul.mubr.bf16.gmra.mxu0 %v2893
        %v3027 = vpop.f32.mrf.mxu0
        %v3028 = vadd.f32 0.0, %v3027
        %v3029 = vpop.f32.mrf.mxu0
        %v3030 = vpop.f32.mrf.mxu0
        %v3031 = vadd.f32 0.0, %v3030
        %v3032 = vpop.f32.mrf.mxu0
        %3033 = vmatprep.mubr.bf16.mxu0 0
        %3034 = vmatmul.mubr.bf16.gmra.mxu0 %v2894
        %v3035 = vpop.f32.mrf.mxu0
        %v3036 = vadd.f32 0.0, %v3035
        %v3037 = vpop.f32.mrf.mxu0
        %v3038 = vpop.f32.mrf.mxu0
        %v3039 = vadd.f32 0.0, %v3038
        %v3040 = vpop.f32.mrf.mxu0
        %3041 = vmatprep.mubr.bf16.mxu0 0
        %3042 = vmatmul.mubr.bf16.gmra.mxu0 %v2895
        %v3043 = vpop.f32.mrf.mxu0
        %v3044 = vadd.f32 0.0, %v3043
        %v3045 = vpop.f32.mrf.mxu0
        %v3046 = vpop.f32.mrf.mxu0
        %v3047 = vadd.f32 0.0, %v3046
        %v3048 = vpop.f32.mrf.mxu0
        %3049 = vmatprep.mubr.bf16.mxu0 0
        %3050 = vmatmul.mubr.bf16.gmra.mxu0 %v2896
        %v3051 = vpop.f32.mrf.mxu0
        %v3052 = vadd.f32 0.0, %v3051
        %v3053 = vpop.f32.mrf.mxu0
        %v3054 = vpop.f32.mrf.mxu0
        %v3055 = vadd.f32 0.0, %v3054
        %v3056 = vpop.f32.mrf.mxu0
        %3057 = vdwg.mxu0
        %v3058 = vpack.c.bf16 %v2999, %v2996
        %v3059 = vpack.c.bf16 %v3007, %v3004
        %v3060 = vpack.c.bf16 %v3015, %v3012
        %v3061 = vpack.c.bf16 %v3023, %v3020
        %v3062 = vpack.c.bf16 %v3031, %v3028
        %v3063 = vpack.c.bf16 %v3039, %v3036
        %v3064 = vpack.c.bf16 %v3047, %v3044
        %v3065 = vpack.c.bf16 %v3055, %v3052
        %v3074 = vunpack.c.l.b16 %v3058
        %v3075 = vunpack.c.h.b16 %v3058
        %v3076 = vunpack.c.l.b16 %v3059
        %v3077 = vunpack.c.h.b16 %v3059
        %v3078 = vunpack.c.l.b16 %v3060
        %v3079 = vunpack.c.h.b16 %v3060
        %v3080 = vunpack.c.l.b16 %v3061
        %v3081 = vunpack.c.h.b16 %v3061
        %v3082 = vunpack.c.l.b16 %v3062
        %v3083 = vunpack.c.h.b16 %v3062
        %v3084 = vunpack.c.l.b16 %v3063
        %v3085 = vunpack.c.h.b16 %v3063
        %v3086 = vunpack.c.l.b16 %v3064
        %v3087 = vunpack.c.h.b16 %v3064
        %v3088 = vunpack.c.l.b16 %v3065
        %v3089 = vunpack.c.h.b16 %v3065
        %v3090 = vpack.c.b16 %v3074, %v3074
        %v3091 = vpack.c.b16 %v3075, %v3075
        %v3092 = vpack.c.b16 %v3076, %v3076
        %v3093 = vpack.c.b16 %v3077, %v3077
        %v3094 = vpack.c.b16 %v3078, %v3078
        %v3095 = vpack.c.b16 %v3079, %v3079
        %v3096 = vpack.c.b16 %v3080, %v3080
        %v3097 = vpack.c.b16 %v3081, %v3081
        %v3098 = vpack.c.b16 %v3082, %v3082
        %v3099 = vpack.c.b16 %v3083, %v3083
        %v3100 = vpack.c.b16 %v3084, %v3084
        %v3101 = vpack.c.b16 %v3085, %v3085
        %v3102 = vpack.c.b16 %v3086, %v3086
        %v3103 = vpack.c.b16 %v3087, %v3087
        %v3104 = vpack.c.b16 %v3088, %v3088
        %v3105 = vpack.c.b16 %v3089, %v3089
        %3106 = vrot.lane.b32.xlu0 %v3090, 32
        %v3107 = vpop.permute.xlu0 %3106
        %3108 = vrot.lane.b32.xlu0 %v3091, 32
        %v3109 = vpop.permute.xlu0 %3108
        %3110 = vrot.lane.b32.xlu0 %v3092, 32
        %v3111 = vpop.permute.xlu0 %3110
        %3112 = vrot.lane.b32.xlu0 %v3093, 32
        %v3113 = vpop.permute.xlu0 %3112
        %3114 = vrot.lane.b32.xlu0 %v3094, 32
        %v3115 = vpop.permute.xlu0 %3114
        %3116 = vrot.lane.b32.xlu0 %v3095, 32
        %v3117 = vpop.permute.xlu0 %3116
        %3118 = vrot.lane.b32.xlu0 %v3096, 32
        %v3119 = vpop.permute.xlu0 %3118
        %3120 = vrot.lane.b32.xlu0 %v3097, 32
        %v3121 = vpop.permute.xlu0 %3120
        %3122 = vrot.lane.b32.xlu0 %v3098, 32
        %v3123 = vpop.permute.xlu0 %3122
        %3124 = vrot.lane.b32.xlu0 %v3099, 32
        %v3125 = vpop.permute.xlu0 %3124
        %3126 = vrot.lane.b32.xlu0 %v3100, 32
        %v3127 = vpop.permute.xlu0 %3126
        %3128 = vrot.lane.b32.xlu0 %v3101, 32
        %v3129 = vpop.permute.xlu0 %3128
        %3130 = vrot.lane.b32.xlu0 %v3102, 32
        %v3131 = vpop.permute.xlu0 %3130
        %3132 = vrot.lane.b32.xlu0 %v3103, 32
        %v3133 = vpop.permute.xlu0 %3132
        %3134 = vrot.lane.b32.xlu0 %v3104, 32
        %v3135 = vpop.permute.xlu0 %3134
        %3136 = vrot.lane.b32.xlu0 %v3105, 32
        %v3137 = vpop.permute.xlu0 %3136
        %vm3154 = vcmask 519424
        %3155 = vst.msk [vmem:[#allocation5] sm:$0xf] %vm3154, %v3107
        %3156 = vst.msk [vmem:[#allocation5 + $0x4] sm:$0xf] %vm3154, %v3109
        %3157 = vst.msk [vmem:[#allocation5 + $0x8] sm:$0xf] %vm3154, %v3111
        %3158 = vst.msk [vmem:[#allocation5 + $0xc] sm:$0xf] %vm3154, %v3113
        %3159 = vst.msk [vmem:[#allocation5 + $0x10] sm:$0xf] %vm3154, %v3115
        %3160 = vst.msk [vmem:[#allocation5 + $0x14] sm:$0xf] %vm3154, %v3117
        %3161 = vst.msk [vmem:[#allocation5 + $0x18] sm:$0xf] %vm3154, %v3119
        %3162 = vst.msk [vmem:[#allocation5 + $0x1c] sm:$0xf] %vm3154, %v3121
        %3163 = vst.msk [vmem:[#allocation5 + $0x20] sm:$0xf] %vm3154, %v3123
        %3164 = vst.msk [vmem:[#allocation5 + $0x24] sm:$0xf] %vm3154, %v3125
        %3165 = vst.msk [vmem:[#allocation5 + $0x28] sm:$0xf] %vm3154, %v3127
        %3166 = vst.msk [vmem:[#allocation5 + $0x2c] sm:$0xf] %vm3154, %v3129
        %3167 = vst.msk [vmem:[#allocation5 + $0x30] sm:$0xf] %vm3154, %v3131
        %3168 = vst.msk [vmem:[#allocation5 + $0x34] sm:$0xf] %vm3154, %v3133
        %3169 = vst.msk [vmem:[#allocation5 + $0x38] sm:$0xf] %vm3154, %v3135
        %3170 = vst.msk [vmem:[#allocation5 + $0x3c] sm:$0xf] %vm3154, %v3137
        %v3171 = vld [vmem:[#allocation3] sm:$0xf]
        %v3172 = vld [vmem:[#allocation3 + $0x4] sm:$0xf]
        %v3173 = vld [vmem:[#allocation3 + $0x8] sm:$0xf]
        %v3174 = vld [vmem:[#allocation3 + $0xc] sm:$0xf]
        %v3175 = vld [vmem:[#allocation3 + $0x10] sm:$0xf]
        %v3176 = vld [vmem:[#allocation3 + $0x14] sm:$0xf]
        %v3177 = vld [vmem:[#allocation3 + $0x18] sm:$0xf]
        %v3178 = vld [vmem:[#allocation3 + $0x1c] sm:$0xf]
        %v3179 = vld [vmem:[#allocation3 + $0x20] sm:$0xf]
        %v3180 = vld [vmem:[#allocation3 + $0x24] sm:$0xf]
        %v3181 = vld [vmem:[#allocation3 + $0x28] sm:$0xf]
        %v3182 = vld [vmem:[#allocation3 + $0x2c] sm:$0xf]
        %v3183 = vld [vmem:[#allocation3 + $0x30] sm:$0xf]
        %v3184 = vld [vmem:[#allocation3 + $0x34] sm:$0xf]
        %v3185 = vld [vmem:[#allocation3 + $0x38] sm:$0xf]
        %v3186 = vld [vmem:[#allocation3 + $0x3c] sm:$0xf]
        %v3187 = vld [vmem:[#allocation4] sm:$0xf]
        %v3188 = vld [vmem:[#allocation4 + $0x4] sm:$0xf]
        %v3189 = vld [vmem:[#allocation4 + $0x8] sm:$0xf]
        %v3190 = vld [vmem:[#allocation4 + $0xc] sm:$0xf]
        %v3191 = vld [vmem:[#allocation4 + $0x10] sm:$0xf]
        %v3192 = vld [vmem:[#allocation4 + $0x14] sm:$0xf]
        %v3193 = vld [vmem:[#allocation4 + $0x18] sm:$0xf]
        %v3194 = vld [vmem:[#allocation4 + $0x1c] sm:$0xf]
        %v3195 = vld [vmem:[#allocation4 + $0x20] sm:$0xf]
        %v3196 = vld [vmem:[#allocation4 + $0x24] sm:$0xf]
        %v3197 = vld [vmem:[#allocation4 + $0x28] sm:$0xf]
        %v3198 = vld [vmem:[#allocation4 + $0x2c] sm:$0xf]
        %v3199 = vld [vmem:[#allocation4 + $0x30] sm:$0xf]
        %v3200 = vld [vmem:[#allocation4 + $0x34] sm:$0xf]
        %v3201 = vld [vmem:[#allocation4 + $0x38] sm:$0xf]
        %v3202 = vld [vmem:[#allocation4 + $0x3c] sm:$0xf]
        %3203 = vrot.lane.b32.xlu0 %v1884, 64
        %v3204 = vpop.permute.xlu0 %3203
        %3205 = vrot.lane.b32.xlu0 %v1885, 64
        %v3206 = vpop.permute.xlu0 %3205
        %3207 = vrot.lane.b32.xlu0 %v1886, 64
        %v3208 = vpop.permute.xlu0 %3207
        %3209 = vrot.lane.b32.xlu0 %v1887, 64
        %v3210 = vpop.permute.xlu0 %3209
        %3211 = vrot.lane.b32.xlu0 %v1888, 64
        %v3212 = vpop.permute.xlu0 %3211
        %3213 = vrot.lane.b32.xlu0 %v1889, 64
        %v3214 = vpop.permute.xlu0 %3213
        %3215 = vrot.lane.b32.xlu0 %v1890, 64
        %v3216 = vpop.permute.xlu0 %3215
        %3217 = vrot.lane.b32.xlu0 %v1891, 64
        %v3218 = vpop.permute.xlu0 %3217
        %v3235 = vunpack.c.l.b16 %v3171
        %v3236 = vunpack.c.l.b16 %v3172
        %v3237 = vunpack.c.l.b16 %v3173
        %v3238 = vunpack.c.l.b16 %v3174
        %v3239 = vunpack.c.l.b16 %v3175
        %v3240 = vunpack.c.l.b16 %v3176
        %v3241 = vunpack.c.l.b16 %v3177
        %v3242 = vunpack.c.l.b16 %v3178
        %v3243 = vunpack.c.l.b16 %v3179
        %v3244 = vunpack.c.l.b16 %v3180
        %v3245 = vunpack.c.l.b16 %v3181
        %v3246 = vunpack.c.l.b16 %v3182
        %v3247 = vunpack.c.l.b16 %v3183
        %v3248 = vunpack.c.l.b16 %v3184
        %v3249 = vunpack.c.l.b16 %v3185
        %v3250 = vunpack.c.l.b16 %v3186
        %v3251 = vpack.c.b16 %v3236, %v3235
        %v3252 = vpack.c.b16 %v3238, %v3237
        %v3253 = vpack.c.b16 %v3240, %v3239
        %v3254 = vpack.c.b16 %v3242, %v3241
        %v3255 = vpack.c.b16 %v3244, %v3243
        %v3256 = vpack.c.b16 %v3246, %v3245
        %v3257 = vpack.c.b16 %v3248, %v3247
        %v3258 = vpack.c.b16 %v3250, %v3249
        %3259 = vrot.lane.b32.xlu0 %v3251, 64
        %v3260 = vpop.permute.xlu0 %3259
        %3261 = vrot.lane.b32.xlu0 %v3252, 64
        %v3262 = vpop.permute.xlu0 %3261
        %3263 = vrot.lane.b32.xlu0 %v3253, 64
        %v3264 = vpop.permute.xlu0 %3263
        %3265 = vrot.lane.b32.xlu0 %v3254, 64
        %v3266 = vpop.permute.xlu0 %3265
        %3267 = vrot.lane.b32.xlu0 %v3255, 64
        %v3268 = vpop.permute.xlu0 %3267
        %3269 = vrot.lane.b32.xlu0 %v3256, 64
        %v3270 = vpop.permute.xlu0 %3269
        %3271 = vrot.lane.b32.xlu0 %v3257, 64
        %v3272 = vpop.permute.xlu0 %3271
        %3273 = vrot.lane.b32.xlu0 %v3258, 64
        %v3274 = vpop.permute.xlu0 %3273
        %v3276 = vsel %vm1964, %v3204, 0
        %v3279 = vsel %vm1964, %v3206, 0
        %v3282 = vsel %vm1964, %v3208, 0
        %v3285 = vsel %vm1964, %v3210, 0
        %v3288 = vsel %vm1964, %v3212, 0
        %v3291 = vsel %vm1964, %v3214, 0
        %v3294 = vsel %vm1964, %v3216, 0
        %v3297 = vsel %vm1964, %v3218, 0
        %v3300 = vsel %vm1964, %v3260, 0
        %v3303 = vsel %vm1964, %v3262, 0
        %v3306 = vsel %vm1964, %v3264, 0
        %v3309 = vsel %vm1964, %v3266, 0
        %v3312 = vsel %vm1964, %v3268, 0
        %v3315 = vsel %vm1964, %v3270, 0
        %v3318 = vsel %vm1964, %v3272, 0
        %v3321 = vsel %vm1964, %v3274, 0
        %3323 = vmatprep.subr.bf16.mxu0 0
        %3324 = vmatpush1.bf16.xpose.msra.mxu0 %v3321
        %3325 = vmatprep.subr.bf16.mxu0 0
        %3326 = vmatpush1.bf16.xpose.msra.mxu0 %v3318
        %3327 = vmatprep.subr.bf16.mxu0 0
        %3328 = vmatpush1.bf16.xpose.msra.mxu0 %v3315
        %3329 = vmatprep.subr.bf16.mxu0 0
        %3330 = vmatpush1.bf16.xpose.msra.mxu0 %v3312
        %3331 = vmatprep.subr.bf16.mxu0 0
        %3332 = vmatpush1.bf16.xpose.msra.mxu0 %v3309
        %3333 = vmatprep.subr.bf16.mxu0 0
        %3334 = vmatpush1.bf16.xpose.msra.mxu0 %v3306
        %3335 = vmatprep.subr.bf16.mxu0 0
        %3336 = vmatpush1.bf16.xpose.msra.mxu0 %v3303
        %3337 = vmatprep.subr.bf16.mxu0 0
        %3338 = vmatpush1.bf16.xpose.msra.mxu0 %v3300
        %3339 = vmatprep.subr.bf16.mxu0 0
        %3340 = vmatpush2.bf16.xpose.msra.mxu0 0
        %3341 = vmatprep.subr.bf16.mxu0 0
        %3342 = vmatpush2.bf16.xpose.msra.mxu0 0
        %3343 = vmatprep.subr.bf16.mxu0 0
        %3344 = vmatpush2.bf16.xpose.msra.mxu0 0
        %3345 = vmatprep.subr.bf16.mxu0 0
        %3346 = vmatpush2.bf16.xpose.msra.mxu0 0
        %3347 = vmatprep.subr.bf16.mxu0 0
        %3348 = vmatpush2.bf16.xpose.msra.mxu0 0
        %3349 = vmatprep.subr.bf16.mxu0 0
        %3350 = vmatpush2.bf16.xpose.msra.mxu0 0
        %3351 = vmatprep.subr.bf16.mxu0 0
        %3352 = vmatpush2.bf16.xpose.msra.mxu0 0
        %3353 = vmatprep.subr.bf16.mxu0 0
        %3354 = vmatpush2.bf16.xpose.msra.mxu0 0
        %3355 = vmatprep.mubr.bf16.mxu0 0
        %3356 = vmatmul.mubr.bf16.gmra.mxu0 %v3276
        %v3357 = vpop.f32.mrf.mxu0
        %v3358 = vadd.f32 0.0, %v3357
        %v3359 = vpop.f32.mrf.mxu0
        %v3360 = vpop.f32.mrf.mxu0
        %v3361 = vadd.f32 0.0, %v3360
        %v3362 = vpop.f32.mrf.mxu0
        %3363 = vmatprep.mubr.bf16.mxu0 0
        %3364 = vmatmul.mubr.bf16.gmra.mxu0 %v3279
        %v3365 = vpop.f32.mrf.mxu0
        %v3366 = vadd.f32 0.0, %v3365
        %v3367 = vpop.f32.mrf.mxu0
        %v3368 = vpop.f32.mrf.mxu0
        %v3369 = vadd.f32 0.0, %v3368
        %v3370 = vpop.f32.mrf.mxu0
        %3371 = vmatprep.mubr.bf16.mxu0 0
        %3372 = vmatmul.mubr.bf16.gmra.mxu0 %v3282
        %v3373 = vpop.f32.mrf.mxu0
        %v3374 = vadd.f32 0.0, %v3373
        %v3375 = vpop.f32.mrf.mxu0
        %v3376 = vpop.f32.mrf.mxu0
        %v3377 = vadd.f32 0.0, %v3376
        %v3378 = vpop.f32.mrf.mxu0
        %3379 = vmatprep.mubr.bf16.mxu0 0
        %3380 = vmatmul.mubr.bf16.gmra.mxu0 %v3285
        %v3381 = vpop.f32.mrf.mxu0
        %v3382 = vadd.f32 0.0, %v3381
        %v3383 = vpop.f32.mrf.mxu0
        %v3384 = vpop.f32.mrf.mxu0
        %v3385 = vadd.f32 0.0, %v3384
        %v3386 = vpop.f32.mrf.mxu0
        %3387 = vmatprep.mubr.bf16.mxu0 0
        %3388 = vmatmul.mubr.bf16.gmra.mxu0 %v3288
        %v3389 = vpop.f32.mrf.mxu0
        %v3390 = vadd.f32 0.0, %v3389
        %v3391 = vpop.f32.mrf.mxu0
        %v3392 = vpop.f32.mrf.mxu0
        %v3393 = vadd.f32 0.0, %v3392
        %v3394 = vpop.f32.mrf.mxu0
        %3395 = vmatprep.mubr.bf16.mxu0 0
        %3396 = vmatmul.mubr.bf16.gmra.mxu0 %v3291
        %v3397 = vpop.f32.mrf.mxu0
        %v3398 = vadd.f32 0.0, %v3397
        %v3399 = vpop.f32.mrf.mxu0
        %v3400 = vpop.f32.mrf.mxu0
        %v3401 = vadd.f32 0.0, %v3400
        %v3402 = vpop.f32.mrf.mxu0
        %3403 = vmatprep.mubr.bf16.mxu0 0
        %3404 = vmatmul.mubr.bf16.gmra.mxu0 %v3294
        %v3405 = vpop.f32.mrf.mxu0
        %v3406 = vadd.f32 0.0, %v3405
        %v3407 = vpop.f32.mrf.mxu0
        %v3408 = vpop.f32.mrf.mxu0
        %v3409 = vadd.f32 0.0, %v3408
        %v3410 = vpop.f32.mrf.mxu0
        %3411 = vmatprep.mubr.bf16.mxu0 0
        %3412 = vmatmul.mubr.bf16.gmra.mxu0 %v3297
        %v3413 = vpop.f32.mrf.mxu0
        %v3414 = vadd.f32 0.0, %v3413
        %v3415 = vpop.f32.mrf.mxu0
        %v3416 = vpop.f32.mrf.mxu0
        %v3417 = vadd.f32 0.0, %v3416
        %v3418 = vpop.f32.mrf.mxu0
        %3419 = vdwg.mxu0
        %3420 = vmax.xlane.f32.xlu0 %v3358
        %v3421 = vpop.xlane.xlu0 %3420
        %3422 = vmax.xlane.f32.xlu0 %v3361
        %v3423 = vpop.xlane.xlu0 %3422
        %3424 = vmax.xlane.f32.xlu0 %v3366
        %v3425 = vpop.xlane.xlu0 %3424
        %3426 = vmax.xlane.f32.xlu0 %v3369
        %v3427 = vpop.xlane.xlu0 %3426
        %3428 = vmax.xlane.f32.xlu0 %v3374
        %v3429 = vpop.xlane.xlu0 %3428
        %3430 = vmax.xlane.f32.xlu0 %v3377
        %v3431 = vpop.xlane.xlu0 %3430
        %3432 = vmax.xlane.f32.xlu0 %v3382
        %v3433 = vpop.xlane.xlu0 %3432
        %3434 = vmax.xlane.f32.xlu0 %v3385
        %v3435 = vpop.xlane.xlu0 %3434
        %3436 = vmax.xlane.f32.xlu0 %v3390
        %v3437 = vpop.xlane.xlu0 %3436
        %3438 = vmax.xlane.f32.xlu0 %v3393
        %v3439 = vpop.xlane.xlu0 %3438
        %3440 = vmax.xlane.f32.xlu0 %v3398
        %v3441 = vpop.xlane.xlu0 %3440
        %3442 = vmax.xlane.f32.xlu0 %v3401
        %v3443 = vpop.xlane.xlu0 %3442
        %3444 = vmax.xlane.f32.xlu0 %v3406
        %v3445 = vpop.xlane.xlu0 %3444
        %3446 = vmax.xlane.f32.xlu0 %v3409
        %v3447 = vpop.xlane.xlu0 %3446
        %3448 = vmax.xlane.f32.xlu0 %v3414
        %v3449 = vpop.xlane.xlu0 %3448
        %3450 = vmax.xlane.f32.xlu0 %v3417
        %v3451 = vpop.xlane.xlu0 %3450
        %v3452 = vsub.f32 %v3358, %v3421
        %v3453 = vsub.f32 %v3361, %v3423
        %v3454 = vsub.f32 %v3366, %v3425
        %v3455 = vsub.f32 %v3369, %v3427
        %v3456 = vsub.f32 %v3374, %v3429
        %v3457 = vsub.f32 %v3377, %v3431
        %v3458 = vsub.f32 %v3382, %v3433
        %v3459 = vsub.f32 %v3385, %v3435
        %v3460 = vsub.f32 %v3390, %v3437
        %v3461 = vsub.f32 %v3393, %v3439
        %v3462 = vsub.f32 %v3398, %v3441
        %v3463 = vsub.f32 %v3401, %v3443
        %v3464 = vsub.f32 %v3406, %v3445
        %v3465 = vsub.f32 %v3409, %v3447
        %v3466 = vsub.f32 %v3414, %v3449
        %v3467 = vsub.f32 %v3417, %v3451
        %v3468 = vmul.f32 %v3452, 1.442695
        %v3469 = vpow.pop %v3468
        %v3470 = vmul.f32 %v3453, 1.442695
        %v3471 = vpow.pop %v3470
        %v3472 = vmul.f32 %v3454, 1.442695
        %v3473 = vpow.pop %v3472
        %v3474 = vmul.f32 %v3455, 1.442695
        %v3475 = vpow.pop %v3474
        %v3476 = vmul.f32 %v3456, 1.442695
        %v3477 = vpow.pop %v3476
        %v3478 = vmul.f32 %v3457, 1.442695
        %v3479 = vpow.pop %v3478
        %v3480 = vmul.f32 %v3458, 1.442695
        %v3481 = vpow.pop %v3480
        %v3482 = vmul.f32 %v3459, 1.442695
        %v3483 = vpow.pop %v3482
        %v3484 = vmul.f32 %v3460, 1.442695
        %v3485 = vpow.pop %v3484
        %v3486 = vmul.f32 %v3461, 1.442695
        %v3487 = vpow.pop %v3486
        %v3488 = vmul.f32 %v3462, 1.442695
        %v3489 = vpow.pop %v3488
        %v3490 = vmul.f32 %v3463, 1.442695
        %v3491 = vpow.pop %v3490
        %v3492 = vmul.f32 %v3464, 1.442695
        %v3493 = vpow.pop %v3492
        %v3494 = vmul.f32 %v3465, 1.442695
        %v3495 = vpow.pop %v3494
        %v3496 = vmul.f32 %v3466, 1.442695
        %v3497 = vpow.pop %v3496
        %v3498 = vmul.f32 %v3467, 1.442695
        %v3499 = vpow.pop %v3498
        %3500 = vadd.xlane.f32.xlu0 %v3469
        %v3501 = vpop.xlane.xlu0 %3500
        %3502 = vadd.xlane.f32.xlu0 %v3471
        %v3503 = vpop.xlane.xlu0 %3502
        %3504 = vadd.xlane.f32.xlu0 %v3473
        %v3505 = vpop.xlane.xlu0 %3504
        %3506 = vadd.xlane.f32.xlu0 %v3475
        %v3507 = vpop.xlane.xlu0 %3506
        %3508 = vadd.xlane.f32.xlu0 %v3477
        %v3509 = vpop.xlane.xlu0 %3508
        %3510 = vadd.xlane.f32.xlu0 %v3479
        %v3511 = vpop.xlane.xlu0 %3510
        %3512 = vadd.xlane.f32.xlu0 %v3481
        %v3513 = vpop.xlane.xlu0 %3512
        %3514 = vadd.xlane.f32.xlu0 %v3483
        %v3515 = vpop.xlane.xlu0 %3514
        %3516 = vadd.xlane.f32.xlu0 %v3485
        %v3517 = vpop.xlane.xlu0 %3516
        %3518 = vadd.xlane.f32.xlu0 %v3487
        %v3519 = vpop.xlane.xlu0 %3518
        %3520 = vadd.xlane.f32.xlu0 %v3489
        %v3521 = vpop.xlane.xlu0 %3520
        %3522 = vadd.xlane.f32.xlu0 %v3491
        %v3523 = vpop.xlane.xlu0 %3522
        %3524 = vadd.xlane.f32.xlu0 %v3493
        %v3525 = vpop.xlane.xlu0 %3524
        %3526 = vadd.xlane.f32.xlu0 %v3495
        %v3527 = vpop.xlane.xlu0 %3526
        %3528 = vadd.xlane.f32.xlu0 %v3497
        %v3529 = vpop.xlane.xlu0 %3528
        %3530 = vadd.xlane.f32.xlu0 %v3499
        %v3531 = vpop.xlane.xlu0 %3530
        %v3532 = vrcp.pop %v3501
        %v3533 = vrcp.pop %v3503
        %v3534 = vrcp.pop %v3505
        %v3535 = vrcp.pop %v3507
        %v3536 = vrcp.pop %v3509
        %v3537 = vrcp.pop %v3511
        %v3538 = vrcp.pop %v3513
        %v3539 = vrcp.pop %v3515
        %v3540 = vrcp.pop %v3517
        %v3541 = vrcp.pop %v3519
        %v3542 = vrcp.pop %v3521
        %v3543 = vrcp.pop %v3523
        %v3544 = vrcp.pop %v3525
        %v3545 = vrcp.pop %v3527
        %v3546 = vrcp.pop %v3529
        %v3547 = vrcp.pop %v3531
        %v3548 = vmul.f32 %v3469, %v3532
        %v3549 = vmul.f32 %v3471, %v3533
        %v3550 = vmul.f32 %v3473, %v3534
        %v3551 = vmul.f32 %v3475, %v3535
        %v3552 = vmul.f32 %v3477, %v3536
        %v3553 = vmul.f32 %v3479, %v3537
        %v3554 = vmul.f32 %v3481, %v3538
        %v3555 = vmul.f32 %v3483, %v3539
        %v3556 = vmul.f32 %v3485, %v3540
        %v3557 = vmul.f32 %v3487, %v3541
        %v3558 = vmul.f32 %v3489, %v3542
        %v3559 = vmul.f32 %v3491, %v3543
        %v3560 = vmul.f32 %v3493, %v3544
        %v3561 = vmul.f32 %v3495, %v3545
        %v3562 = vmul.f32 %v3497, %v3546
        %v3563 = vmul.f32 %v3499, %v3547
        %v3564 = vpack.c.bf16 %v3549, %v3548
        %v3565 = vpack.c.bf16 %v3551, %v3550
        %v3566 = vpack.c.bf16 %v3553, %v3552
        %v3567 = vpack.c.bf16 %v3555, %v3554
        %v3568 = vpack.c.bf16 %v3557, %v3556
        %v3569 = vpack.c.bf16 %v3559, %v3558
        %v3570 = vpack.c.bf16 %v3561, %v3560
        %v3571 = vpack.c.bf16 %v3563, %v3562
        %v3588 = vunpack.c.l.b16 %v3187
        %v3589 = vunpack.c.l.b16 %v3188
        %v3590 = vunpack.c.l.b16 %v3189
        %v3591 = vunpack.c.l.b16 %v3190
        %v3592 = vunpack.c.l.b16 %v3191
        %v3593 = vunpack.c.l.b16 %v3192
        %v3594 = vunpack.c.l.b16 %v3193
        %v3595 = vunpack.c.l.b16 %v3194
        %v3596 = vunpack.c.l.b16 %v3195
        %v3597 = vunpack.c.l.b16 %v3196
        %v3598 = vunpack.c.l.b16 %v3197
        %v3599 = vunpack.c.l.b16 %v3198
        %v3600 = vunpack.c.l.b16 %v3199
        %v3601 = vunpack.c.l.b16 %v3200
        %v3602 = vunpack.c.l.b16 %v3201
        %v3603 = vunpack.c.l.b16 %v3202
        %v3604 = vpack.c.b16 %v3589, %v3588
        %v3605 = vpack.c.b16 %v3591, %v3590
        %v3606 = vpack.c.b16 %v3593, %v3592
        %v3607 = vpack.c.b16 %v3595, %v3594
        %v3608 = vpack.c.b16 %v3597, %v3596
        %v3609 = vpack.c.b16 %v3599, %v3598
        %v3610 = vpack.c.b16 %v3601, %v3600
        %v3611 = vpack.c.b16 %v3603, %v3602
        %3612 = vrot.lane.b32.xlu0 %v3604, 64
        %v3613 = vpop.permute.xlu0 %3612
        %3614 = vrot.lane.b32.xlu0 %v3605, 64
        %v3615 = vpop.permute.xlu0 %3614
        %3616 = vrot.lane.b32.xlu0 %v3606, 64
        %v3617 = vpop.permute.xlu0 %3616
        %3618 = vrot.lane.b32.xlu0 %v3607, 64
        %v3619 = vpop.permute.xlu0 %3618
        %3620 = vrot.lane.b32.xlu0 %v3608, 64
        %v3621 = vpop.permute.xlu0 %3620
        %3622 = vrot.lane.b32.xlu0 %v3609, 64
        %v3623 = vpop.permute.xlu0 %3622
        %3624 = vrot.lane.b32.xlu0 %v3610, 64
        %v3625 = vpop.permute.xlu0 %3624
        %3626 = vrot.lane.b32.xlu0 %v3611, 64
        %v3627 = vpop.permute.xlu0 %3626
        %3636 = vmatprep.subr.bf16.mxu0 0
        %3637 = vmatpush1.bf16.msra.mxu0 %v3627
        %3638 = vmatprep.subr.bf16.mxu0 0
        %3639 = vmatpush1.bf16.msra.mxu0 %v3625
        %3640 = vmatprep.subr.bf16.mxu0 0
        %3641 = vmatpush1.bf16.msra.mxu0 %v3623
        %3642 = vmatprep.subr.bf16.mxu0 0
        %3643 = vmatpush1.bf16.msra.mxu0 %v3621
        %3644 = vmatprep.subr.bf16.mxu0 0
        %3645 = vmatpush1.bf16.msra.mxu0 %v3619
        %3646 = vmatprep.subr.bf16.mxu0 0
        %3647 = vmatpush1.bf16.msra.mxu0 %v3617
        %3648 = vmatprep.subr.bf16.mxu0 0
        %3649 = vmatpush1.bf16.msra.mxu0 %v3615
        %3650 = vmatprep.subr.bf16.mxu0 0
        %3651 = vmatpush1.bf16.msra.mxu0 %v3613
        %3652 = vmatprep.subr.bf16.mxu0 0
        %3653 = vmatpush2.bf16.msra.mxu0 0
        %3654 = vmatprep.subr.bf16.mxu0 0
        %3655 = vmatpush2.bf16.msra.mxu0 0
        %3656 = vmatprep.subr.bf16.mxu0 0
        %3657 = vmatpush2.bf16.msra.mxu0 0
        %3658 = vmatprep.subr.bf16.mxu0 0
        %3659 = vmatpush2.bf16.msra.mxu0 0
        %3660 = vmatprep.subr.bf16.mxu0 0
        %3661 = vmatpush2.bf16.msra.mxu0 0
        %3662 = vmatprep.subr.bf16.mxu0 0
        %3663 = vmatpush2.bf16.msra.mxu0 0
        %3664 = vmatprep.subr.bf16.mxu0 0
        %3665 = vmatpush2.bf16.msra.mxu0 0
        %3666 = vmatprep.subr.bf16.mxu0 0
        %3667 = vmatpush2.bf16.msra.mxu0 0
        %3668 = vmatprep.mubr.bf16.mxu0 0
        %3669 = vmatmul.mubr.bf16.gmra.mxu0 %v3564
        %v3670 = vpop.f32.mrf.mxu0
        %v3671 = vadd.f32 0.0, %v3670
        %v3672 = vpop.f32.mrf.mxu0
        %v3673 = vpop.f32.mrf.mxu0
        %v3674 = vadd.f32 0.0, %v3673
        %v3675 = vpop.f32.mrf.mxu0
        %3676 = vmatprep.mubr.bf16.mxu0 0
        %3677 = vmatmul.mubr.bf16.gmra.mxu0 %v3565
        %v3678 = vpop.f32.mrf.mxu0
        %v3679 = vadd.f32 0.0, %v3678
        %v3680 = vpop.f32.mrf.mxu0
        %v3681 = vpop.f32.mrf.mxu0
        %v3682 = vadd.f32 0.0, %v3681
        %v3683 = vpop.f32.mrf.mxu0
        %3684 = vmatprep.mubr.bf16.mxu0 0
        %3685 = vmatmul.mubr.bf16.gmra.mxu0 %v3566
        %v3686 = vpop.f32.mrf.mxu0
        %v3687 = vadd.f32 0.0, %v3686
        %v3688 = vpop.f32.mrf.mxu0
        %v3689 = vpop.f32.mrf.mxu0
        %v3690 = vadd.f32 0.0, %v3689
        %v3691 = vpop.f32.mrf.mxu0
        %3692 = vmatprep.mubr.bf16.mxu0 0
        %3693 = vmatmul.mubr.bf16.gmra.mxu0 %v3567
        %v3694 = vpop.f32.mrf.mxu0
        %v3695 = vadd.f32 0.0, %v3694
        %v3696 = vpop.f32.mrf.mxu0
        %v3697 = vpop.f32.mrf.mxu0
        %v3698 = vadd.f32 0.0, %v3697
        %v3699 = vpop.f32.mrf.mxu0
        %3700 = vmatprep.mubr.bf16.mxu0 0
        %3701 = vmatmul.mubr.bf16.gmra.mxu0 %v3568
        %v3702 = vpop.f32.mrf.mxu0
        %v3703 = vadd.f32 0.0, %v3702
        %v3704 = vpop.f32.mrf.mxu0
        %v3705 = vpop.f32.mrf.mxu0
        %v3706 = vadd.f32 0.0, %v3705
        %v3707 = vpop.f32.mrf.mxu0
        %3708 = vmatprep.mubr.bf16.mxu0 0
        %3709 = vmatmul.mubr.bf16.gmra.mxu0 %v3569
        %v3710 = vpop.f32.mrf.mxu0
        %v3711 = vadd.f32 0.0, %v3710
        %v3712 = vpop.f32.mrf.mxu0
        %v3713 = vpop.f32.mrf.mxu0
        %v3714 = vadd.f32 0.0, %v3713
        %v3715 = vpop.f32.mrf.mxu0
        %3716 = vmatprep.mubr.bf16.mxu0 0
        %3717 = vmatmul.mubr.bf16.gmra.mxu0 %v3570
        %v3718 = vpop.f32.mrf.mxu0
        %v3719 = vadd.f32 0.0, %v3718
        %v3720 = vpop.f32.mrf.mxu0
        %v3721 = vpop.f32.mrf.mxu0
        %v3722 = vadd.f32 0.0, %v3721
        %v3723 = vpop.f32.mrf.mxu0
        %3724 = vmatprep.mubr.bf16.mxu0 0
        %3725 = vmatmul.mubr.bf16.gmra.mxu0 %v3571
        %v3726 = vpop.f32.mrf.mxu0
        %v3727 = vadd.f32 0.0, %v3726
        %v3728 = vpop.f32.mrf.mxu0
        %v3729 = vpop.f32.mrf.mxu0
        %v3730 = vadd.f32 0.0, %v3729
        %v3731 = vpop.f32.mrf.mxu0
        %3732 = vdwg.mxu0
        %v3733 = vpack.c.bf16 %v3674, %v3671
        %v3734 = vpack.c.bf16 %v3682, %v3679
        %v3735 = vpack.c.bf16 %v3690, %v3687
        %v3736 = vpack.c.bf16 %v3698, %v3695
        %v3737 = vpack.c.bf16 %v3706, %v3703
        %v3738 = vpack.c.bf16 %v3714, %v3711
        %v3739 = vpack.c.bf16 %v3722, %v3719
        %v3740 = vpack.c.bf16 %v3730, %v3727
        %v3749 = vunpack.c.l.b16 %v3733
        %v3750 = vunpack.c.h.b16 %v3733
        %v3751 = vunpack.c.l.b16 %v3734
        %v3752 = vunpack.c.h.b16 %v3734
        %v3753 = vunpack.c.l.b16 %v3735
        %v3754 = vunpack.c.h.b16 %v3735
        %v3755 = vunpack.c.l.b16 %v3736
        %v3756 = vunpack.c.h.b16 %v3736
        %v3757 = vunpack.c.l.b16 %v3737
        %v3758 = vunpack.c.h.b16 %v3737
        %v3759 = vunpack.c.l.b16 %v3738
        %v3760 = vunpack.c.h.b16 %v3738
        %v3761 = vunpack.c.l.b16 %v3739
        %v3762 = vunpack.c.h.b16 %v3739
        %v3763 = vunpack.c.l.b16 %v3740
        %v3764 = vunpack.c.h.b16 %v3740
        %v3765 = vpack.c.b16 %v3749, %v3749
        %v3766 = vpack.c.b16 %v3750, %v3750
        %v3767 = vpack.c.b16 %v3751, %v3751
        %v3768 = vpack.c.b16 %v3752, %v3752
        %v3769 = vpack.c.b16 %v3753, %v3753
        %v3770 = vpack.c.b16 %v3754, %v3754
        %v3771 = vpack.c.b16 %v3755, %v3755
        %v3772 = vpack.c.b16 %v3756, %v3756
        %v3773 = vpack.c.b16 %v3757, %v3757
        %v3774 = vpack.c.b16 %v3758, %v3758
        %v3775 = vpack.c.b16 %v3759, %v3759
        %v3776 = vpack.c.b16 %v3760, %v3760
        %v3777 = vpack.c.b16 %v3761, %v3761
        %v3778 = vpack.c.b16 %v3762, %v3762
        %v3779 = vpack.c.b16 %v3763, %v3763
        %v3780 = vpack.c.b16 %v3764, %v3764
        %3781 = vrot.lane.b32.xlu0 %v3765, 64
        %v3782 = vpop.permute.xlu0 %3781
        %3783 = vrot.lane.b32.xlu0 %v3766, 64
        %v3784 = vpop.permute.xlu0 %3783
        %3785 = vrot.lane.b32.xlu0 %v3767, 64
        %v3786 = vpop.permute.xlu0 %3785
        %3787 = vrot.lane.b32.xlu0 %v3768, 64
        %v3788 = vpop.permute.xlu0 %3787
        %3789 = vrot.lane.b32.xlu0 %v3769, 64
        %v3790 = vpop.permute.xlu0 %3789
        %3791 = vrot.lane.b32.xlu0 %v3770, 64
        %v3792 = vpop.permute.xlu0 %3791
        %3793 = vrot.lane.b32.xlu0 %v3771, 64
        %v3794 = vpop.permute.xlu0 %3793
        %3795 = vrot.lane.b32.xlu0 %v3772, 64
        %v3796 = vpop.permute.xlu0 %3795
        %3797 = vrot.lane.b32.xlu0 %v3773, 64
        %v3798 = vpop.permute.xlu0 %3797
        %3799 = vrot.lane.b32.xlu0 %v3774, 64
        %v3800 = vpop.permute.xlu0 %3799
        %3801 = vrot.lane.b32.xlu0 %v3775, 64
        %v3802 = vpop.permute.xlu0 %3801
        %3803 = vrot.lane.b32.xlu0 %v3776, 64
        %v3804 = vpop.permute.xlu0 %3803
        %3805 = vrot.lane.b32.xlu0 %v3777, 64
        %v3806 = vpop.permute.xlu0 %3805
        %3807 = vrot.lane.b32.xlu0 %v3778, 64
        %v3808 = vpop.permute.xlu0 %3807
        %3809 = vrot.lane.b32.xlu0 %v3779, 64
        %v3810 = vpop.permute.xlu0 %3809
        %3811 = vrot.lane.b32.xlu0 %v3780, 64
        %v3812 = vpop.permute.xlu0 %3811
        %vm3829 = vcmask 781824
        %3830 = vst.msk [vmem:[#allocation5] sm:$0xf] %vm3829, %v3782
        %3831 = vst.msk [vmem:[#allocation5 + $0x4] sm:$0xf] %vm3829, %v3784
        %3832 = vst.msk [vmem:[#allocation5 + $0x8] sm:$0xf] %vm3829, %v3786
        %3833 = vst.msk [vmem:[#allocation5 + $0xc] sm:$0xf] %vm3829, %v3788
        %3834 = vst.msk [vmem:[#allocation5 + $0x10] sm:$0xf] %vm3829, %v3790
        %3835 = vst.msk [vmem:[#allocation5 + $0x14] sm:$0xf] %vm3829, %v3792
        %3836 = vst.msk [vmem:[#allocation5 + $0x18] sm:$0xf] %vm3829, %v3794
        %3837 = vst.msk [vmem:[#allocation5 + $0x1c] sm:$0xf] %vm3829, %v3796
        %3838 = vst.msk [vmem:[#allocation5 + $0x20] sm:$0xf] %vm3829, %v3798
        %3839 = vst.msk [vmem:[#allocation5 + $0x24] sm:$0xf] %vm3829, %v3800
        %3840 = vst.msk [vmem:[#allocation5 + $0x28] sm:$0xf] %vm3829, %v3802
        %3841 = vst.msk [vmem:[#allocation5 + $0x2c] sm:$0xf] %vm3829, %v3804
        %3842 = vst.msk [vmem:[#allocation5 + $0x30] sm:$0xf] %vm3829, %v3806
        %3843 = vst.msk [vmem:[#allocation5 + $0x34] sm:$0xf] %vm3829, %v3808
        %3844 = vst.msk [vmem:[#allocation5 + $0x38] sm:$0xf] %vm3829, %v3810
        %3845 = vst.msk [vmem:[#allocation5 + $0x3c] sm:$0xf] %vm3829, %v3812
        %v3846 = vld [vmem:[#allocation3] sm:$0xf]
        %v3847 = vld [vmem:[#allocation3 + $0x4] sm:$0xf]
        %v3848 = vld [vmem:[#allocation3 + $0x8] sm:$0xf]
        %v3849 = vld [vmem:[#allocation3 + $0xc] sm:$0xf]
        %v3850 = vld [vmem:[#allocation3 + $0x10] sm:$0xf]
        %v3851 = vld [vmem:[#allocation3 + $0x14] sm:$0xf]
        %v3852 = vld [vmem:[#allocation3 + $0x18] sm:$0xf]
        %v3853 = vld [vmem:[#allocation3 + $0x1c] sm:$0xf]
        %v3854 = vld [vmem:[#allocation3 + $0x20] sm:$0xf]
        %v3855 = vld [vmem:[#allocation3 + $0x24] sm:$0xf]
        %v3856 = vld [vmem:[#allocation3 + $0x28] sm:$0xf]
        %v3857 = vld [vmem:[#allocation3 + $0x2c] sm:$0xf]
        %v3858 = vld [vmem:[#allocation3 + $0x30] sm:$0xf]
        %v3859 = vld [vmem:[#allocation3 + $0x34] sm:$0xf]
        %v3860 = vld [vmem:[#allocation3 + $0x38] sm:$0xf]
        %v3861 = vld [vmem:[#allocation3 + $0x3c] sm:$0xf]
        %v3862 = vld [vmem:[#allocation4] sm:$0xf]
        %v3863 = vld [vmem:[#allocation4 + $0x4] sm:$0xf]
        %v3864 = vld [vmem:[#allocation4 + $0x8] sm:$0xf]
        %v3865 = vld [vmem:[#allocation4 + $0xc] sm:$0xf]
        %v3866 = vld [vmem:[#allocation4 + $0x10] sm:$0xf]
        %v3867 = vld [vmem:[#allocation4 + $0x14] sm:$0xf]
        %v3868 = vld [vmem:[#allocation4 + $0x18] sm:$0xf]
        %v3869 = vld [vmem:[#allocation4 + $0x1c] sm:$0xf]
        %v3870 = vld [vmem:[#allocation4 + $0x20] sm:$0xf]
        %v3871 = vld [vmem:[#allocation4 + $0x24] sm:$0xf]
        %v3872 = vld [vmem:[#allocation4 + $0x28] sm:$0xf]
        %v3873 = vld [vmem:[#allocation4 + $0x2c] sm:$0xf]
        %v3874 = vld [vmem:[#allocation4 + $0x30] sm:$0xf]
        %v3875 = vld [vmem:[#allocation4 + $0x34] sm:$0xf]
        %v3876 = vld [vmem:[#allocation4 + $0x38] sm:$0xf]
        %v3877 = vld [vmem:[#allocation4 + $0x3c] sm:$0xf]
        %3878 = vrot.lane.b32.xlu0 %v1884, 32
        %v3879 = vpop.permute.xlu0 %3878
        %3880 = vrot.lane.b32.xlu0 %v1885, 32
        %v3881 = vpop.permute.xlu0 %3880
        %3882 = vrot.lane.b32.xlu0 %v1886, 32
        %v3883 = vpop.permute.xlu0 %3882
        %3884 = vrot.lane.b32.xlu0 %v1887, 32
        %v3885 = vpop.permute.xlu0 %3884
        %3886 = vrot.lane.b32.xlu0 %v1888, 32
        %v3887 = vpop.permute.xlu0 %3886
        %3888 = vrot.lane.b32.xlu0 %v1889, 32
        %v3889 = vpop.permute.xlu0 %3888
        %3890 = vrot.lane.b32.xlu0 %v1890, 32
        %v3891 = vpop.permute.xlu0 %3890
        %3892 = vrot.lane.b32.xlu0 %v1891, 32
        %v3893 = vpop.permute.xlu0 %3892
        %v3910 = vunpack.c.l.b16 %v3846
        %v3911 = vunpack.c.l.b16 %v3847
        %v3912 = vunpack.c.l.b16 %v3848
        %v3913 = vunpack.c.l.b16 %v3849
        %v3914 = vunpack.c.l.b16 %v3850
        %v3915 = vunpack.c.l.b16 %v3851
        %v3916 = vunpack.c.l.b16 %v3852
        %v3917 = vunpack.c.l.b16 %v3853
        %v3918 = vunpack.c.l.b16 %v3854
        %v3919 = vunpack.c.l.b16 %v3855
        %v3920 = vunpack.c.l.b16 %v3856
        %v3921 = vunpack.c.l.b16 %v3857
        %v3922 = vunpack.c.l.b16 %v3858
        %v3923 = vunpack.c.l.b16 %v3859
        %v3924 = vunpack.c.l.b16 %v3860
        %v3925 = vunpack.c.l.b16 %v3861
        %v3926 = vpack.c.b16 %v3911, %v3910
        %v3927 = vpack.c.b16 %v3913, %v3912
        %v3928 = vpack.c.b16 %v3915, %v3914
        %v3929 = vpack.c.b16 %v3917, %v3916
        %v3930 = vpack.c.b16 %v3919, %v3918
        %v3931 = vpack.c.b16 %v3921, %v3920
        %v3932 = vpack.c.b16 %v3923, %v3922
        %v3933 = vpack.c.b16 %v3925, %v3924
        %3934 = vrot.lane.b32.xlu0 %v3926, 32
        %v3935 = vpop.permute.xlu0 %3934
        %3936 = vrot.lane.b32.xlu0 %v3927, 32
        %v3937 = vpop.permute.xlu0 %3936
        %3938 = vrot.lane.b32.xlu0 %v3928, 32
        %v3939 = vpop.permute.xlu0 %3938
        %3940 = vrot.lane.b32.xlu0 %v3929, 32
        %v3941 = vpop.permute.xlu0 %3940
        %3942 = vrot.lane.b32.xlu0 %v3930, 32
        %v3943 = vpop.permute.xlu0 %3942
        %3944 = vrot.lane.b32.xlu0 %v3931, 32
        %v3945 = vpop.permute.xlu0 %3944
        %3946 = vrot.lane.b32.xlu0 %v3932, 32
        %v3947 = vpop.permute.xlu0 %3946
        %3948 = vrot.lane.b32.xlu0 %v3933, 32
        %v3949 = vpop.permute.xlu0 %3948
        %v3951 = vsel %vm1964, %v3879, 0
        %v3954 = vsel %vm1964, %v3881, 0
        %v3957 = vsel %vm1964, %v3883, 0
        %v3960 = vsel %vm1964, %v3885, 0
        %v3963 = vsel %vm1964, %v3887, 0
        %v3966 = vsel %vm1964, %v3889, 0
        %v3969 = vsel %vm1964, %v3891, 0
        %v3972 = vsel %vm1964, %v3893, 0
        %v3975 = vsel %vm1964, %v3935, 0
        %v3978 = vsel %vm1964, %v3937, 0
        %v3981 = vsel %vm1964, %v3939, 0
        %v3984 = vsel %vm1964, %v3941, 0
        %v3987 = vsel %vm1964, %v3943, 0
        %v3990 = vsel %vm1964, %v3945, 0
        %v3993 = vsel %vm1964, %v3947, 0
        %v3996 = vsel %vm1964, %v3949, 0
        %3998 = vmatprep.subr.bf16.mxu0 0
        %3999 = vmatpush1.bf16.xpose.msra.mxu0 %v3996
        %4000 = vmatprep.subr.bf16.mxu0 0
        %4001 = vmatpush1.bf16.xpose.msra.mxu0 %v3993
        %4002 = vmatprep.subr.bf16.mxu0 0
        %4003 = vmatpush1.bf16.xpose.msra.mxu0 %v3990
        %4004 = vmatprep.subr.bf16.mxu0 0
        %4005 = vmatpush1.bf16.xpose.msra.mxu0 %v3987
        %4006 = vmatprep.subr.bf16.mxu0 0
        %4007 = vmatpush1.bf16.xpose.msra.mxu0 %v3984
        %4008 = vmatprep.subr.bf16.mxu0 0
        %4009 = vmatpush1.bf16.xpose.msra.mxu0 %v3981
        %4010 = vmatprep.subr.bf16.mxu0 0
        %4011 = vmatpush1.bf16.xpose.msra.mxu0 %v3978
        %4012 = vmatprep.subr.bf16.mxu0 0
        %4013 = vmatpush1.bf16.xpose.msra.mxu0 %v3975
        %4014 = vmatprep.subr.bf16.mxu0 0
        %4015 = vmatpush2.bf16.xpose.msra.mxu0 0
        %4016 = vmatprep.subr.bf16.mxu0 0
        %4017 = vmatpush2.bf16.xpose.msra.mxu0 0
        %4018 = vmatprep.subr.bf16.mxu0 0
        %4019 = vmatpush2.bf16.xpose.msra.mxu0 0
        %4020 = vmatprep.subr.bf16.mxu0 0
        %4021 = vmatpush2.bf16.xpose.msra.mxu0 0
        %4022 = vmatprep.subr.bf16.mxu0 0
        %4023 = vmatpush2.bf16.xpose.msra.mxu0 0
        %4024 = vmatprep.subr.bf16.mxu0 0
        %4025 = vmatpush2.bf16.xpose.msra.mxu0 0
        %4026 = vmatprep.subr.bf16.mxu0 0
        %4027 = vmatpush2.bf16.xpose.msra.mxu0 0
        %4028 = vmatprep.subr.bf16.mxu0 0
        %4029 = vmatpush2.bf16.xpose.msra.mxu0 0
        %4030 = vmatprep.mubr.bf16.mxu0 0
        %4031 = vmatmul.mubr.bf16.gmra.mxu0 %v3951
        %v4032 = vpop.f32.mrf.mxu0
        %v4033 = vadd.f32 0.0, %v4032
        %v4034 = vpop.f32.mrf.mxu0
        %v4035 = vpop.f32.mrf.mxu0
        %v4036 = vadd.f32 0.0, %v4035
        %v4037 = vpop.f32.mrf.mxu0
        %4038 = vmatprep.mubr.bf16.mxu0 0
        %4039 = vmatmul.mubr.bf16.gmra.mxu0 %v3954
        %v4040 = vpop.f32.mrf.mxu0
        %v4041 = vadd.f32 0.0, %v4040
        %v4042 = vpop.f32.mrf.mxu0
        %v4043 = vpop.f32.mrf.mxu0
        %v4044 = vadd.f32 0.0, %v4043
        %v4045 = vpop.f32.mrf.mxu0
        %4046 = vmatprep.mubr.bf16.mxu0 0
        %4047 = vmatmul.mubr.bf16.gmra.mxu0 %v3957
        %v4048 = vpop.f32.mrf.mxu0
        %v4049 = vadd.f32 0.0, %v4048
        %v4050 = vpop.f32.mrf.mxu0
        %v4051 = vpop.f32.mrf.mxu0
        %v4052 = vadd.f32 0.0, %v4051
        %v4053 = vpop.f32.mrf.mxu0
        %4054 = vmatprep.mubr.bf16.mxu0 0
        %4055 = vmatmul.mubr.bf16.gmra.mxu0 %v3960
        %v4056 = vpop.f32.mrf.mxu0
        %v4057 = vadd.f32 0.0, %v4056
        %v4058 = vpop.f32.mrf.mxu0
        %v4059 = vpop.f32.mrf.mxu0
        %v4060 = vadd.f32 0.0, %v4059
        %v4061 = vpop.f32.mrf.mxu0
        %4062 = vmatprep.mubr.bf16.mxu0 0
        %4063 = vmatmul.mubr.bf16.gmra.mxu0 %v3963
        %v4064 = vpop.f32.mrf.mxu0
        %v4065 = vadd.f32 0.0, %v4064
        %v4066 = vpop.f32.mrf.mxu0
        %v4067 = vpop.f32.mrf.mxu0
        %v4068 = vadd.f32 0.0, %v4067
        %v4069 = vpop.f32.mrf.mxu0
        %4070 = vmatprep.mubr.bf16.mxu0 0
        %4071 = vmatmul.mubr.bf16.gmra.mxu0 %v3966
        %v4072 = vpop.f32.mrf.mxu0
        %v4073 = vadd.f32 0.0, %v4072
        %v4074 = vpop.f32.mrf.mxu0
        %v4075 = vpop.f32.mrf.mxu0
        %v4076 = vadd.f32 0.0, %v4075
        %v4077 = vpop.f32.mrf.mxu0
        %4078 = vmatprep.mubr.bf16.mxu0 0
        %4079 = vmatmul.mubr.bf16.gmra.mxu0 %v3969
        %v4080 = vpop.f32.mrf.mxu0
        %v4081 = vadd.f32 0.0, %v4080
        %v4082 = vpop.f32.mrf.mxu0
        %v4083 = vpop.f32.mrf.mxu0
        %v4084 = vadd.f32 0.0, %v4083
        %v4085 = vpop.f32.mrf.mxu0
        %4086 = vmatprep.mubr.bf16.mxu0 0
        %4087 = vmatmul.mubr.bf16.gmra.mxu0 %v3972
        %v4088 = vpop.f32.mrf.mxu0
        %v4089 = vadd.f32 0.0, %v4088
        %v4090 = vpop.f32.mrf.mxu0
        %v4091 = vpop.f32.mrf.mxu0
        %v4092 = vadd.f32 0.0, %v4091
        %v4093 = vpop.f32.mrf.mxu0
        %4094 = vdwg.mxu0
        %4095 = vmax.xlane.f32.xlu0 %v4033
        %v4096 = vpop.xlane.xlu0 %4095
        %4097 = vmax.xlane.f32.xlu0 %v4036
        %v4098 = vpop.xlane.xlu0 %4097
        %4099 = vmax.xlane.f32.xlu0 %v4041
        %v4100 = vpop.xlane.xlu0 %4099
        %4101 = vmax.xlane.f32.xlu0 %v4044
        %v4102 = vpop.xlane.xlu0 %4101
        %4103 = vmax.xlane.f32.xlu0 %v4049
        %v4104 = vpop.xlane.xlu0 %4103
        %4105 = vmax.xlane.f32.xlu0 %v4052
        %v4106 = vpop.xlane.xlu0 %4105
        %4107 = vmax.xlane.f32.xlu0 %v4057
        %v4108 = vpop.xlane.xlu0 %4107
        %4109 = vmax.xlane.f32.xlu0 %v4060
        %v4110 = vpop.xlane.xlu0 %4109
        %4111 = vmax.xlane.f32.xlu0 %v4065
        %v4112 = vpop.xlane.xlu0 %4111
        %4113 = vmax.xlane.f32.xlu0 %v4068
        %v4114 = vpop.xlane.xlu0 %4113
        %4115 = vmax.xlane.f32.xlu0 %v4073
        %v4116 = vpop.xlane.xlu0 %4115
        %4117 = vmax.xlane.f32.xlu0 %v4076
        %v4118 = vpop.xlane.xlu0 %4117
        %4119 = vmax.xlane.f32.xlu0 %v4081
        %v4120 = vpop.xlane.xlu0 %4119
        %4121 = vmax.xlane.f32.xlu0 %v4084
        %v4122 = vpop.xlane.xlu0 %4121
        %4123 = vmax.xlane.f32.xlu0 %v4089
        %v4124 = vpop.xlane.xlu0 %4123
        %4125 = vmax.xlane.f32.xlu0 %v4092
        %v4126 = vpop.xlane.xlu0 %4125
        %v4127 = vsub.f32 %v4033, %v4096
        %v4128 = vsub.f32 %v4036, %v4098
        %v4129 = vsub.f32 %v4041, %v4100
        %v4130 = vsub.f32 %v4044, %v4102
        %v4131 = vsub.f32 %v4049, %v4104
        %v4132 = vsub.f32 %v4052, %v4106
        %v4133 = vsub.f32 %v4057, %v4108
        %v4134 = vsub.f32 %v4060, %v4110
        %v4135 = vsub.f32 %v4065, %v4112
        %v4136 = vsub.f32 %v4068, %v4114
        %v4137 = vsub.f32 %v4073, %v4116
        %v4138 = vsub.f32 %v4076, %v4118
        %v4139 = vsub.f32 %v4081, %v4120
        %v4140 = vsub.f32 %v4084, %v4122
        %v4141 = vsub.f32 %v4089, %v4124
        %v4142 = vsub.f32 %v4092, %v4126
        %v4143 = vmul.f32 %v4127, 1.442695
        %v4144 = vpow.pop %v4143
        %v4145 = vmul.f32 %v4128, 1.442695
        %v4146 = vpow.pop %v4145
        %v4147 = vmul.f32 %v4129, 1.442695
        %v4148 = vpow.pop %v4147
        %v4149 = vmul.f32 %v4130, 1.442695
        %v4150 = vpow.pop %v4149
        %v4151 = vmul.f32 %v4131, 1.442695
        %v4152 = vpow.pop %v4151
        %v4153 = vmul.f32 %v4132, 1.442695
        %v4154 = vpow.pop %v4153
        %v4155 = vmul.f32 %v4133, 1.442695
        %v4156 = vpow.pop %v4155
        %v4157 = vmul.f32 %v4134, 1.442695
        %v4158 = vpow.pop %v4157
        %v4159 = vmul.f32 %v4135, 1.442695
        %v4160 = vpow.pop %v4159
        %v4161 = vmul.f32 %v4136, 1.442695
        %v4162 = vpow.pop %v4161
        %v4163 = vmul.f32 %v4137, 1.442695
        %v4164 = vpow.pop %v4163
        %v4165 = vmul.f32 %v4138, 1.442695
        %v4166 = vpow.pop %v4165
        %v4167 = vmul.f32 %v4139, 1.442695
        %v4168 = vpow.pop %v4167
        %v4169 = vmul.f32 %v4140, 1.442695
        %v4170 = vpow.pop %v4169
        %v4171 = vmul.f32 %v4141, 1.442695
        %v4172 = vpow.pop %v4171
        %v4173 = vmul.f32 %v4142, 1.442695
        %v4174 = vpow.pop %v4173
        %4175 = vadd.xlane.f32.xlu0 %v4144
        %v4176 = vpop.xlane.xlu0 %4175
        %4177 = vadd.xlane.f32.xlu0 %v4146
        %v4178 = vpop.xlane.xlu0 %4177
        %4179 = vadd.xlane.f32.xlu0 %v4148
        %v4180 = vpop.xlane.xlu0 %4179
        %4181 = vadd.xlane.f32.xlu0 %v4150
        %v4182 = vpop.xlane.xlu0 %4181
        %4183 = vadd.xlane.f32.xlu0 %v4152
        %v4184 = vpop.xlane.xlu0 %4183
        %4185 = vadd.xlane.f32.xlu0 %v4154
        %v4186 = vpop.xlane.xlu0 %4185
        %4187 = vadd.xlane.f32.xlu0 %v4156
        %v4188 = vpop.xlane.xlu0 %4187
        %4189 = vadd.xlane.f32.xlu0 %v4158
        %v4190 = vpop.xlane.xlu0 %4189
        %4191 = vadd.xlane.f32.xlu0 %v4160
        %v4192 = vpop.xlane.xlu0 %4191
        %4193 = vadd.xlane.f32.xlu0 %v4162
        %v4194 = vpop.xlane.xlu0 %4193
        %4195 = vadd.xlane.f32.xlu0 %v4164
        %v4196 = vpop.xlane.xlu0 %4195
        %4197 = vadd.xlane.f32.xlu0 %v4166
        %v4198 = vpop.xlane.xlu0 %4197
        %4199 = vadd.xlane.f32.xlu0 %v4168
        %v4200 = vpop.xlane.xlu0 %4199
        %4201 = vadd.xlane.f32.xlu0 %v4170
        %v4202 = vpop.xlane.xlu0 %4201
        %4203 = vadd.xlane.f32.xlu0 %v4172
        %v4204 = vpop.xlane.xlu0 %4203
        %4205 = vadd.xlane.f32.xlu0 %v4174
        %v4206 = vpop.xlane.xlu0 %4205
        %v4207 = vrcp.pop %v4176
        %v4208 = vrcp.pop %v4178
        %v4209 = vrcp.pop %v4180
        %v4210 = vrcp.pop %v4182
        %v4211 = vrcp.pop %v4184
        %v4212 = vrcp.pop %v4186
        %v4213 = vrcp.pop %v4188
        %v4214 = vrcp.pop %v4190
        %v4215 = vrcp.pop %v4192
        %v4216 = vrcp.pop %v4194
        %v4217 = vrcp.pop %v4196
        %v4218 = vrcp.pop %v4198
        %v4219 = vrcp.pop %v4200
        %v4220 = vrcp.pop %v4202
        %v4221 = vrcp.pop %v4204
        %v4222 = vrcp.pop %v4206
        %v4223 = vmul.f32 %v4144, %v4207
        %v4224 = vmul.f32 %v4146, %v4208
        %v4225 = vmul.f32 %v4148, %v4209
        %v4226 = vmul.f32 %v4150, %v4210
        %v4227 = vmul.f32 %v4152, %v4211
        %v4228 = vmul.f32 %v4154, %v4212
        %v4229 = vmul.f32 %v4156, %v4213
        %v4230 = vmul.f32 %v4158, %v4214
        %v4231 = vmul.f32 %v4160, %v4215
        %v4232 = vmul.f32 %v4162, %v4216
        %v4233 = vmul.f32 %v4164, %v4217
        %v4234 = vmul.f32 %v4166, %v4218
        %v4235 = vmul.f32 %v4168, %v4219
        %v4236 = vmul.f32 %v4170, %v4220
        %v4237 = vmul.f32 %v4172, %v4221
        %v4238 = vmul.f32 %v4174, %v4222
        %v4239 = vpack.c.bf16 %v4224, %v4223
        %v4240 = vpack.c.bf16 %v4226, %v4225
        %v4241 = vpack.c.bf16 %v4228, %v4227
        %v4242 = vpack.c.bf16 %v4230, %v4229
        %v4243 = vpack.c.bf16 %v4232, %v4231
        %v4244 = vpack.c.bf16 %v4234, %v4233
        %v4245 = vpack.c.bf16 %v4236, %v4235
        %v4246 = vpack.c.bf16 %v4238, %v4237
        %v4263 = vunpack.c.l.b16 %v3862
        %v4264 = vunpack.c.l.b16 %v3863
        %v4265 = vunpack.c.l.b16 %v3864
        %v4266 = vunpack.c.l.b16 %v3865
        %v4267 = vunpack.c.l.b16 %v3866
        %v4268 = vunpack.c.l.b16 %v3867
        %v4269 = vunpack.c.l.b16 %v3868
        %v4270 = vunpack.c.l.b16 %v3869
        %v4271 = vunpack.c.l.b16 %v3870
        %v4272 = vunpack.c.l.b16 %v3871
        %v4273 = vunpack.c.l.b16 %v3872
        %v4274 = vunpack.c.l.b16 %v3873
        %v4275 = vunpack.c.l.b16 %v3874
        %v4276 = vunpack.c.l.b16 %v3875
        %v4277 = vunpack.c.l.b16 %v3876
        %v4278 = vunpack.c.l.b16 %v3877
        %v4279 = vpack.c.b16 %v4264, %v4263
        %v4280 = vpack.c.b16 %v4266, %v4265
        %v4281 = vpack.c.b16 %v4268, %v4267
        %v4282 = vpack.c.b16 %v4270, %v4269
        %v4283 = vpack.c.b16 %v4272, %v4271
        %v4284 = vpack.c.b16 %v4274, %v4273
        %v4285 = vpack.c.b16 %v4276, %v4275
        %v4286 = vpack.c.b16 %v4278, %v4277
        %4287 = vrot.lane.b32.xlu0 %v4279, 32
        %v4288 = vpop.permute.xlu0 %4287
        %4289 = vrot.lane.b32.xlu0 %v4280, 32
        %v4290 = vpop.permute.xlu0 %4289
        %4291 = vrot.lane.b32.xlu0 %v4281, 32
        %v4292 = vpop.permute.xlu0 %4291
        %4293 = vrot.lane.b32.xlu0 %v4282, 32
        %v4294 = vpop.permute.xlu0 %4293
        %4295 = vrot.lane.b32.xlu0 %v4283, 32
        %v4296 = vpop.permute.xlu0 %4295
        %4297 = vrot.lane.b32.xlu0 %v4284, 32
        %v4298 = vpop.permute.xlu0 %4297
        %4299 = vrot.lane.b32.xlu0 %v4285, 32
        %v4300 = vpop.permute.xlu0 %4299
        %4301 = vrot.lane.b32.xlu0 %v4286, 32
        %v4302 = vpop.permute.xlu0 %4301
        %4311 = vmatprep.subr.bf16.mxu0 0
        %4312 = vmatpush1.bf16.msra.mxu0 %v4302
        %4313 = vmatprep.subr.bf16.mxu0 0
        %4314 = vmatpush1.bf16.msra.mxu0 %v4300
        %4315 = vmatprep.subr.bf16.mxu0 0
        %4316 = vmatpush1.bf16.msra.mxu0 %v4298
        %4317 = vmatprep.subr.bf16.mxu0 0
        %4318 = vmatpush1.bf16.msra.mxu0 %v4296
        %4319 = vmatprep.subr.bf16.mxu0 0
        %4320 = vmatpush1.bf16.msra.mxu0 %v4294
        %4321 = vmatprep.subr.bf16.mxu0 0
        %4322 = vmatpush1.bf16.msra.mxu0 %v4292
        %4323 = vmatprep.subr.bf16.mxu0 0
        %4324 = vmatpush1.bf16.msra.mxu0 %v4290
        %4325 = vmatprep.subr.bf16.mxu0 0
        %4326 = vmatpush1.bf16.msra.mxu0 %v4288
        %4327 = vmatprep.subr.bf16.mxu0 0
        %4328 = vmatpush2.bf16.msra.mxu0 0
        %4329 = vmatprep.subr.bf16.mxu0 0
        %4330 = vmatpush2.bf16.msra.mxu0 0
        %4331 = vmatprep.subr.bf16.mxu0 0
        %4332 = vmatpush2.bf16.msra.mxu0 0
        %4333 = vmatprep.subr.bf16.mxu0 0
        %4334 = vmatpush2.bf16.msra.mxu0 0
        %4335 = vmatprep.subr.bf16.mxu0 0
        %4336 = vmatpush2.bf16.msra.mxu0 0
        %4337 = vmatprep.subr.bf16.mxu0 0
        %4338 = vmatpush2.bf16.msra.mxu0 0
        %4339 = vmatprep.subr.bf16.mxu0 0
        %4340 = vmatpush2.bf16.msra.mxu0 0
        %4341 = vmatprep.subr.bf16.mxu0 0
        %4342 = vmatpush2.bf16.msra.mxu0 0
        %4343 = vmatprep.mubr.bf16.mxu0 0
        %4344 = vmatmul.mubr.bf16.gmra.mxu0 %v4239
        %v4345 = vpop.f32.mrf.mxu0
        %v4346 = vadd.f32 0.0, %v4345
        %v4347 = vpop.f32.mrf.mxu0
        %v4348 = vpop.f32.mrf.mxu0
        %v4349 = vadd.f32 0.0, %v4348
        %v4350 = vpop.f32.mrf.mxu0
        %4351 = vmatprep.mubr.bf16.mxu0 0
        %4352 = vmatmul.mubr.bf16.gmra.mxu0 %v4240
        %v4353 = vpop.f32.mrf.mxu0
        %v4354 = vadd.f32 0.0, %v4353
        %v4355 = vpop.f32.mrf.mxu0
        %v4356 = vpop.f32.mrf.mxu0
        %v4357 = vadd.f32 0.0, %v4356
        %v4358 = vpop.f32.mrf.mxu0
        %4359 = vmatprep.mubr.bf16.mxu0 0
        %4360 = vmatmul.mubr.bf16.gmra.mxu0 %v4241
        %v4361 = vpop.f32.mrf.mxu0
        %v4362 = vadd.f32 0.0, %v4361
        %v4363 = vpop.f32.mrf.mxu0
        %v4364 = vpop.f32.mrf.mxu0
        %v4365 = vadd.f32 0.0, %v4364
        %v4366 = vpop.f32.mrf.mxu0
        %4367 = vmatprep.mubr.bf16.mxu0 0
        %4368 = vmatmul.mubr.bf16.gmra.mxu0 %v4242
        %v4369 = vpop.f32.mrf.mxu0
        %v4370 = vadd.f32 0.0, %v4369
        %v4371 = vpop.f32.mrf.mxu0
        %v4372 = vpop.f32.mrf.mxu0
        %v4373 = vadd.f32 0.0, %v4372
        %v4374 = vpop.f32.mrf.mxu0
        %4375 = vmatprep.mubr.bf16.mxu0 0
        %4376 = vmatmul.mubr.bf16.gmra.mxu0 %v4243
        %v4377 = vpop.f32.mrf.mxu0
        %v4378 = vadd.f32 0.0, %v4377
        %v4379 = vpop.f32.mrf.mxu0
        %v4380 = vpop.f32.mrf.mxu0
        %v4381 = vadd.f32 0.0, %v4380
        %v4382 = vpop.f32.mrf.mxu0
        %4383 = vmatprep.mubr.bf16.mxu0 0
        %4384 = vmatmul.mubr.bf16.gmra.mxu0 %v4244
        %v4385 = vpop.f32.mrf.mxu0
        %v4386 = vadd.f32 0.0, %v4385
        %v4387 = vpop.f32.mrf.mxu0
        %v4388 = vpop.f32.mrf.mxu0
        %v4389 = vadd.f32 0.0, %v4388
        %v4390 = vpop.f32.mrf.mxu0
        %4391 = vmatprep.mubr.bf16.mxu0 0
        %4392 = vmatmul.mubr.bf16.gmra.mxu0 %v4245
        %v4393 = vpop.f32.mrf.mxu0
        %v4394 = vadd.f32 0.0, %v4393
        %v4395 = vpop.f32.mrf.mxu0
        %v4396 = vpop.f32.mrf.mxu0
        %v4397 = vadd.f32 0.0, %v4396
        %v4398 = vpop.f32.mrf.mxu0
        %4399 = vmatprep.mubr.bf16.mxu0 0
        %4400 = vmatmul.mubr.bf16.gmra.mxu0 %v4246
        %v4401 = vpop.f32.mrf.mxu0
        %v4402 = vadd.f32 0.0, %v4401
        %v4403 = vpop.f32.mrf.mxu0
        %v4404 = vpop.f32.mrf.mxu0
        %v4405 = vadd.f32 0.0, %v4404
        %v4406 = vpop.f32.mrf.mxu0
        %4407 = vdwg.mxu0
        %v4408 = vpack.c.bf16 %v4349, %v4346
        %v4409 = vpack.c.bf16 %v4357, %v4354
        %v4410 = vpack.c.bf16 %v4365, %v4362
        %v4411 = vpack.c.bf16 %v4373, %v4370
        %v4412 = vpack.c.bf16 %v4381, %v4378
        %v4413 = vpack.c.bf16 %v4389, %v4386
        %v4414 = vpack.c.bf16 %v4397, %v4394
        %v4415 = vpack.c.bf16 %v4405, %v4402
        %v4424 = vunpack.c.l.b16 %v4408
        %v4425 = vunpack.c.h.b16 %v4408
        %v4426 = vunpack.c.l.b16 %v4409
        %v4427 = vunpack.c.h.b16 %v4409
        %v4428 = vunpack.c.l.b16 %v4410
        %v4429 = vunpack.c.h.b16 %v4410
        %v4430 = vunpack.c.l.b16 %v4411
        %v4431 = vunpack.c.h.b16 %v4411
        %v4432 = vunpack.c.l.b16 %v4412
        %v4433 = vunpack.c.h.b16 %v4412
        %v4434 = vunpack.c.l.b16 %v4413
        %v4435 = vunpack.c.h.b16 %v4413
        %v4436 = vunpack.c.l.b16 %v4414
        %v4437 = vunpack.c.h.b16 %v4414
        %v4438 = vunpack.c.l.b16 %v4415
        %v4439 = vunpack.c.h.b16 %v4415
        %v4440 = vpack.c.b16 %v4424, %v4424
        %v4441 = vpack.c.b16 %v4425, %v4425
        %v4442 = vpack.c.b16 %v4426, %v4426
        %v4443 = vpack.c.b16 %v4427, %v4427
        %v4444 = vpack.c.b16 %v4428, %v4428
        %v4445 = vpack.c.b16 %v4429, %v4429
        %v4446 = vpack.c.b16 %v4430, %v4430
        %v4447 = vpack.c.b16 %v4431, %v4431
        %v4448 = vpack.c.b16 %v4432, %v4432
        %v4449 = vpack.c.b16 %v4433, %v4433
        %v4450 = vpack.c.b16 %v4434, %v4434
        %v4451 = vpack.c.b16 %v4435, %v4435
        %v4452 = vpack.c.b16 %v4436, %v4436
        %v4453 = vpack.c.b16 %v4437, %v4437
        %v4454 = vpack.c.b16 %v4438, %v4438
        %v4455 = vpack.c.b16 %v4439, %v4439
        %4456 = vrot.lane.b32.xlu0 %v4440, 96
        %v4457 = vpop.permute.xlu0 %4456
        %4458 = vrot.lane.b32.xlu0 %v4441, 96
        %v4459 = vpop.permute.xlu0 %4458
        %4460 = vrot.lane.b32.xlu0 %v4442, 96
        %v4461 = vpop.permute.xlu0 %4460
        %4462 = vrot.lane.b32.xlu0 %v4443, 96
        %v4463 = vpop.permute.xlu0 %4462
        %4464 = vrot.lane.b32.xlu0 %v4444, 96
        %v4465 = vpop.permute.xlu0 %4464
        %4466 = vrot.lane.b32.xlu0 %v4445, 96
        %v4467 = vpop.permute.xlu0 %4466
        %4468 = vrot.lane.b32.xlu0 %v4446, 96
        %v4469 = vpop.permute.xlu0 %4468
        %4470 = vrot.lane.b32.xlu0 %v4447, 96
        %v4471 = vpop.permute.xlu0 %4470
        %4472 = vrot.lane.b32.xlu0 %v4448, 96
        %v4473 = vpop.permute.xlu0 %4472
        %4474 = vrot.lane.b32.xlu0 %v4449, 96
        %v4475 = vpop.permute.xlu0 %4474
        %4476 = vrot.lane.b32.xlu0 %v4450, 96
        %v4477 = vpop.permute.xlu0 %4476
        %4478 = vrot.lane.b32.xlu0 %v4451, 96
        %v4479 = vpop.permute.xlu0 %4478
        %4480 = vrot.lane.b32.xlu0 %v4452, 96
        %v4481 = vpop.permute.xlu0 %4480
        %4482 = vrot.lane.b32.xlu0 %v4453, 96
        %v4483 = vpop.permute.xlu0 %4482
        %4484 = vrot.lane.b32.xlu0 %v4454, 96
        %v4485 = vpop.permute.xlu0 %4484
        %4486 = vrot.lane.b32.xlu0 %v4455, 96
        %v4487 = vpop.permute.xlu0 %4486
        %vm4504 = vcmask 1044224
        %4505 = vst.msk [vmem:[#allocation5] sm:$0xf] %vm4504, %v4457
        %4506 = vst.msk [vmem:[#allocation5 + $0x4] sm:$0xf] %vm4504, %v4459
        %4507 = vst.msk [vmem:[#allocation5 + $0x8] sm:$0xf] %vm4504, %v4461
        %4508 = vst.msk [vmem:[#allocation5 + $0xc] sm:$0xf] %vm4504, %v4463
        %4509 = vst.msk [vmem:[#allocation5 + $0x10] sm:$0xf] %vm4504, %v4465
        %4510 = vst.msk [vmem:[#allocation5 + $0x14] sm:$0xf] %vm4504, %v4467
        %4511 = vst.msk [vmem:[#allocation5 + $0x18] sm:$0xf] %vm4504, %v4469
        %4512 = vst.msk [vmem:[#allocation5 + $0x1c] sm:$0xf] %vm4504, %v4471
        %4513 = vst.msk [vmem:[#allocation5 + $0x20] sm:$0xf] %vm4504, %v4473
        %4514 = vst.msk [vmem:[#allocation5 + $0x24] sm:$0xf] %vm4504, %v4475
        %4515 = vst.msk [vmem:[#allocation5 + $0x28] sm:$0xf] %vm4504, %v4477
        %4516 = vst.msk [vmem:[#allocation5 + $0x2c] sm:$0xf] %vm4504, %v4479
        %4517 = vst.msk [vmem:[#allocation5 + $0x30] sm:$0xf] %vm4504, %v4481
        %4518 = vst.msk [vmem:[#allocation5 + $0x34] sm:$0xf] %vm4504, %v4483
        %4519 = vst.msk [vmem:[#allocation5 + $0x38] sm:$0xf] %vm4504, %v4485
        %4520 = vst.msk [vmem:[#allocation5 + $0x3c] sm:$0xf] %vm4504, %v4487
        %v4521 = vld [vmem:[#allocation5] sm:$0xf]
        %v4522 = vld [vmem:[#allocation5 + $0x4] sm:$0xf]
        %v4523 = vld [vmem:[#allocation5 + $0x8] sm:$0xf]
        %v4524 = vld [vmem:[#allocation5 + $0xc] sm:$0xf]
        %v4525 = vld [vmem:[#allocation5 + $0x10] sm:$0xf]
        %v4526 = vld [vmem:[#allocation5 + $0x14] sm:$0xf]
        %v4527 = vld [vmem:[#allocation5 + $0x18] sm:$0xf]
        %v4528 = vld [vmem:[#allocation5 + $0x1c] sm:$0xf]
        %v4529 = vld [vmem:[#allocation5 + $0x20] sm:$0xf]
        %v4530 = vld [vmem:[#allocation5 + $0x24] sm:$0xf]
        %v4531 = vld [vmem:[#allocation5 + $0x28] sm:$0xf]
        %v4532 = vld [vmem:[#allocation5 + $0x2c] sm:$0xf]
        %v4533 = vld [vmem:[#allocation5 + $0x30] sm:$0xf]
        %v4534 = vld [vmem:[#allocation5 + $0x34] sm:$0xf]
        %v4535 = vld [vmem:[#allocation5 + $0x38] sm:$0xf]
        %v4536 = vld [vmem:[#allocation5 + $0x3c] sm:$0xf]
        %v4537 = vld [vmem:[#allocation15] sm:$0xf]
        %v4538 = vld [vmem:[#allocation15 + $0x4] sm:$0xf]
        %v4539 = vld [vmem:[#allocation15 + $0x8] sm:$0xf]
        %v4540 = vld [vmem:[#allocation15 + $0xc] sm:$0xf]
        %v4541 = vld [vmem:[#allocation15 + $0x10] sm:$0xf]
        %v4542 = vld [vmem:[#allocation15 + $0x14] sm:$0xf]
        %v4543 = vld [vmem:[#allocation15 + $0x18] sm:$0xf]
        %v4544 = vld [vmem:[#allocation15 + $0x1c] sm:$0xf]
        %v4545 = vld [vmem:[#allocation15 + $0x20] sm:$0xf]
        %v4546 = vld [vmem:[#allocation15 + $0x24] sm:$0xf]
        %v4547 = vld [vmem:[#allocation15 + $0x28] sm:$0xf]
        %v4548 = vld [vmem:[#allocation15 + $0x2c] sm:$0xf]
        %v4549 = vld [vmem:[#allocation15 + $0x30] sm:$0xf]
        %v4550 = vld [vmem:[#allocation15 + $0x34] sm:$0xf]
        %v4551 = vld [vmem:[#allocation15 + $0x38] sm:$0xf]
        %v4552 = vld [vmem:[#allocation15 + $0x3c] sm:$0xf]
        %v4553 = vld [vmem:[%s10] sm:$0x1]
        %v4555 = vlaneseq
        %v4556 = vshrl.u32 %v4555, 7
        %v4557 = vsub.s32 0, %v4556
        %v4558 = vrot.slane %v4553, %v4557
        %v4576 = vunpack.c.l.b16 %v4521
        %v4577 = vunpack.c.l.b16 %v4522
        %v4578 = vunpack.c.l.b16 %v4523
        %v4579 = vunpack.c.l.b16 %v4524
        %v4580 = vunpack.c.l.b16 %v4525
        %v4581 = vunpack.c.l.b16 %v4526
        %v4582 = vunpack.c.l.b16 %v4527
        %v4583 = vunpack.c.l.b16 %v4528
        %v4584 = vunpack.c.l.b16 %v4529
        %v4585 = vunpack.c.l.b16 %v4530
        %v4586 = vunpack.c.l.b16 %v4531
        %v4587 = vunpack.c.l.b16 %v4532
        %v4588 = vunpack.c.l.b16 %v4533
        %v4589 = vunpack.c.l.b16 %v4534
        %v4590 = vunpack.c.l.b16 %v4535
        %v4591 = vunpack.c.l.b16 %v4536
        %v4592 = vpack.c.b16 %v4577, %v4576
        %v4593 = vpack.c.b16 %v4579, %v4578
        %v4594 = vpack.c.b16 %v4581, %v4580
        %v4595 = vpack.c.b16 %v4583, %v4582
        %v4596 = vpack.c.b16 %v4585, %v4584
        %v4597 = vpack.c.b16 %v4587, %v4586
        %v4598 = vpack.c.b16 %v4589, %v4588
        %v4599 = vpack.c.b16 %v4591, %v4590
        %v4624 = vunpack.c.l.b16 %v4537
        %v4625 = vunpack.c.l.b16 %v4538
        %v4626 = vunpack.c.l.b16 %v4539
        %v4627 = vunpack.c.l.b16 %v4540
        %v4628 = vunpack.c.l.b16 %v4541
        %v4629 = vunpack.c.l.b16 %v4542
        %v4630 = vunpack.c.l.b16 %v4543
        %v4631 = vunpack.c.l.b16 %v4544
        %v4632 = vunpack.c.l.b16 %v4545
        %v4633 = vunpack.c.l.b16 %v4546
        %v4634 = vunpack.c.l.b16 %v4547
        %v4635 = vunpack.c.l.b16 %v4548
        %v4636 = vunpack.c.l.b16 %v4549
        %v4637 = vunpack.c.l.b16 %v4550
        %v4638 = vunpack.c.l.b16 %v4551
        %v4639 = vunpack.c.l.b16 %v4552
        %v4640 = vpack.c.b16 %v4625, %v4624
        %v4641 = vpack.c.b16 %v4627, %v4626
        %v4642 = vpack.c.b16 %v4629, %v4628
        %v4643 = vpack.c.b16 %v4631, %v4630
        %v4644 = vpack.c.b16 %v4633, %v4632
        %v4645 = vpack.c.b16 %v4635, %v4634
        %v4646 = vpack.c.b16 %v4637, %v4636
        %v4647 = vpack.c.b16 %v4639, %v4638
        %4656 = vmatprep.subr.bf16.mxu0 0
        %4657 = vmatpush1.bf16.msra.mxu0 %v4647
        %4658 = vmatprep.subr.bf16.mxu0 0
        %4659 = vmatpush1.bf16.msra.mxu0 %v4646
        %4660 = vmatprep.subr.bf16.mxu0 0
        %4661 = vmatpush1.bf16.msra.mxu0 %v4645
        %4662 = vmatprep.subr.bf16.mxu0 0
        %4663 = vmatpush1.bf16.msra.mxu0 %v4644
        %4664 = vmatprep.subr.bf16.mxu0 0
        %4665 = vmatpush1.bf16.msra.mxu0 %v4643
        %4666 = vmatprep.subr.bf16.mxu0 0
        %4667 = vmatpush1.bf16.msra.mxu0 %v4642
        %4668 = vmatprep.subr.bf16.mxu0 0
        %4669 = vmatpush1.bf16.msra.mxu0 %v4641
        %4670 = vmatprep.subr.bf16.mxu0 0
        %4671 = vmatpush1.bf16.msra.mxu0 %v4640
        %4672 = vmatprep.subr.bf16.mxu0 0
        %4673 = vmatpush2.bf16.msra.mxu0 0
        %4674 = vmatprep.subr.bf16.mxu0 0
        %4675 = vmatpush2.bf16.msra.mxu0 0
        %4676 = vmatprep.subr.bf16.mxu0 0
        %4677 = vmatpush2.bf16.msra.mxu0 0
        %4678 = vmatprep.subr.bf16.mxu0 0
        %4679 = vmatpush2.bf16.msra.mxu0 0
        %4680 = vmatprep.subr.bf16.mxu0 0
        %4681 = vmatpush2.bf16.msra.mxu0 0
        %4682 = vmatprep.subr.bf16.mxu0 0
        %4683 = vmatpush2.bf16.msra.mxu0 0
        %4684 = vmatprep.subr.bf16.mxu0 0
        %4685 = vmatpush2.bf16.msra.mxu0 0
        %4686 = vmatprep.subr.bf16.mxu0 0
        %4687 = vmatpush2.bf16.msra.mxu0 0
        %4688 = vmatprep.mubr.bf16.mxu0 0
        %4689 = vmatmul.mubr.bf16.gmra.mxu0 %v4592
        %v4690 = vpop.f32.mrf.mxu0
        %v4691 = vadd.f32 %v4558, %v4690
        %v4692 = vpop.f32.mrf.mxu0
        %v4693 = vpop.f32.mrf.mxu0
        %v4694 = vadd.f32 %v4558, %v4693
        %v4695 = vpop.f32.mrf.mxu0
        %4696 = vmatprep.mubr.bf16.mxu0 0
        %4697 = vmatmul.mubr.bf16.gmra.mxu0 %v4593
        %v4698 = vpop.f32.mrf.mxu0
        %v4699 = vadd.f32 %v4558, %v4698
        %v4700 = vpop.f32.mrf.mxu0
        %v4701 = vpop.f32.mrf.mxu0
        %v4702 = vadd.f32 %v4558, %v4701
        %v4703 = vpop.f32.mrf.mxu0
        %4704 = vmatprep.mubr.bf16.mxu0 0
        %4705 = vmatmul.mubr.bf16.gmra.mxu0 %v4594
        %v4706 = vpop.f32.mrf.mxu0
        %v4707 = vadd.f32 %v4558, %v4706
        %v4708 = vpop.f32.mrf.mxu0
        %v4709 = vpop.f32.mrf.mxu0
        %v4710 = vadd.f32 %v4558, %v4709
        %v4711 = vpop.f32.mrf.mxu0
        %4712 = vmatprep.mubr.bf16.mxu0 0
        %4713 = vmatmul.mubr.bf16.gmra.mxu0 %v4595
        %v4714 = vpop.f32.mrf.mxu0
        %v4715 = vadd.f32 %v4558, %v4714
        %v4716 = vpop.f32.mrf.mxu0
        %v4717 = vpop.f32.mrf.mxu0
        %v4718 = vadd.f32 %v4558, %v4717
        %v4719 = vpop.f32.mrf.mxu0
        %4720 = vmatprep.mubr.bf16.mxu0 0
        %4721 = vmatmul.mubr.bf16.gmra.mxu0 %v4596
        %v4722 = vpop.f32.mrf.mxu0
        %v4723 = vadd.f32 %v4558, %v4722
        %v4724 = vpop.f32.mrf.mxu0
        %v4725 = vpop.f32.mrf.mxu0
        %v4726 = vadd.f32 %v4558, %v4725
        %v4727 = vpop.f32.mrf.mxu0
        %4728 = vmatprep.mubr.bf16.mxu0 0
        %4729 = vmatmul.mubr.bf16.gmra.mxu0 %v4597
        %v4730 = vpop.f32.mrf.mxu0
        %v4731 = vadd.f32 %v4558, %v4730
        %v4732 = vpop.f32.mrf.mxu0
        %v4733 = vpop.f32.mrf.mxu0
        %v4734 = vadd.f32 %v4558, %v4733
        %v4735 = vpop.f32.mrf.mxu0
        %4736 = vmatprep.mubr.bf16.mxu0 0
        %4737 = vmatmul.mubr.bf16.gmra.mxu0 %v4598
        %v4738 = vpop.f32.mrf.mxu0
        %v4739 = vadd.f32 %v4558, %v4738
        %v4740 = vpop.f32.mrf.mxu0
        %v4741 = vpop.f32.mrf.mxu0
        %v4742 = vadd.f32 %v4558, %v4741
        %v4743 = vpop.f32.mrf.mxu0
        %4744 = vmatprep.mubr.bf16.mxu0 0
        %4745 = vmatmul.mubr.bf16.gmra.mxu0 %v4599
        %v4746 = vpop.f32.mrf.mxu0
        %v4747 = vadd.f32 %v4558, %v4746
        %v4748 = vpop.f32.mrf.mxu0
        %v4749 = vpop.f32.mrf.mxu0
        %v4750 = vadd.f32 %v4558, %v4749
        %v4751 = vpop.f32.mrf.mxu0
        %4752 = vdwg.mxu0
        %v4753 = vadd.f32 %v1616, %v4691
        %v4754 = vadd.f32 %v1617, %v4694
        %v4755 = vadd.f32 %v1618, %v4699
        %v4756 = vadd.f32 %v1619, %v4702
        %v4757 = vadd.f32 %v1620, %v4707
        %v4758 = vadd.f32 %v1621, %v4710
        %v4759 = vadd.f32 %v1622, %v4715
        %v4760 = vadd.f32 %v1623, %v4718
        %v4761 = vadd.f32 %v1624, %v4723
        %v4762 = vadd.f32 %v1625, %v4726
        %v4763 = vadd.f32 %v1626, %v4731
        %v4764 = vadd.f32 %v1627, %v4734
        %v4765 = vadd.f32 %v1628, %v4739
        %v4766 = vadd.f32 %v1629, %v4742
        %v4767 = vadd.f32 %v1630, %v4747
        %v4768 = vadd.f32 %v1631, %v4750
        %v4769 = vld [vmem:[%s11] sm:$0x1]
        %v4770 = vld [vmem:[%s12] sm:$0x1]
        %4771 = vadd.xlane.f32.xlu0 %v4753
        %v4772 = vpop.xlane.xlu0 %4771
        %4773 = vadd.xlane.f32.xlu0 %v4754
        %v4774 = vpop.xlane.xlu0 %4773
        %4775 = vadd.xlane.f32.xlu0 %v4755
        %v4776 = vpop.xlane.xlu0 %4775
        %4777 = vadd.xlane.f32.xlu0 %v4756
        %v4778 = vpop.xlane.xlu0 %4777
        %4779 = vadd.xlane.f32.xlu0 %v4757
        %v4780 = vpop.xlane.xlu0 %4779
        %4781 = vadd.xlane.f32.xlu0 %v4758
        %v4782 = vpop.xlane.xlu0 %4781
        %4783 = vadd.xlane.f32.xlu0 %v4759
        %v4784 = vpop.xlane.xlu0 %4783
        %4785 = vadd.xlane.f32.xlu0 %v4760
        %v4786 = vpop.xlane.xlu0 %4785
        %4787 = vadd.xlane.f32.xlu0 %v4761
        %v4788 = vpop.xlane.xlu0 %4787
        %4789 = vadd.xlane.f32.xlu0 %v4762
        %v4790 = vpop.xlane.xlu0 %4789
        %4791 = vadd.xlane.f32.xlu0 %v4763
        %v4792 = vpop.xlane.xlu0 %4791
        %4793 = vadd.xlane.f32.xlu0 %v4764
        %v4794 = vpop.xlane.xlu0 %4793
        %4795 = vadd.xlane.f32.xlu0 %v4765
        %v4796 = vpop.xlane.xlu0 %4795
        %4797 = vadd.xlane.f32.xlu0 %v4766
        %v4798 = vpop.xlane.xlu0 %4797
        %4799 = vadd.xlane.f32.xlu0 %v4767
        %v4800 = vpop.xlane.xlu0 %4799
        %4801 = vadd.xlane.f32.xlu0 %v4768
        %v4802 = vpop.xlane.xlu0 %4801
        %v4803 = vrcp.pop 128.0
        %v4804 = vmul.f32 %v4772, %v4803
        %v4805 = vmul.f32 %v4774, %v4803
        %v4806 = vmul.f32 %v4776, %v4803
        %v4807 = vmul.f32 %v4778, %v4803
        %v4808 = vmul.f32 %v4780, %v4803
        %v4809 = vmul.f32 %v4782, %v4803
        %v4810 = vmul.f32 %v4784, %v4803
        %v4811 = vmul.f32 %v4786, %v4803
        %v4812 = vmul.f32 %v4788, %v4803
        %v4813 = vmul.f32 %v4790, %v4803
        %v4814 = vmul.f32 %v4792, %v4803
        %v4815 = vmul.f32 %v4794, %v4803
        %v4816 = vmul.f32 %v4796, %v4803
        %v4817 = vmul.f32 %v4798, %v4803
        %v4818 = vmul.f32 %v4800, %v4803
        %v4819 = vmul.f32 %v4802, %v4803
        %v4820 = vsub.f32 %v4753, %v4804
        %v4821 = vsub.f32 %v4754, %v4805
        %v4822 = vsub.f32 %v4755, %v4806
        %v4823 = vsub.f32 %v4756, %v4807
        %v4824 = vsub.f32 %v4757, %v4808
        %v4825 = vsub.f32 %v4758, %v4809
        %v4826 = vsub.f32 %v4759, %v4810
        %v4827 = vsub.f32 %v4760, %v4811
        %v4828 = vsub.f32 %v4761, %v4812
        %v4829 = vsub.f32 %v4762, %v4813
        %v4830 = vsub.f32 %v4763, %v4814
        %v4831 = vsub.f32 %v4764, %v4815
        %v4832 = vsub.f32 %v4765, %v4816
        %v4833 = vsub.f32 %v4766, %v4817
        %v4834 = vsub.f32 %v4767, %v4818
        %v4835 = vsub.f32 %v4768, %v4819
        %v4836 = vmul.f32 %v4820, %v4820
        %v4837 = vmul.f32 %v4821, %v4821
        %v4838 = vmul.f32 %v4822, %v4822
        %v4839 = vmul.f32 %v4823, %v4823
        %v4840 = vmul.f32 %v4824, %v4824
        %v4841 = vmul.f32 %v4825, %v4825
        %v4842 = vmul.f32 %v4826, %v4826
        %v4843 = vmul.f32 %v4827, %v4827
        %v4844 = vmul.f32 %v4828, %v4828
        %v4845 = vmul.f32 %v4829, %v4829
        %v4846 = vmul.f32 %v4830, %v4830
        %v4847 = vmul.f32 %v4831, %v4831
        %v4848 = vmul.f32 %v4832, %v4832
        %v4849 = vmul.f32 %v4833, %v4833
        %v4850 = vmul.f32 %v4834, %v4834
        %v4851 = vmul.f32 %v4835, %v4835
        %4852 = vadd.xlane.f32.xlu0 %v4836
        %v4853 = vpop.xlane.xlu0 %4852
        %4854 = vadd.xlane.f32.xlu0 %v4837
        %v4855 = vpop.xlane.xlu0 %4854
        %4856 = vadd.xlane.f32.xlu0 %v4838
        %v4857 = vpop.xlane.xlu0 %4856
        %4858 = vadd.xlane.f32.xlu0 %v4839
        %v4859 = vpop.xlane.xlu0 %4858
        %4860 = vadd.xlane.f32.xlu0 %v4840
        %v4861 = vpop.xlane.xlu0 %4860
        %4862 = vadd.xlane.f32.xlu0 %v4841
        %v4863 = vpop.xlane.xlu0 %4862
        %4864 = vadd.xlane.f32.xlu0 %v4842
        %v4865 = vpop.xlane.xlu0 %4864
        %4866 = vadd.xlane.f32.xlu0 %v4843
        %v4867 = vpop.xlane.xlu0 %4866
        %4868 = vadd.xlane.f32.xlu0 %v4844
        %v4869 = vpop.xlane.xlu0 %4868
        %4870 = vadd.xlane.f32.xlu0 %v4845
        %v4871 = vpop.xlane.xlu0 %4870
        %4872 = vadd.xlane.f32.xlu0 %v4846
        %v4873 = vpop.xlane.xlu0 %4872
        %4874 = vadd.xlane.f32.xlu0 %v4847
        %v4875 = vpop.xlane.xlu0 %4874
        %4876 = vadd.xlane.f32.xlu0 %v4848
        %v4877 = vpop.xlane.xlu0 %4876
        %4878 = vadd.xlane.f32.xlu0 %v4849
        %v4879 = vpop.xlane.xlu0 %4878
        %4880 = vadd.xlane.f32.xlu0 %v4850
        %v4881 = vpop.xlane.xlu0 %4880
        %4882 = vadd.xlane.f32.xlu0 %v4851
        %v4883 = vpop.xlane.xlu0 %4882
        %v4884 = vmul.f32 %v4853, 0.007874016
        %v4885 = vmul.f32 %v4855, 0.007874016
        %v4886 = vmul.f32 %v4857, 0.007874016
        %v4887 = vmul.f32 %v4859, 0.007874016
        %v4888 = vmul.f32 %v4861, 0.007874016
        %v4889 = vmul.f32 %v4863, 0.007874016
        %v4890 = vmul.f32 %v4865, 0.007874016
        %v4891 = vmul.f32 %v4867, 0.007874016
        %v4892 = vmul.f32 %v4869, 0.007874016
        %v4893 = vmul.f32 %v4871, 0.007874016
        %v4894 = vmul.f32 %v4873, 0.007874016
        %v4895 = vmul.f32 %v4875, 0.007874016
        %v4896 = vmul.f32 %v4877, 0.007874016
        %v4897 = vmul.f32 %v4879, 0.007874016
        %v4898 = vmul.f32 %v4881, 0.007874016
        %v4899 = vmul.f32 %v4883, 0.007874016
        %v4900 = vrsqrt.pop %v4884
        %v4901 = vmul.f32 %v4884, %v4900
        %vm4902 = vcmp.eq.f32.partialorder %v4884, inf
        %v4903 = vsel %vm4902, %v4884, %v4901
        %vm4904 = vcmp.eq.f32.partialorder %v4884, 0.0
        %v4905 = vand.u32 %v4884, 2147483648
        %v4906 = vsel %vm4904, %v4905, %v4903
        %v4907 = vrsqrt.pop %v4885
        %v4908 = vmul.f32 %v4885, %v4907
        %vm4909 = vcmp.eq.f32.partialorder %v4885, inf
        %v4910 = vsel %vm4909, %v4885, %v4908
        %vm4911 = vcmp.eq.f32.partialorder %v4885, 0.0
        %v4912 = vand.u32 %v4885, 2147483648
        %v4913 = vsel %vm4911, %v4912, %v4910
        %v4914 = vrsqrt.pop %v4886
        %v4915 = vmul.f32 %v4886, %v4914
        %vm4916 = vcmp.eq.f32.partialorder %v4886, inf
        %v4917 = vsel %vm4916, %v4886, %v4915
        %vm4918 = vcmp.eq.f32.partialorder %v4886, 0.0
        %v4919 = vand.u32 %v4886, 2147483648
        %v4920 = vsel %vm4918, %v4919, %v4917
        %v4921 = vrsqrt.pop %v4887
        %v4922 = vmul.f32 %v4887, %v4921
        %vm4923 = vcmp.eq.f32.partialorder %v4887, inf
        %v4924 = vsel %vm4923, %v4887, %v4922
        %vm4925 = vcmp.eq.f32.partialorder %v4887, 0.0
        %v4926 = vand.u32 %v4887, 2147483648
        %v4927 = vsel %vm4925, %v4926, %v4924
        %v4928 = vrsqrt.pop %v4888
        %v4929 = vmul.f32 %v4888, %v4928
        %vm4930 = vcmp.eq.f32.partialorder %v4888, inf
        %v4931 = vsel %vm4930, %v4888, %v4929
        %vm4932 = vcmp.eq.f32.partialorder %v4888, 0.0
        %v4933 = vand.u32 %v4888, 2147483648
        %v4934 = vsel %vm4932, %v4933, %v4931
        %v4935 = vrsqrt.pop %v4889
        %v4936 = vmul.f32 %v4889, %v4935
        %vm4937 = vcmp.eq.f32.partialorder %v4889, inf
        %v4938 = vsel %vm4937, %v4889, %v4936
        %vm4939 = vcmp.eq.f32.partialorder %v4889, 0.0
        %v4940 = vand.u32 %v4889, 2147483648
        %v4941 = vsel %vm4939, %v4940, %v4938
        %v4942 = vrsqrt.pop %v4890
        %v4943 = vmul.f32 %v4890, %v4942
        %vm4944 = vcmp.eq.f32.partialorder %v4890, inf
        %v4945 = vsel %vm4944, %v4890, %v4943
        %vm4946 = vcmp.eq.f32.partialorder %v4890, 0.0
        %v4947 = vand.u32 %v4890, 2147483648
        %v4948 = vsel %vm4946, %v4947, %v4945
        %v4949 = vrsqrt.pop %v4891
        %v4950 = vmul.f32 %v4891, %v4949
        %vm4951 = vcmp.eq.f32.partialorder %v4891, inf
        %v4952 = vsel %vm4951, %v4891, %v4950
        %vm4953 = vcmp.eq.f32.partialorder %v4891, 0.0
        %v4954 = vand.u32 %v4891, 2147483648
        %v4955 = vsel %vm4953, %v4954, %v4952
        %v4956 = vrsqrt.pop %v4892
        %v4957 = vmul.f32 %v4892, %v4956
        %vm4958 = vcmp.eq.f32.partialorder %v4892, inf
        %v4959 = vsel %vm4958, %v4892, %v4957
        %vm4960 = vcmp.eq.f32.partialorder %v4892, 0.0
        %v4961 = vand.u32 %v4892, 2147483648
        %v4962 = vsel %vm4960, %v4961, %v4959
        %v4963 = vrsqrt.pop %v4893
        %v4964 = vmul.f32 %v4893, %v4963
        %vm4965 = vcmp.eq.f32.partialorder %v4893, inf
        %v4966 = vsel %vm4965, %v4893, %v4964
        %vm4967 = vcmp.eq.f32.partialorder %v4893, 0.0
        %v4968 = vand.u32 %v4893, 2147483648
        %v4969 = vsel %vm4967, %v4968, %v4966
        %v4970 = vrsqrt.pop %v4894
        %v4971 = vmul.f32 %v4894, %v4970
        %vm4972 = vcmp.eq.f32.partialorder %v4894, inf
        %v4973 = vsel %vm4972, %v4894, %v4971
        %vm4974 = vcmp.eq.f32.partialorder %v4894, 0.0
        %v4975 = vand.u32 %v4894, 2147483648
        %v4976 = vsel %vm4974, %v4975, %v4973
        %v4977 = vrsqrt.pop %v4895
        %v4978 = vmul.f32 %v4895, %v4977
        %vm4979 = vcmp.eq.f32.partialorder %v4895, inf
        %v4980 = vsel %vm4979, %v4895, %v4978
        %vm4981 = vcmp.eq.f32.partialorder %v4895, 0.0
        %v4982 = vand.u32 %v4895, 2147483648
        %v4983 = vsel %vm4981, %v4982, %v4980
        %v4984 = vrsqrt.pop %v4896
        %v4985 = vmul.f32 %v4896, %v4984
        %vm4986 = vcmp.eq.f32.partialorder %v4896, inf
        %v4987 = vsel %vm4986, %v4896, %v4985
        %vm4988 = vcmp.eq.f32.partialorder %v4896, 0.0
        %v4989 = vand.u32 %v4896, 2147483648
        %v4990 = vsel %vm4988, %v4989, %v4987
        %v4991 = vrsqrt.pop %v4897
        %v4992 = vmul.f32 %v4897, %v4991
        %vm4993 = vcmp.eq.f32.partialorder %v4897, inf
        %v4994 = vsel %vm4993, %v4897, %v4992
        %vm4995 = vcmp.eq.f32.partialorder %v4897, 0.0
        %v4996 = vand.u32 %v4897, 2147483648
        %v4997 = vsel %vm4995, %v4996, %v4994
        %v4998 = vrsqrt.pop %v4898
        %v4999 = vmul.f32 %v4898, %v4998
        %vm5000 = vcmp.eq.f32.partialorder %v4898, inf
        %v5001 = vsel %vm5000, %v4898, %v4999
        %vm5002 = vcmp.eq.f32.partialorder %v4898, 0.0
        %v5003 = vand.u32 %v4898, 2147483648
        %v5004 = vsel %vm5002, %v5003, %v5001
        %v5005 = vrsqrt.pop %v4899
        %v5006 = vmul.f32 %v4899, %v5005
        %vm5007 = vcmp.eq.f32.partialorder %v4899, inf
        %v5008 = vsel %vm5007, %v4899, %v5006
        %vm5009 = vcmp.eq.f32.partialorder %v4899, 0.0
        %v5010 = vand.u32 %v4899, 2147483648
        %v5011 = vsel %vm5009, %v5010, %v5008
        %v5012 = vadd.f32 %v4906, 1e-05
        %v5013 = vadd.f32 %v4913, 1e-05
        %v5014 = vadd.f32 %v4920, 1e-05
        %v5015 = vadd.f32 %v4927, 1e-05
        %v5016 = vadd.f32 %v4934, 1e-05
        %v5017 = vadd.f32 %v4941, 1e-05
        %v5018 = vadd.f32 %v4948, 1e-05
        %v5019 = vadd.f32 %v4955, 1e-05
        %v5020 = vadd.f32 %v4962, 1e-05
        %v5021 = vadd.f32 %v4969, 1e-05
        %v5022 = vadd.f32 %v4976, 1e-05
        %v5023 = vadd.f32 %v4983, 1e-05
        %v5024 = vadd.f32 %v4990, 1e-05
        %v5025 = vadd.f32 %v4997, 1e-05
        %v5026 = vadd.f32 %v5004, 1e-05
        %v5027 = vadd.f32 %v5011, 1e-05
        %v5028 = vrcp.pop %v5012
        %v5029 = vrcp.pop %v5013
        %v5030 = vrcp.pop %v5014
        %v5031 = vrcp.pop %v5015
        %v5032 = vrcp.pop %v5016
        %v5033 = vrcp.pop %v5017
        %v5034 = vrcp.pop %v5018
        %v5035 = vrcp.pop %v5019
        %v5036 = vrcp.pop %v5020
        %v5037 = vrcp.pop %v5021
        %v5038 = vrcp.pop %v5022
        %v5039 = vrcp.pop %v5023
        %v5040 = vrcp.pop %v5024
        %v5041 = vrcp.pop %v5025
        %v5042 = vrcp.pop %v5026
        %v5043 = vrcp.pop %v5027
        %v5044 = vmul.f32 %v4820, %v5028
        %v5045 = vmul.f32 %v4821, %v5029
        %v5046 = vmul.f32 %v4822, %v5030
        %v5047 = vmul.f32 %v4823, %v5031
        %v5048 = vmul.f32 %v4824, %v5032
        %v5049 = vmul.f32 %v4825, %v5033
        %v5050 = vmul.f32 %v4826, %v5034
        %v5051 = vmul.f32 %v4827, %v5035
        %v5052 = vmul.f32 %v4828, %v5036
        %v5053 = vmul.f32 %v4829, %v5037
        %v5054 = vmul.f32 %v4830, %v5038
        %v5055 = vmul.f32 %v4831, %v5039
        %v5056 = vmul.f32 %v4832, %v5040
        %v5057 = vmul.f32 %v4833, %v5041
        %v5058 = vmul.f32 %v4834, %v5042
        %v5059 = vmul.f32 %v4835, %v5043
        %v5061 = vlaneseq
        %v5062 = vshrl.u32 %v5061, 7
        %v5063 = vsub.s32 0, %v5062
        %v5064 = vrot.slane %v4769, %v5063
        %v5066 = vmul.f32 %v5064, %v5044
        %v5067 = vmul.f32 %v5064, %v5045
        %v5068 = vmul.f32 %v5064, %v5046
        %v5069 = vmul.f32 %v5064, %v5047
        %v5070 = vmul.f32 %v5064, %v5048
        %v5071 = vmul.f32 %v5064, %v5049
        %v5072 = vmul.f32 %v5064, %v5050
        %v5073 = vmul.f32 %v5064, %v5051
        %v5074 = vmul.f32 %v5064, %v5052
        %v5075 = vmul.f32 %v5064, %v5053
        %v5076 = vmul.f32 %v5064, %v5054
        %v5077 = vmul.f32 %v5064, %v5055
        %v5078 = vmul.f32 %v5064, %v5056
        %v5079 = vmul.f32 %v5064, %v5057
        %v5080 = vmul.f32 %v5064, %v5058
        %v5081 = vmul.f32 %v5064, %v5059
        %v5083 = vlaneseq
        %v5084 = vshrl.u32 %v5083, 7
        %v5085 = vsub.s32 0, %v5084
        %v5086 = vrot.slane %v4770, %v5085
        %v5088 = vadd.f32 %v5066, %v5086
        %v5089 = vadd.f32 %v5067, %v5086
        %v5090 = vadd.f32 %v5068, %v5086
        %v5091 = vadd.f32 %v5069, %v5086
        %v5092 = vadd.f32 %v5070, %v5086
        %v5093 = vadd.f32 %v5071, %v5086
        %v5094 = vadd.f32 %v5072, %v5086
        %v5095 = vadd.f32 %v5073, %v5086
        %v5096 = vadd.f32 %v5074, %v5086
        %v5097 = vadd.f32 %v5075, %v5086
        %v5098 = vadd.f32 %v5076, %v5086
        %v5099 = vadd.f32 %v5077, %v5086
        %v5100 = vadd.f32 %v5078, %v5086
        %v5101 = vadd.f32 %v5079, %v5086
        %v5102 = vadd.f32 %v5080, %v5086
        %v5103 = vadd.f32 %v5081, %v5086
        %v5104 = vpack.c.bf16 %v5089, %v5088
        %v5105 = vpack.c.bf16 %v5091, %v5090
        %v5106 = vpack.c.bf16 %v5093, %v5092
        %v5107 = vpack.c.bf16 %v5095, %v5094
        %v5108 = vpack.c.bf16 %v5097, %v5096
        %v5109 = vpack.c.bf16 %v5099, %v5098
        %v5110 = vpack.c.bf16 %v5101, %v5100
        %v5111 = vpack.c.bf16 %v5103, %v5102
        %v5112 = vld [vmem:[#allocation17] sm:$0xff]
        %v5113 = vld [vmem:[#allocation17 + $0x8] sm:$0xff]
        %v5114 = vld [vmem:[#allocation17 + $0x10] sm:$0xff]
        %v5115 = vld [vmem:[#allocation17 + $0x18] sm:$0xff]
        %v5116 = vld [vmem:[#allocation17 + $0x20] sm:$0xff]
        %v5117 = vld [vmem:[#allocation17 + $0x28] sm:$0xff]
        %v5118 = vld [vmem:[#allocation17 + $0x30] sm:$0xff]
        %v5119 = vld [vmem:[#allocation17 + $0x38] sm:$0xff]
        %v5120 = vld [vmem:[#allocation17 + $0x40] sm:$0xff]
        %v5121 = vld [vmem:[#allocation17 + $0x48] sm:$0xff]
        %v5122 = vld [vmem:[#allocation17 + $0x50] sm:$0xff]
        %v5123 = vld [vmem:[#allocation17 + $0x58] sm:$0xff]
        %v5124 = vld [vmem:[#allocation17 + $0x60] sm:$0xff]
        %v5125 = vld [vmem:[#allocation17 + $0x68] sm:$0xff]
        %v5126 = vld [vmem:[#allocation17 + $0x70] sm:$0xff]
        %v5127 = vld [vmem:[#allocation17 + $0x78] sm:$0xff]
        %v5128 = vld [vmem:[%s14] sm:$0x3]
        %v5130 = vlaneseq
        %v5131 = vshrl.u32 %v5130, 7
        %v5132 = vsub.s32 0, %v5131
        %v5133 = vrot.slane %v5128, %v5132
        %v5134 = vlaneseq
        %v5135 = vshrl.u32 %v5134, 7
        %v5136 = vsub.s32 1, %v5135
        %v5137 = vrot.slane %v5128, %v5136
        %v5156 = vunpack.c.l.b16 %v5112
        %v5157 = vunpack.c.h.b16 %v5112
        %v5158 = vunpack.c.l.b16 %v5113
        %v5159 = vunpack.c.h.b16 %v5113
        %v5160 = vunpack.c.l.b16 %v5114
        %v5161 = vunpack.c.h.b16 %v5114
        %v5162 = vunpack.c.l.b16 %v5115
        %v5163 = vunpack.c.h.b16 %v5115
        %v5164 = vunpack.c.l.b16 %v5116
        %v5165 = vunpack.c.h.b16 %v5116
        %v5166 = vunpack.c.l.b16 %v5117
        %v5167 = vunpack.c.h.b16 %v5117
        %v5168 = vunpack.c.l.b16 %v5118
        %v5169 = vunpack.c.h.b16 %v5118
        %v5170 = vunpack.c.l.b16 %v5119
        %v5171 = vunpack.c.h.b16 %v5119
        %v5172 = vunpack.c.l.b16 %v5120
        %v5173 = vunpack.c.h.b16 %v5120
        %v5174 = vunpack.c.l.b16 %v5121
        %v5175 = vunpack.c.h.b16 %v5121
        %v5176 = vunpack.c.l.b16 %v5122
        %v5177 = vunpack.c.h.b16 %v5122
        %v5178 = vunpack.c.l.b16 %v5123
        %v5179 = vunpack.c.h.b16 %v5123
        %v5180 = vunpack.c.l.b16 %v5124
        %v5181 = vunpack.c.h.b16 %v5124
        %v5182 = vunpack.c.l.b16 %v5125
        %v5183 = vunpack.c.h.b16 %v5125
        %v5184 = vunpack.c.l.b16 %v5126
        %v5185 = vunpack.c.h.b16 %v5126
        %v5186 = vunpack.c.l.b16 %v5127
        %v5187 = vunpack.c.h.b16 %v5127
        %v5188 = vpack.c.b16 %v5158, %v5156
        %v5189 = vpack.c.b16 %v5159, %v5157
        %v5190 = vpack.c.b16 %v5162, %v5160
        %v5191 = vpack.c.b16 %v5163, %v5161
        %v5192 = vpack.c.b16 %v5166, %v5164
        %v5193 = vpack.c.b16 %v5167, %v5165
        %v5194 = vpack.c.b16 %v5170, %v5168
        %v5195 = vpack.c.b16 %v5171, %v5169
        %v5196 = vpack.c.b16 %v5174, %v5172
        %v5197 = vpack.c.b16 %v5175, %v5173
        %v5198 = vpack.c.b16 %v5178, %v5176
        %v5199 = vpack.c.b16 %v5179, %v5177
        %v5200 = vpack.c.b16 %v5182, %v5180
        %v5201 = vpack.c.b16 %v5183, %v5181
        %v5202 = vpack.c.b16 %v5186, %v5184
        %v5203 = vpack.c.b16 %v5187, %v5185
        %5220 = vmatprep.subr.bf16.mxu0 %v5203
        %5221 = vmatpush1.bf16.msra.mxu0 %v5202
        %5222 = vmatprep.subr.bf16.mxu0 %v5201
        %5223 = vmatpush1.bf16.msra.mxu0 %v5200
        %5224 = vmatprep.subr.bf16.mxu0 %v5199
        %5225 = vmatpush1.bf16.msra.mxu0 %v5198
        %5226 = vmatprep.subr.bf16.mxu0 %v5197
        %5227 = vmatpush1.bf16.msra.mxu0 %v5196
        %5228 = vmatprep.subr.bf16.mxu0 %v5195
        %5229 = vmatpush1.bf16.msra.mxu0 %v5194
        %5230 = vmatprep.subr.bf16.mxu0 %v5193
        %5231 = vmatpush1.bf16.msra.mxu0 %v5192
        %5232 = vmatprep.subr.bf16.mxu0 %v5191
        %5233 = vmatpush1.bf16.msra.mxu0 %v5190
        %5234 = vmatprep.subr.bf16.mxu0 %v5189
        %5235 = vmatpush1.bf16.msra.mxu0 %v5188
        %5236 = vmatprep.subr.bf16.mxu0 0
        %5237 = vmatpush2.bf16.msra.mxu0 0
        %5238 = vmatprep.subr.bf16.mxu0 0
        %5239 = vmatpush2.bf16.msra.mxu0 0
        %5240 = vmatprep.subr.bf16.mxu0 0
        %5241 = vmatpush2.bf16.msra.mxu0 0
        %5242 = vmatprep.subr.bf16.mxu0 0
        %5243 = vmatpush2.bf16.msra.mxu0 0
        %5244 = vmatprep.subr.bf16.mxu0 0
        %5245 = vmatpush2.bf16.msra.mxu0 0
        %5246 = vmatprep.subr.bf16.mxu0 0
        %5247 = vmatpush2.bf16.msra.mxu0 0
        %5248 = vmatprep.subr.bf16.mxu0 0
        %5249 = vmatpush2.bf16.msra.mxu0 0
        %5250 = vmatprep.subr.bf16.mxu0 0
        %5251 = vmatpush2.bf16.msra.mxu0 0
        %5252 = vmatprep.mubr.bf16.mxu0 0
        %5253 = vmatmul.mubr.bf16.gmra.mxu0 %v5104
        %v5254 = vpop.f32.mrf.mxu0
        %v5255 = vadd.f32 %v5133, %v5254
        %v5256 = vpop.f32.mrf.mxu0
        %v5257 = vadd.f32 %v5137, %v5256
        %v5258 = vpop.f32.mrf.mxu0
        %v5259 = vadd.f32 %v5133, %v5258
        %v5260 = vpop.f32.mrf.mxu0
        %v5261 = vadd.f32 %v5137, %v5260
        %5262 = vmatprep.mubr.bf16.mxu0 0
        %5263 = vmatmul.mubr.bf16.gmra.mxu0 %v5105
        %v5264 = vpop.f32.mrf.mxu0
        %v5265 = vadd.f32 %v5133, %v5264
        %v5266 = vpop.f32.mrf.mxu0
        %v5267 = vadd.f32 %v5137, %v5266
        %v5268 = vpop.f32.mrf.mxu0
        %v5269 = vadd.f32 %v5133, %v5268
        %v5270 = vpop.f32.mrf.mxu0
        %v5271 = vadd.f32 %v5137, %v5270
        %5272 = vmatprep.mubr.bf16.mxu0 0
        %5273 = vmatmul.mubr.bf16.gmra.mxu0 %v5106
        %v5274 = vpop.f32.mrf.mxu0
        %v5275 = vadd.f32 %v5133, %v5274
        %v5276 = vpop.f32.mrf.mxu0
        %v5277 = vadd.f32 %v5137, %v5276
        %v5278 = vpop.f32.mrf.mxu0
        %v5279 = vadd.f32 %v5133, %v5278
        %v5280 = vpop.f32.mrf.mxu0
        %v5281 = vadd.f32 %v5137, %v5280
        %5282 = vmatprep.mubr.bf16.mxu0 0
        %5283 = vmatmul.mubr.bf16.gmra.mxu0 %v5107
        %v5284 = vpop.f32.mrf.mxu0
        %v5285 = vadd.f32 %v5133, %v5284
        %v5286 = vpop.f32.mrf.mxu0
        %v5287 = vadd.f32 %v5137, %v5286
        %v5288 = vpop.f32.mrf.mxu0
        %v5289 = vadd.f32 %v5133, %v5288
        %v5290 = vpop.f32.mrf.mxu0
        %v5291 = vadd.f32 %v5137, %v5290
        %5292 = vmatprep.mubr.bf16.mxu0 0
        %5293 = vmatmul.mubr.bf16.gmra.mxu0 %v5108
        %v5294 = vpop.f32.mrf.mxu0
        %v5295 = vadd.f32 %v5133, %v5294
        %v5296 = vpop.f32.mrf.mxu0
        %v5297 = vadd.f32 %v5137, %v5296
        %v5298 = vpop.f32.mrf.mxu0
        %v5299 = vadd.f32 %v5133, %v5298
        %v5300 = vpop.f32.mrf.mxu0
        %v5301 = vadd.f32 %v5137, %v5300
        %5302 = vmatprep.mubr.bf16.mxu0 0
        %5303 = vmatmul.mubr.bf16.gmra.mxu0 %v5109
        %v5304 = vpop.f32.mrf.mxu0
        %v5305 = vadd.f32 %v5133, %v5304
        %v5306 = vpop.f32.mrf.mxu0
        %v5307 = vadd.f32 %v5137, %v5306
        %v5308 = vpop.f32.mrf.mxu0
        %v5309 = vadd.f32 %v5133, %v5308
        %v5310 = vpop.f32.mrf.mxu0
        %v5311 = vadd.f32 %v5137, %v5310
        %5312 = vmatprep.mubr.bf16.mxu0 0
        %5313 = vmatmul.mubr.bf16.gmra.mxu0 %v5110
        %v5314 = vpop.f32.mrf.mxu0
        %v5315 = vadd.f32 %v5133, %v5314
        %v5316 = vpop.f32.mrf.mxu0
        %v5317 = vadd.f32 %v5137, %v5316
        %v5318 = vpop.f32.mrf.mxu0
        %v5319 = vadd.f32 %v5133, %v5318
        %v5320 = vpop.f32.mrf.mxu0
        %v5321 = vadd.f32 %v5137, %v5320
        %5322 = vmatprep.mubr.bf16.mxu0 0
        %5323 = vmatmul.mubr.bf16.gmra.mxu0 %v5111
        %v5324 = vpop.f32.mrf.mxu0
        %v5325 = vadd.f32 %v5133, %v5324
        %v5326 = vpop.f32.mrf.mxu0
        %v5327 = vadd.f32 %v5137, %v5326
        %v5328 = vpop.f32.mrf.mxu0
        %v5329 = vadd.f32 %v5133, %v5328
        %v5330 = vpop.f32.mrf.mxu0
        %v5331 = vadd.f32 %v5137, %v5330
        %5332 = vdwg.mxu0
        %v5333 = vxor.u32 %v5255, 2147483648
        %v5334 = vxor.u32 %v5257, 2147483648
        %v5335 = vxor.u32 %v5259, 2147483648
        %v5336 = vxor.u32 %v5261, 2147483648
        %v5337 = vxor.u32 %v5265, 2147483648
        %v5338 = vxor.u32 %v5267, 2147483648
        %v5339 = vxor.u32 %v5269, 2147483648
        %v5340 = vxor.u32 %v5271, 2147483648
        %v5341 = vxor.u32 %v5275, 2147483648
        %v5342 = vxor.u32 %v5277, 2147483648
        %v5343 = vxor.u32 %v5279, 2147483648
        %v5344 = vxor.u32 %v5281, 2147483648
        %v5345 = vxor.u32 %v5285, 2147483648
        %v5346 = vxor.u32 %v5287, 2147483648
        %v5347 = vxor.u32 %v5289, 2147483648
        %v5348 = vxor.u32 %v5291, 2147483648
        %v5349 = vxor.u32 %v5295, 2147483648
        %v5350 = vxor.u32 %v5297, 2147483648
        %v5351 = vxor.u32 %v5299, 2147483648
        %v5352 = vxor.u32 %v5301, 2147483648
        %v5353 = vxor.u32 %v5305, 2147483648
        %v5354 = vxor.u32 %v5307, 2147483648
        %v5355 = vxor.u32 %v5309, 2147483648
        %v5356 = vxor.u32 %v5311, 2147483648
        %v5357 = vxor.u32 %v5315, 2147483648
        %v5358 = vxor.u32 %v5317, 2147483648
        %v5359 = vxor.u32 %v5319, 2147483648
        %v5360 = vxor.u32 %v5321, 2147483648
        %v5361 = vxor.u32 %v5325, 2147483648
        %v5362 = vxor.u32 %v5327, 2147483648
        %v5363 = vxor.u32 %v5329, 2147483648
        %v5364 = vxor.u32 %v5331, 2147483648
        %v5365 = vmul.f32 %v5333, 1.442695
        %v5366 = vpow.pop %v5365
        %v5367 = vmul.f32 %v5334, 1.442695
        %v5368 = vpow.pop %v5367
        %v5369 = vmul.f32 %v5335, 1.442695
        %v5370 = vpow.pop %v5369
        %v5371 = vmul.f32 %v5336, 1.442695
        %v5372 = vpow.pop %v5371
        %v5373 = vmul.f32 %v5337, 1.442695
        %v5374 = vpow.pop %v5373
        %v5375 = vmul.f32 %v5338, 1.442695
        %v5376 = vpow.pop %v5375
        %v5377 = vmul.f32 %v5339, 1.442695
        %v5378 = vpow.pop %v5377
        %v5379 = vmul.f32 %v5340, 1.442695
        %v5380 = vpow.pop %v5379
        %v5381 = vmul.f32 %v5341, 1.442695
        %v5382 = vpow.pop %v5381
        %v5383 = vmul.f32 %v5342, 1.442695
        %v5384 = vpow.pop %v5383
        %v5385 = vmul.f32 %v5343, 1.442695
        %v5386 = vpow.pop %v5385
        %v5387 = vmul.f32 %v5344, 1.442695
        %v5388 = vpow.pop %v5387
        %v5389 = vmul.f32 %v5345, 1.442695
        %v5390 = vpow.pop %v5389
        %v5391 = vmul.f32 %v5346, 1.442695
        %v5392 = vpow.pop %v5391
        %v5393 = vmul.f32 %v5347, 1.442695
        %v5394 = vpow.pop %v5393
        %v5395 = vmul.f32 %v5348, 1.442695
        %v5396 = vpow.pop %v5395
        %v5397 = vmul.f32 %v5349, 1.442695
        %v5398 = vpow.pop %v5397
        %v5399 = vmul.f32 %v5350, 1.442695
        %v5400 = vpow.pop %v5399
        %v5401 = vmul.f32 %v5351, 1.442695
        %v5402 = vpow.pop %v5401
        %v5403 = vmul.f32 %v5352, 1.442695
        %v5404 = vpow.pop %v5403
        %v5405 = vmul.f32 %v5353, 1.442695
        %v5406 = vpow.pop %v5405
        %v5407 = vmul.f32 %v5354, 1.442695
        %v5408 = vpow.pop %v5407
        %v5409 = vmul.f32 %v5355, 1.442695
        %v5410 = vpow.pop %v5409
        %v5411 = vmul.f32 %v5356, 1.442695
        %v5412 = vpow.pop %v5411
        %v5413 = vmul.f32 %v5357, 1.442695
        %v5414 = vpow.pop %v5413
        %v5415 = vmul.f32 %v5358, 1.442695
        %v5416 = vpow.pop %v5415
        %v5417 = vmul.f32 %v5359, 1.442695
        %v5418 = vpow.pop %v5417
        %v5419 = vmul.f32 %v5360, 1.442695
        %v5420 = vpow.pop %v5419
        %v5421 = vmul.f32 %v5361, 1.442695
        %v5422 = vpow.pop %v5421
        %v5423 = vmul.f32 %v5362, 1.442695
        %v5424 = vpow.pop %v5423
        %v5425 = vmul.f32 %v5363, 1.442695
        %v5426 = vpow.pop %v5425
        %v5427 = vmul.f32 %v5364, 1.442695
        %v5428 = vpow.pop %v5427
        %v5429 = vadd.f32 %v5366, 1.0
        %v5430 = vadd.f32 %v5368, 1.0
        %v5431 = vadd.f32 %v5370, 1.0
        %v5432 = vadd.f32 %v5372, 1.0
        %v5433 = vadd.f32 %v5374, 1.0
        %v5434 = vadd.f32 %v5376, 1.0
        %v5435 = vadd.f32 %v5378, 1.0
        %v5436 = vadd.f32 %v5380, 1.0
        %v5437 = vadd.f32 %v5382, 1.0
        %v5438 = vadd.f32 %v5384, 1.0
        %v5439 = vadd.f32 %v5386, 1.0
        %v5440 = vadd.f32 %v5388, 1.0
        %v5441 = vadd.f32 %v5390, 1.0
        %v5442 = vadd.f32 %v5392, 1.0
        %v5443 = vadd.f32 %v5394, 1.0
        %v5444 = vadd.f32 %v5396, 1.0
        %v5445 = vadd.f32 %v5398, 1.0
        %v5446 = vadd.f32 %v5400, 1.0
        %v5447 = vadd.f32 %v5402, 1.0
        %v5448 = vadd.f32 %v5404, 1.0
        %v5449 = vadd.f32 %v5406, 1.0
        %v5450 = vadd.f32 %v5408, 1.0
        %v5451 = vadd.f32 %v5410, 1.0
        %v5452 = vadd.f32 %v5412, 1.0
        %v5453 = vadd.f32 %v5414, 1.0
        %v5454 = vadd.f32 %v5416, 1.0
        %v5455 = vadd.f32 %v5418, 1.0
        %v5456 = vadd.f32 %v5420, 1.0
        %v5457 = vadd.f32 %v5422, 1.0
        %v5458 = vadd.f32 %v5424, 1.0
        %v5459 = vadd.f32 %v5426, 1.0
        %v5460 = vadd.f32 %v5428, 1.0
        %v5461 = vrcp.pop %v5429
        %v5462 = vmul.f32 1.0, %v5461
        %v5463 = vrcp.pop %v5430
        %v5464 = vmul.f32 1.0, %v5463
        %v5465 = vrcp.pop %v5431
        %v5466 = vmul.f32 1.0, %v5465
        %v5467 = vrcp.pop %v5432
        %v5468 = vmul.f32 1.0, %v5467
        %v5469 = vrcp.pop %v5433
        %v5470 = vmul.f32 1.0, %v5469
        %v5471 = vrcp.pop %v5434
        %v5472 = vmul.f32 1.0, %v5471
        %v5473 = vrcp.pop %v5435
        %v5474 = vmul.f32 1.0, %v5473
        %v5475 = vrcp.pop %v5436
        %v5476 = vmul.f32 1.0, %v5475
        %v5477 = vrcp.pop %v5437
        %v5478 = vmul.f32 1.0, %v5477
        %v5479 = vrcp.pop %v5438
        %v5480 = vmul.f32 1.0, %v5479
        %v5481 = vrcp.pop %v5439
        %v5482 = vmul.f32 1.0, %v5481
        %v5483 = vrcp.pop %v5440
        %v5484 = vmul.f32 1.0, %v5483
        %v5485 = vrcp.pop %v5441
        %v5486 = vmul.f32 1.0, %v5485
        %v5487 = vrcp.pop %v5442
        %v5488 = vmul.f32 1.0, %v5487
        %v5489 = vrcp.pop %v5443
        %v5490 = vmul.f32 1.0, %v5489
        %v5491 = vrcp.pop %v5444
        %v5492 = vmul.f32 1.0, %v5491
        %v5493 = vrcp.pop %v5445
        %v5494 = vmul.f32 1.0, %v5493
        %v5495 = vrcp.pop %v5446
        %v5496 = vmul.f32 1.0, %v5495
        %v5497 = vrcp.pop %v5447
        %v5498 = vmul.f32 1.0, %v5497
        %v5499 = vrcp.pop %v5448
        %v5500 = vmul.f32 1.0, %v5499
        %v5501 = vrcp.pop %v5449
        %v5502 = vmul.f32 1.0, %v5501
        %v5503 = vrcp.pop %v5450
        %v5504 = vmul.f32 1.0, %v5503
        %v5505 = vrcp.pop %v5451
        %v5506 = vmul.f32 1.0, %v5505
        %v5507 = vrcp.pop %v5452
        %v5508 = vmul.f32 1.0, %v5507
        %v5509 = vrcp.pop %v5453
        %v5510 = vmul.f32 1.0, %v5509
        %v5511 = vrcp.pop %v5454
        %v5512 = vmul.f32 1.0, %v5511
        %v5513 = vrcp.pop %v5455
        %v5514 = vmul.f32 1.0, %v5513
        %v5515 = vrcp.pop %v5456
        %v5516 = vmul.f32 1.0, %v5515
        %v5517 = vrcp.pop %v5457
        %v5518 = vmul.f32 1.0, %v5517
        %v5519 = vrcp.pop %v5458
        %v5520 = vmul.f32 1.0, %v5519
        %v5521 = vrcp.pop %v5459
        %v5522 = vmul.f32 1.0, %v5521
        %v5523 = vrcp.pop %v5460
        %v5524 = vmul.f32 1.0, %v5523
        %v5525 = vmul.f32 %v5255, %v5462
        %v5526 = vmul.f32 %v5257, %v5464
        %v5527 = vmul.f32 %v5259, %v5466
        %v5528 = vmul.f32 %v5261, %v5468
        %v5529 = vmul.f32 %v5265, %v5470
        %v5530 = vmul.f32 %v5267, %v5472
        %v5531 = vmul.f32 %v5269, %v5474
        %v5532 = vmul.f32 %v5271, %v5476
        %v5533 = vmul.f32 %v5275, %v5478
        %v5534 = vmul.f32 %v5277, %v5480
        %v5535 = vmul.f32 %v5279, %v5482
        %v5536 = vmul.f32 %v5281, %v5484
        %v5537 = vmul.f32 %v5285, %v5486
        %v5538 = vmul.f32 %v5287, %v5488
        %v5539 = vmul.f32 %v5289, %v5490
        %v5540 = vmul.f32 %v5291, %v5492
        %v5541 = vmul.f32 %v5295, %v5494
        %v5542 = vmul.f32 %v5297, %v5496
        %v5543 = vmul.f32 %v5299, %v5498
        %v5544 = vmul.f32 %v5301, %v5500
        %v5545 = vmul.f32 %v5305, %v5502
        %v5546 = vmul.f32 %v5307, %v5504
        %v5547 = vmul.f32 %v5309, %v5506
        %v5548 = vmul.f32 %v5311, %v5508
        %v5549 = vmul.f32 %v5315, %v5510
        %v5550 = vmul.f32 %v5317, %v5512
        %v5551 = vmul.f32 %v5319, %v5514
        %v5552 = vmul.f32 %v5321, %v5516
        %v5553 = vmul.f32 %v5325, %v5518
        %v5554 = vmul.f32 %v5327, %v5520
        %v5555 = vmul.f32 %v5329, %v5522
        %v5556 = vmul.f32 %v5331, %v5524
        %v5557 = vpack.c.bf16 %v5527, %v5525
        %v5558 = vpack.c.bf16 %v5528, %v5526
        %v5559 = vpack.c.bf16 %v5531, %v5529
        %v5560 = vpack.c.bf16 %v5532, %v5530
        %v5561 = vpack.c.bf16 %v5535, %v5533
        %v5562 = vpack.c.bf16 %v5536, %v5534
        %v5563 = vpack.c.bf16 %v5539, %v5537
        %v5564 = vpack.c.bf16 %v5540, %v5538
        %v5565 = vpack.c.bf16 %v5543, %v5541
        %v5566 = vpack.c.bf16 %v5544, %v5542
        %v5567 = vpack.c.bf16 %v5547, %v5545
        %v5568 = vpack.c.bf16 %v5548, %v5546
        %v5569 = vpack.c.bf16 %v5551, %v5549
        %v5570 = vpack.c.bf16 %v5552, %v5550
        %v5571 = vpack.c.bf16 %v5555, %v5553
        %v5572 = vpack.c.bf16 %v5556, %v5554
        %v5573 = vld [vmem:[#allocation18] sm:$0xf]
        %v5574 = vld [vmem:[#allocation18 + $0x4] sm:$0xf]
        %v5575 = vld [vmem:[#allocation18 + $0x8] sm:$0xf]
        %v5576 = vld [vmem:[#allocation18 + $0xc] sm:$0xf]
        %v5577 = vld [vmem:[#allocation18 + $0x10] sm:$0xf]
        %v5578 = vld [vmem:[#allocation18 + $0x14] sm:$0xf]
        %v5579 = vld [vmem:[#allocation18 + $0x18] sm:$0xf]
        %v5580 = vld [vmem:[#allocation18 + $0x1c] sm:$0xf]
        %v5581 = vld [vmem:[#allocation18 + $0x20] sm:$0xf]
        %v5582 = vld [vmem:[#allocation18 + $0x24] sm:$0xf]
        %v5583 = vld [vmem:[#allocation18 + $0x28] sm:$0xf]
        %v5584 = vld [vmem:[#allocation18 + $0x2c] sm:$0xf]
        %v5585 = vld [vmem:[#allocation18 + $0x30] sm:$0xf]
        %v5586 = vld [vmem:[#allocation18 + $0x34] sm:$0xf]
        %v5587 = vld [vmem:[#allocation18 + $0x38] sm:$0xf]
        %v5588 = vld [vmem:[#allocation18 + $0x3c] sm:$0xf]
        %v5589 = vld [vmem:[#allocation18 + $0x40] sm:$0xf]
        %v5590 = vld [vmem:[#allocation18 + $0x44] sm:$0xf]
        %v5591 = vld [vmem:[#allocation18 + $0x48] sm:$0xf]
        %v5592 = vld [vmem:[#allocation18 + $0x4c] sm:$0xf]
        %v5593 = vld [vmem:[#allocation18 + $0x50] sm:$0xf]
        %v5594 = vld [vmem:[#allocation18 + $0x54] sm:$0xf]
        %v5595 = vld [vmem:[#allocation18 + $0x58] sm:$0xf]
        %v5596 = vld [vmem:[#allocation18 + $0x5c] sm:$0xf]
        %v5597 = vld [vmem:[#allocation18 + $0x60] sm:$0xf]
        %v5598 = vld [vmem:[#allocation18 + $0x64] sm:$0xf]
        %v5599 = vld [vmem:[#allocation18 + $0x68] sm:$0xf]
        %v5600 = vld [vmem:[#allocation18 + $0x6c] sm:$0xf]
        %v5601 = vld [vmem:[#allocation18 + $0x70] sm:$0xf]
        %v5602 = vld [vmem:[#allocation18 + $0x74] sm:$0xf]
        %v5603 = vld [vmem:[#allocation18 + $0x78] sm:$0xf]
        %v5604 = vld [vmem:[#allocation18 + $0x7c] sm:$0xf]
        %v5605 = vld [vmem:[%s16] sm:$0x1]
        %v5607 = vlaneseq
        %v5608 = vshrl.u32 %v5607, 7
        %v5609 = vsub.s32 0, %v5608
        %v5610 = vrot.slane %v5605, %v5609
        %v5644 = vunpack.c.l.b16 %v5573
        %v5645 = vunpack.c.l.b16 %v5574
        %v5646 = vunpack.c.l.b16 %v5575
        %v5647 = vunpack.c.l.b16 %v5576
        %v5648 = vunpack.c.l.b16 %v5577
        %v5649 = vunpack.c.l.b16 %v5578
        %v5650 = vunpack.c.l.b16 %v5579
        %v5651 = vunpack.c.l.b16 %v5580
        %v5652 = vunpack.c.l.b16 %v5581
        %v5653 = vunpack.c.l.b16 %v5582
        %v5654 = vunpack.c.l.b16 %v5583
        %v5655 = vunpack.c.l.b16 %v5584
        %v5656 = vunpack.c.l.b16 %v5585
        %v5657 = vunpack.c.l.b16 %v5586
        %v5658 = vunpack.c.l.b16 %v5587
        %v5659 = vunpack.c.l.b16 %v5588
        %v5660 = vunpack.c.l.b16 %v5589
        %v5661 = vunpack.c.l.b16 %v5590
        %v5662 = vunpack.c.l.b16 %v5591
        %v5663 = vunpack.c.l.b16 %v5592
        %v5664 = vunpack.c.l.b16 %v5593
        %v5665 = vunpack.c.l.b16 %v5594
        %v5666 = vunpack.c.l.b16 %v5595
        %v5667 = vunpack.c.l.b16 %v5596
        %v5668 = vunpack.c.l.b16 %v5597
        %v5669 = vunpack.c.l.b16 %v5598
        %v5670 = vunpack.c.l.b16 %v5599
        %v5671 = vunpack.c.l.b16 %v5600
        %v5672 = vunpack.c.l.b16 %v5601
        %v5673 = vunpack.c.l.b16 %v5602
        %v5674 = vunpack.c.l.b16 %v5603
        %v5675 = vunpack.c.l.b16 %v5604
        %v5676 = vpack.c.b16 %v5645, %v5644
        %v5677 = vpack.c.b16 %v5647, %v5646
        %v5678 = vpack.c.b16 %v5649, %v5648
        %v5679 = vpack.c.b16 %v5651, %v5650
        %v5680 = vpack.c.b16 %v5653, %v5652
        %v5681 = vpack.c.b16 %v5655, %v5654
        %v5682 = vpack.c.b16 %v5657, %v5656
        %v5683 = vpack.c.b16 %v5659, %v5658
        %v5684 = vpack.c.b16 %v5661, %v5660
        %v5685 = vpack.c.b16 %v5663, %v5662
        %v5686 = vpack.c.b16 %v5665, %v5664
        %v5687 = vpack.c.b16 %v5667, %v5666
        %v5688 = vpack.c.b16 %v5669, %v5668
        %v5689 = vpack.c.b16 %v5671, %v5670
        %v5690 = vpack.c.b16 %v5673, %v5672
        %v5691 = vpack.c.b16 %v5675, %v5674
        %5708 = vmatprep.subr.bf16.mxu0 0
        %5709 = vmatpush1.bf16.msra.mxu0 %v5683
        %5710 = vmatprep.subr.bf16.mxu0 0
        %5711 = vmatpush1.bf16.msra.mxu0 %v5682
        %5712 = vmatprep.subr.bf16.mxu0 0
        %5713 = vmatpush1.bf16.msra.mxu0 %v5681
        %5714 = vmatprep.subr.bf16.mxu0 0
        %5715 = vmatpush1.bf16.msra.mxu0 %v5680
        %5716 = vmatprep.subr.bf16.mxu0 0
        %5717 = vmatpush1.bf16.msra.mxu0 %v5679
        %5718 = vmatprep.subr.bf16.mxu0 0
        %5719 = vmatpush1.bf16.msra.mxu0 %v5678
        %5720 = vmatprep.subr.bf16.mxu0 0
        %5721 = vmatpush1.bf16.msra.mxu0 %v5677
        %5722 = vmatprep.subr.bf16.mxu0 0
        %5723 = vmatpush1.bf16.msra.mxu0 %v5676
        %5724 = vmatprep.subr.bf16.mxu0 0
        %5725 = vmatpush2.bf16.msra.mxu0 %v5691
        %5726 = vmatprep.subr.bf16.mxu0 0
        %5727 = vmatpush2.bf16.msra.mxu0 %v5690
        %5728 = vmatprep.subr.bf16.mxu0 0
        %5729 = vmatpush2.bf16.msra.mxu0 %v5689
        %5730 = vmatprep.subr.bf16.mxu0 0
        %5731 = vmatpush2.bf16.msra.mxu0 %v5688
        %5732 = vmatprep.subr.bf16.mxu0 0
        %5733 = vmatpush2.bf16.msra.mxu0 %v5687
        %5734 = vmatprep.subr.bf16.mxu0 0
        %5735 = vmatpush2.bf16.msra.mxu0 %v5686
        %5736 = vmatprep.subr.bf16.mxu0 0
        %5737 = vmatpush2.bf16.msra.mxu0 %v5685
        %5738 = vmatprep.subr.bf16.mxu0 0
        %5739 = vmatpush2.bf16.msra.mxu0 %v5684
        %5740 = vmatprep.mubr.bf16.mxu0 %v5558
        %5741 = vmatmul.mubr.bf16.gmra.mxu0 %v5557
        %v5742 = vpop.f32.mrf.mxu0
        %v5743 = vadd.f32 %v5610, %v5742
        %v5744 = vpop.f32.mrf.mxu0
        %v5745 = vpop.f32.mrf.mxu0
        %v5746 = vadd.f32 %v5610, %v5745
        %v5747 = vpop.f32.mrf.mxu0
        %5748 = vmatprep.mubr.bf16.mxu0 %v5560
        %5749 = vmatmul.mubr.bf16.gmra.mxu0 %v5559
        %v5750 = vpop.f32.mrf.mxu0
        %v5751 = vadd.f32 %v5610, %v5750
        %v5752 = vpop.f32.mrf.mxu0
        %v5753 = vpop.f32.mrf.mxu0
        %v5754 = vadd.f32 %v5610, %v5753
        %v5755 = vpop.f32.mrf.mxu0
        %5756 = vmatprep.mubr.bf16.mxu0 %v5562
        %5757 = vmatmul.mubr.bf16.gmra.mxu0 %v5561
        %v5758 = vpop.f32.mrf.mxu0
        %v5759 = vadd.f32 %v5610, %v5758
        %v5760 = vpop.f32.mrf.mxu0
        %v5761 = vpop.f32.mrf.mxu0
        %v5762 = vadd.f32 %v5610, %v5761
        %v5763 = vpop.f32.mrf.mxu0
        %5764 = vmatprep.mubr.bf16.mxu0 %v5564
        %5765 = vmatmul.mubr.bf16.gmra.mxu0 %v5563
        %v5766 = vpop.f32.mrf.mxu0
        %v5767 = vadd.f32 %v5610, %v5766
        %v5768 = vpop.f32.mrf.mxu0
        %v5769 = vpop.f32.mrf.mxu0
        %v5770 = vadd.f32 %v5610, %v5769
        %v5771 = vpop.f32.mrf.mxu0
        %5772 = vmatprep.mubr.bf16.mxu0 %v5566
        %5773 = vmatmul.mubr.bf16.gmra.mxu0 %v5565
        %v5774 = vpop.f32.mrf.mxu0
        %v5775 = vadd.f32 %v5610, %v5774
        %v5776 = vpop.f32.mrf.mxu0
        %v5777 = vpop.f32.mrf.mxu0
        %v5778 = vadd.f32 %v5610, %v5777
        %v5779 = vpop.f32.mrf.mxu0
        %5780 = vmatprep.mubr.bf16.mxu0 %v5568
        %5781 = vmatmul.mubr.bf16.gmra.mxu0 %v5567
        %v5782 = vpop.f32.mrf.mxu0
        %v5783 = vadd.f32 %v5610, %v5782
        %v5784 = vpop.f32.mrf.mxu0
        %v5785 = vpop.f32.mrf.mxu0
        %v5786 = vadd.f32 %v5610, %v5785
        %v5787 = vpop.f32.mrf.mxu0
        %5788 = vmatprep.mubr.bf16.mxu0 %v5570
        %5789 = vmatmul.mubr.bf16.gmra.mxu0 %v5569
        %v5790 = vpop.f32.mrf.mxu0
        %v5791 = vadd.f32 %v5610, %v5790
        %v5792 = vpop.f32.mrf.mxu0
        %v5793 = vpop.f32.mrf.mxu0
        %v5794 = vadd.f32 %v5610, %v5793
        %v5795 = vpop.f32.mrf.mxu0
        %5796 = vmatprep.mubr.bf16.mxu0 %v5572
        %5797 = vmatmul.mubr.bf16.gmra.mxu0 %v5571
        %v5798 = vpop.f32.mrf.mxu0
        %v5799 = vadd.f32 %v5610, %v5798
        %v5800 = vpop.f32.mrf.mxu0
        %v5801 = vpop.f32.mrf.mxu0
        %v5802 = vadd.f32 %v5610, %v5801
        %v5803 = vpop.f32.mrf.mxu0
        %5804 = vdwg.mxu0
        %v5805 = vadd.f32 %v4753, %v5743
        %v5806 = vadd.f32 %v4754, %v5746
        %v5807 = vadd.f32 %v4755, %v5751
        %v5808 = vadd.f32 %v4756, %v5754
        %v5809 = vadd.f32 %v4757, %v5759
        %v5810 = vadd.f32 %v4758, %v5762
        %v5811 = vadd.f32 %v4759, %v5767
        %v5812 = vadd.f32 %v4760, %v5770
        %v5813 = vadd.f32 %v4761, %v5775
        %v5814 = vadd.f32 %v4762, %v5778
        %v5815 = vadd.f32 %v4763, %v5783
        %v5816 = vadd.f32 %v4764, %v5786
        %v5817 = vadd.f32 %v4765, %v5791
        %v5818 = vadd.f32 %v4766, %v5794
        %v5819 = vadd.f32 %v4767, %v5799
        %v5820 = vadd.f32 %v4768, %v5802
        %5821 = vst [vmem:[%s680] sm:$0xff] %v5805
        %5822 = vst [vmem:[%s680 + $0x8] sm:$0xff] %v5806
        %5823 = vst [vmem:[%s680 + $0x10] sm:$0xff] %v5807
        %5824 = vst [vmem:[%s680 + $0x18] sm:$0xff] %v5808
        %5825 = vst [vmem:[%s680 + $0x20] sm:$0xff] %v5809
        %5826 = vst [vmem:[%s680 + $0x28] sm:$0xff] %v5810
        %5827 = vst [vmem:[%s680 + $0x30] sm:$0xff] %v5811
        %5828 = vst [vmem:[%s680 + $0x38] sm:$0xff] %v5812
        %5829 = vst [vmem:[%s680 + $0x40] sm:$0xff] %v5813
        %5830 = vst [vmem:[%s680 + $0x48] sm:$0xff] %v5814
        %5831 = vst [vmem:[%s680 + $0x50] sm:$0xff] %v5815
        %5832 = vst [vmem:[%s680 + $0x58] sm:$0xff] %v5816
        %5833 = vst [vmem:[%s680 + $0x60] sm:$0xff] %v5817
        %5834 = vst [vmem:[%s680 + $0x68] sm:$0xff] %v5818
        %5835 = vst [vmem:[%s680 + $0x70] sm:$0xff] %v5819
        %5836 = vst [vmem:[%s680 + $0x78] sm:$0xff] %v5820
        %s5837 = sand.u32 %s422, 1
        %s5838 = scalar_lea.sflag [#allocation8], %s5837
        %s5839 = sand.u32 %s422, 1
        %s5840 = smul.addr %s5839, 128
        %s5841 = scalar_lea.vmem [#allocation20], %s5840
        // Predicated region
        $region125: #{tpu_custom_call.1} parent=87 // pred_check
          %p5842 = pneg %p432
        $region126: #{tpu_custom_call.1} parent=87 // pred_check_branch
          %5844 = sbr.rel (%p5842) target = $region128
        $region127: #{tpu_custom_call.1} parent=87 // pred_region
          %s5845 = smul.u32 16, %s43
          %s5847 = ssub.s32 2048, 2048
          %5848 = vsyncadd %s5838, %s5847
          %s5849 = smul.addr %s42, 16
          %s5850 = sadd.s32 %s5845, %s5849
          %s5851 = smul.addr %s5850, 128
          %s5852 = scalar_lea.hbm %s17, %s5851
          %s5853 = sshll.u32 %s5841, 4
          %s5854 = int_to_ptr.vmem [resolvable:$true] %s5853
          %5859 = dma.vmem_to_hbm [thread:$0]  %s5854, 2048, %s5852, %s5838, 128, 128, 8
        $region128: #{tpu_custom_call.1} parent=87 // pred_fallthru
          _
      $region88: #{tpu_custom_call.1} parent=5 // pred_fallthru
        _
      %p5860 = scmp.le.s32.totalorder 2, %s33
      // Predicated region
      $region129: #{tpu_custom_call.1} parent=5 // pred_check
        %p5861 = pneg %p5860
      $region130: #{tpu_custom_call.1} parent=5 // pred_check_branch
        %5863 = sbr.rel (%p5861) target = $region132
      $region131: #{tpu_custom_call.1} parent=5 // pred_region
        %s5864 = ssub.s32 %s33, 2
        // Predicated region
        $region133: #{tpu_custom_call.1} parent=131 // pred_check
          %p5865 = pneg %p438
        $region134: #{tpu_custom_call.1} parent=131 // pred_check_branch
          %5867 = sbr.rel (%p5865) target = $region136
        $region135: #{tpu_custom_call.1} parent=131 // pred_region
          %s5868 = sand.u32 %s423, 1
          %s5869 = scalar_lea.sflag [#allocation8], %s5868
          %s5870 = sand.u32 %s423, 1
          %s5871 = smul.addr %s5870, 128
          %s5872 = scalar_lea.vmem [#allocation20], %s5871
          %5873 = dma.done %s5869, 2048
        $region136: #{tpu_custom_call.1} parent=131 // pred_fallthru
          _
      $region132: #{tpu_custom_call.1} parent=5 // pred_fallthru
        _
    $region6: #{tpu_custom_call.1} parent=1 // loop_footer
      %s37 = sadd.s32 1, %s33
    $region7: #{tpu_custom_call.1} parent=1 // loop_footer_branch
      %32 = sbr.rel target = $region3
    $region8: #{tpu_custom_call.1} parent=1 // loop_exit
      _
    %5874 = vsyncpa [#allocation7], 1
    %s5875 = scalar_lea.sflag [#allocation7], 1
    %5876 = vsyncpa %s5875, 1
    %5877 = vsyncpa [#allocation10], 1
    %5878 = vsyncpa [#allocation13], 1
    %5879 = vsyncpa [#allocation16], 1
    %5880 = vsyncpa [#allocation19], 1
    %5881 = vsyncpa [#allocation8], 1
    %s5882 = scalar_lea.sflag [#allocation8], 1
    %5883 = vsyncpa %s5882, 1

</llo_original>
